<compile_context>
chip_gen: v5e
topology: v5e:2x2
jax: 0.10.0
libtpu: 0.0.40
codegen_flags: <defaults>
</compile_context>

<pallas_src>
import jax
import jax.numpy as jnp
from jax.experimental import pallas as pl
from jax.experimental.pallas import tpu as pltpu


def _make_fused_kernel(N, Cin, Cmid, Cout, KH, KW, Hout, Wout):
    """Builds the fused ConvTranspose2d(1x1)+tanh -> Conv2d((KH,KW),s=2)+tanh kernel."""

    def kernel(xp_ref, wt_ref, bt_ref, wc_ref, bc_ref, o_ref):
        # xp_ref : (4*Cin, N, H//2, W//2) VMEM  -- polyphase input, phase-major:
        #          row (ph*2+pw)*Cin + ci  holds  x[:, ci, ph::2, pw::2]
        # wt_ref : (Cin*Cmid,)          SMEM  -- ConvT 1x1 weight, (ci, cm) row-major
        # bt_ref : (Cmid,)              SMEM
        # wc_ref : (Cout*Cmid*KH*KW,)   SMEM  -- Conv2d weight, (co, cm, kh, kw) row-major
        # bc_ref : (Cout,)              SMEM
        # o_ref  : (N, Cout, Hout, Wout) VMEM  (NCHW, written directly)

        # Conv output accumulators, initialised with the conv bias (VPU only).
        accs = [jnp.full((N, Hout, Wout), bc_ref[co], jnp.float32)
                for co in range(Cout)]

        # Loop over the intermediate channels of the 1x1 transpose conv; each
        # channel is produced (stage 1) and consumed by its conv taps (stage 2)
        # immediately, keeping register/VMEM pressure low.
        for cm in range(Cmid):
            bt_cm = bt_ref[cm]
            wt_cm = [wt_ref[ci * Cmid + cm] for ci in range(Cin)]

            # --- stage 1: v2[:, cm] for each (row, col) parity phase -----------
            planes = {}
            for ph in range(2):
                for pw in range(2):
                    acc = None
                    for ci in range(Cin):
                        x_phase = xp_ref[(ph * 2 + pw) * Cin + ci]   # (N, H2, W2)
                        term = wt_cm[ci] * x_phase
                        acc = term if acc is None else acc + term
                    planes[(ph, pw)] = jnp.tanh(acc + bt_cm)         # (N, H2, W2)

            # --- stage 2: stride-2 conv taps as static contiguous windows ------
            # input index 2*ho+kh = 2*(ho+ah)+ph with (ah, ph) = divmod(kh, 2)
            # input index 2*wo+kw = 2*(wo+aw)+pw with (aw, pw) = divmod(kw, 2)
            for kh in range(KH):
                ah, ph = divmod(kh, 2)
                for kw in range(KW):
                    aw, pw = divmod(kw, 2)
                    win = planes[(ph, pw)][:, ah:ah + Hout, aw:aw + Wout]  # (N,Hout,Wout)
                    for co in range(Cout):
                        w = wc_ref[((co * Cmid + cm) * KH + kh) * KW + kw]
                        accs[co] = accs[co] + w * win

        # Finalize: tanh on the EUP, store straight into NCHW output.
        for co in range(Cout):
            res = jnp.tanh(accs[co])            # (N, Hout, Wout)
            for n in range(N):
                o_ref[n, co] = res[n]

    return kernel


def model_forward(x, wt, bt, wc, bc):
    """Forward pass equivalent to the PyTorch Model.

    x  : (N, 4, H, W) float32 (NCHW)
    wt : (4, 4, 1, 1)  ConvTranspose2d weight (in, out, kh, kw)
    bt : (4,)          ConvTranspose2d bias
    wc : (5, 4, 3, 5)  Conv2d weight (out, in, kh, kw)
    bc : (5,)          Conv2d bias
    returns (N, 5, Hout, Wout) float32 (NCHW)
    """
    N, Cin, H, W = x.shape
    Cmid = wt.shape[1]
    Cout, _, KH, KW = wc.shape
    SH = SW = 2
    assert H % 2 == 0 and W % 2 == 0, "polyphase split assumes even H, W"
    H2, W2 = H // 2, W // 2
    Hout = (H - KH) // SH + 1
    Wout = (W - KW) // SW + 1
    assert (KH - 1) // 2 + Hout <= H2 and (KW - 1) // 2 + Wout <= W2

    # Phase-major polyphase layout of the input (tiny 8 KiB relayout). This makes
    # every stride-2 conv tap a contiguous static window inside the kernel, so
    # there is no in-kernel strided/lane-gather access and no XLA-side im2col.
    xp = x.reshape(N, Cin, H2, 2, W2, 2)
    xp = jnp.transpose(xp, (3, 5, 1, 0, 2, 4))       # (2, 2, Cin, N, H2, W2)
    xp = xp.reshape(2 * 2 * Cin, N, H2, W2)

    # Tiny parameters -> flat 1-D SMEM arrays (scalar reads in-kernel, no padded
    # VMEM tiles / extra DMA streams).
    wt_flat = wt[:, :, 0, 0].reshape(-1)             # (Cin*Cmid,), (ci, cm) order
    wc_flat = wc.reshape(-1)                         # (Cout*Cmid*KH*KW,)

    kernel = _make_fused_kernel(N, Cin, Cmid, Cout, KH, KW, Hout, Wout)

    return pl.pallas_call(
        kernel,
        out_shape=jax.ShapeDtypeStruct((N, Cout, Hout, Wout), jnp.float32),
        in_specs=[
            pl.BlockSpec(memory_space=pltpu.MemorySpace.VMEM),   # xp (polyphase input)
            pl.BlockSpec(memory_space=pltpu.MemorySpace.SMEM),   # wt_flat
            pl.BlockSpec(memory_space=pltpu.MemorySpace.SMEM),   # bt
            pl.BlockSpec(memory_space=pltpu.MemorySpace.SMEM),   # wc_flat
            pl.BlockSpec(memory_space=pltpu.MemorySpace.SMEM),   # bc
        ],
        out_specs=pl.BlockSpec(memory_space=pltpu.MemorySpace.VMEM),
    )(xp, wt_flat, bt, wc_flat, bc)


def _reference(x, wt, bt, wc, bc):
    """Pure-JAX reference matching PyTorch semantics (for correctness check)."""
    v1 = jnp.einsum('nchw,cd->ndhw', x, wt[:, :, 0, 0]) + bt[None, :, None, None]
    v2 = jnp.tanh(v1)
    v3 = jax.lax.conv_general_dilated(
        v2, wc, window_strides=(2, 2), padding='VALID',
        dimension_numbers=('NCHW', 'OIHW', 'NCHW'))
    v3 = v3 + bc[None, :, None, None]
    return jnp.tanh(v3)


if __name__ == "__main__":
    key = jax.random.PRNGKey(0)
    k1, k2, k3, k4, kx = jax.random.split(key, 5)

    # Deterministic PyTorch-style uniform(-1/sqrt(fan_in), +) parameter init.
    bound_t = 1.0 / (4 * 1 * 1) ** 0.5
    wt = jax.random.uniform(k1, (4, 4, 1, 1), jnp.float32, -bound_t, bound_t)
    bt = jax.random.uniform(k2, (4,), jnp.float32, -bound_t, bound_t)

    bound_c = 1.0 / (4 * 3 * 5) ** 0.5
    wc = jax.random.uniform(k3, (5, 4, 3, 5), jnp.float32, -bound_c, bound_c)
    bc = jax.random.uniform(k4, (5,), jnp.float32, -bound_c, bound_c)

    # Small input consistent with the module: batch=2, channels=4, spatial=16
    # (the module's (3,5) stride-2 conv needs spatial >= (3,5)).
    x = jax.random.normal(kx, (2, 4, 16, 16), jnp.float32)

    out = jax.jit(model_forward)(x, wt, bt, wc, bc)
    out = jax.block_until_ready(out)

    assert out.shape == (2, 5, 7, 6), out.shape
    assert out.dtype == jnp.float32

    ref = jax.block_until_ready(jax.jit(_reference)(x, wt, bt, wc, bc))
    assert bool(jnp.allclose(out, ref, atol=1e-5, rtol=1e-5)), "mismatch vs reference"

    print("KERNEL_OK")
</pallas_src>

<mosaic_0001>
module attributes {stable_mosaic.version = 11 : i64} {
  func.func @kernel(%arg0: memref<16x2x8x8xf32, #tpu.memory_space<vmem>>, %arg1: memref<16xf32, #tpu.memory_space<smem>>, %arg2: memref<4xf32, #tpu.memory_space<smem>>, %arg3: memref<300xf32, #tpu.memory_space<smem>>, %arg4: memref<5xf32, #tpu.memory_space<smem>>, %arg5: memref<2x5x7x6xf32, #tpu.memory_space<vmem>>) attributes {dimension_semantics = [], scalar_prefetch = 0 : i64, scratch_operands = 0 : i64, tpu.core_type = #tpu.core_type<tc>} {
    %c0 = arith.constant 0 : index
    %0 = memref.load %arg4[%c0] : memref<5xf32, #tpu.memory_space<smem>>
    %1 = vector.broadcast %0 : f32 to vector<2x7x6xf32>
    %c1 = arith.constant 1 : index
    %2 = memref.load %arg4[%c1] : memref<5xf32, #tpu.memory_space<smem>>
    %3 = vector.broadcast %2 : f32 to vector<2x7x6xf32>
    %c2 = arith.constant 2 : index
    %4 = memref.load %arg4[%c2] : memref<5xf32, #tpu.memory_space<smem>>
    %5 = vector.broadcast %4 : f32 to vector<2x7x6xf32>
    %c3 = arith.constant 3 : index
    %6 = memref.load %arg4[%c3] : memref<5xf32, #tpu.memory_space<smem>>
    %7 = vector.broadcast %6 : f32 to vector<2x7x6xf32>
    %c4 = arith.constant 4 : index
    %8 = memref.load %arg4[%c4] : memref<5xf32, #tpu.memory_space<smem>>
    %9 = vector.broadcast %8 : f32 to vector<2x7x6xf32>
    %c0_0 = arith.constant 0 : index
    %10 = memref.load %arg2[%c0_0] : memref<4xf32, #tpu.memory_space<smem>>
    %c0_1 = arith.constant 0 : index
    %11 = memref.load %arg1[%c0_1] : memref<16xf32, #tpu.memory_space<smem>>
    %c4_2 = arith.constant 4 : index
    %12 = memref.load %arg1[%c4_2] : memref<16xf32, #tpu.memory_space<smem>>
    %c8 = arith.constant 8 : index
    %13 = memref.load %arg1[%c8] : memref<16xf32, #tpu.memory_space<smem>>
    %c12 = arith.constant 12 : index
    %14 = memref.load %arg1[%c12] : memref<16xf32, #tpu.memory_space<smem>>
    %c0_3 = arith.constant 0 : index
    %c0_4 = arith.constant 0 : index
    %c0_5 = arith.constant 0 : index
    %c0_6 = arith.constant 0 : index
    %15 = vector.load %arg0[%c0_3, %c0_4, %c0_5, %c0_6] : memref<16x2x8x8xf32, #tpu.memory_space<vmem>>, vector<1x2x8x8xf32>
    %16 = vector.shape_cast %15 : vector<1x2x8x8xf32> to vector<2x8x8xf32>
    %17 = vector.broadcast %11 : f32 to vector<2x8x8xf32>
    %18 = arith.mulf %17, %16 : vector<2x8x8xf32>
    %c1_7 = arith.constant 1 : index
    %c0_8 = arith.constant 0 : index
    %c0_9 = arith.constant 0 : index
    %c0_10 = arith.constant 0 : index
    %19 = vector.load %arg0[%c1_7, %c0_8, %c0_9, %c0_10] : memref<16x2x8x8xf32, #tpu.memory_space<vmem>>, vector<1x2x8x8xf32>
    %20 = vector.shape_cast %19 : vector<1x2x8x8xf32> to vector<2x8x8xf32>
    %21 = vector.broadcast %12 : f32 to vector<2x8x8xf32>
    %22 = arith.mulf %21, %20 : vector<2x8x8xf32>
    %23 = arith.addf %18, %22 : vector<2x8x8xf32>
    %c2_11 = arith.constant 2 : index
    %c0_12 = arith.constant 0 : index
    %c0_13 = arith.constant 0 : index
    %c0_14 = arith.constant 0 : index
    %24 = vector.load %arg0[%c2_11, %c0_12, %c0_13, %c0_14] : memref<16x2x8x8xf32, #tpu.memory_space<vmem>>, vector<1x2x8x8xf32>
    %25 = vector.shape_cast %24 : vector<1x2x8x8xf32> to vector<2x8x8xf32>
    %26 = vector.broadcast %13 : f32 to vector<2x8x8xf32>
    %27 = arith.mulf %26, %25 : vector<2x8x8xf32>
    %28 = arith.addf %23, %27 : vector<2x8x8xf32>
    %c3_15 = arith.constant 3 : index
    %c0_16 = arith.constant 0 : index
    %c0_17 = arith.constant 0 : index
    %c0_18 = arith.constant 0 : index
    %29 = vector.load %arg0[%c3_15, %c0_16, %c0_17, %c0_18] : memref<16x2x8x8xf32, #tpu.memory_space<vmem>>, vector<1x2x8x8xf32>
    %30 = vector.shape_cast %29 : vector<1x2x8x8xf32> to vector<2x8x8xf32>
    %31 = vector.broadcast %14 : f32 to vector<2x8x8xf32>
    %32 = arith.mulf %31, %30 : vector<2x8x8xf32>
    %33 = arith.addf %28, %32 : vector<2x8x8xf32>
    %34 = vector.broadcast %10 : f32 to vector<2x8x8xf32>
    %35 = arith.addf %33, %34 : vector<2x8x8xf32>
    %36 = math.tanh %35 : vector<2x8x8xf32>
    %c4_19 = arith.constant 4 : index
    %c0_20 = arith.constant 0 : index
    %c0_21 = arith.constant 0 : index
    %c0_22 = arith.constant 0 : index
    %37 = vector.load %arg0[%c4_19, %c0_20, %c0_21, %c0_22] : memref<16x2x8x8xf32, #tpu.memory_space<vmem>>, vector<1x2x8x8xf32>
    %38 = vector.shape_cast %37 : vector<1x2x8x8xf32> to vector<2x8x8xf32>
    %39 = vector.broadcast %11 : f32 to vector<2x8x8xf32>
    %40 = arith.mulf %39, %38 : vector<2x8x8xf32>
    %c5 = arith.constant 5 : index
    %c0_23 = arith.constant 0 : index
    %c0_24 = arith.constant 0 : index
    %c0_25 = arith.constant 0 : index
    %41 = vector.load %arg0[%c5, %c0_23, %c0_24, %c0_25] : memref<16x2x8x8xf32, #tpu.memory_space<vmem>>, vector<1x2x8x8xf32>
    %42 = vector.shape_cast %41 : vector<1x2x8x8xf32> to vector<2x8x8xf32>
    %43 = vector.broadcast %12 : f32 to vector<2x8x8xf32>
    %44 = arith.mulf %43, %42 : vector<2x8x8xf32>
    %45 = arith.addf %40, %44 : vector<2x8x8xf32>
    %c6 = arith.constant 6 : index
    %c0_26 = arith.constant 0 : index
    %c0_27 = arith.constant 0 : index
    %c0_28 = arith.constant 0 : index
    %46 = vector.load %arg0[%c6, %c0_26, %c0_27, %c0_28] : memref<16x2x8x8xf32, #tpu.memory_space<vmem>>, vector<1x2x8x8xf32>
    %47 = vector.shape_cast %46 : vector<1x2x8x8xf32> to vector<2x8x8xf32>
    %48 = vector.broadcast %13 : f32 to vector<2x8x8xf32>
    %49 = arith.mulf %48, %47 : vector<2x8x8xf32>
    %50 = arith.addf %45, %49 : vector<2x8x8xf32>
    %c7 = arith.constant 7 : index
    %c0_29 = arith.constant 0 : index
    %c0_30 = arith.constant 0 : index
    %c0_31 = arith.constant 0 : index
    %51 = vector.load %arg0[%c7, %c0_29, %c0_30, %c0_31] : memref<16x2x8x8xf32, #tpu.memory_space<vmem>>, vector<1x2x8x8xf32>
    %52 = vector.shape_cast %51 : vector<1x2x8x8xf32> to vector<2x8x8xf32>
    %53 = vector.broadcast %14 : f32 to vector<2x8x8xf32>
    %54 = arith.mulf %53, %52 : vector<2x8x8xf32>
    %55 = arith.addf %50, %54 : vector<2x8x8xf32>
    %56 = vector.broadcast %10 : f32 to vector<2x8x8xf32>
    %57 = arith.addf %55, %56 : vector<2x8x8xf32>
    %58 = math.tanh %57 : vector<2x8x8xf32>
    %c8_32 = arith.constant 8 : index
    %c0_33 = arith.constant 0 : index
    %c0_34 = arith.constant 0 : index
    %c0_35 = arith.constant 0 : index
    %59 = vector.load %arg0[%c8_32, %c0_33, %c0_34, %c0_35] : memref<16x2x8x8xf32, #tpu.memory_space<vmem>>, vector<1x2x8x8xf32>
    %60 = vector.shape_cast %59 : vector<1x2x8x8xf32> to vector<2x8x8xf32>
    %61 = vector.broadcast %11 : f32 to vector<2x8x8xf32>
    %62 = arith.mulf %61, %60 : vector<2x8x8xf32>
    %c9 = arith.constant 9 : index
    %c0_36 = arith.constant 0 : index
    %c0_37 = arith.constant 0 : index
    %c0_38 = arith.constant 0 : index
    %63 = vector.load %arg0[%c9, %c0_36, %c0_37, %c0_38] : memref<16x2x8x8xf32, #tpu.memory_space<vmem>>, vector<1x2x8x8xf32>
    %64 = vector.shape_cast %63 : vector<1x2x8x8xf32> to vector<2x8x8xf32>
    %65 = vector.broadcast %12 : f32 to vector<2x8x8xf32>
    %66 = arith.mulf %65, %64 : vector<2x8x8xf32>
    %67 = arith.addf %62, %66 : vector<2x8x8xf32>
    %c10 = arith.constant 10 : index
    %c0_39 = arith.constant 0 : index
    %c0_40 = arith.constant 0 : index
    %c0_41 = arith.constant 0 : index
    %68 = vector.load %arg0[%c10, %c0_39, %c0_40, %c0_41] : memref<16x2x8x8xf32, #tpu.memory_space<vmem>>, vector<1x2x8x8xf32>
    %69 = vector.shape_cast %68 : vector<1x2x8x8xf32> to vector<2x8x8xf32>
    %70 = vector.broadcast %13 : f32 to vector<2x8x8xf32>
    %71 = arith.mulf %70, %69 : vector<2x8x8xf32>
    %72 = arith.addf %67, %71 : vector<2x8x8xf32>
    %c11 = arith.constant 11 : index
    %c0_42 = arith.constant 0 : index
    %c0_43 = arith.constant 0 : index
    %c0_44 = arith.constant 0 : index
    %73 = vector.load %arg0[%c11, %c0_42, %c0_43, %c0_44] : memref<16x2x8x8xf32, #tpu.memory_space<vmem>>, vector<1x2x8x8xf32>
    %74 = vector.shape_cast %73 : vector<1x2x8x8xf32> to vector<2x8x8xf32>
    %75 = vector.broadcast %14 : f32 to vector<2x8x8xf32>
    %76 = arith.mulf %75, %74 : vector<2x8x8xf32>
    %77 = arith.addf %72, %76 : vector<2x8x8xf32>
    %78 = vector.broadcast %10 : f32 to vector<2x8x8xf32>
    %79 = arith.addf %77, %78 : vector<2x8x8xf32>
    %80 = math.tanh %79 : vector<2x8x8xf32>
    %c12_45 = arith.constant 12 : index
    %c0_46 = arith.constant 0 : index
    %c0_47 = arith.constant 0 : index
    %c0_48 = arith.constant 0 : index
    %81 = vector.load %arg0[%c12_45, %c0_46, %c0_47, %c0_48] : memref<16x2x8x8xf32, #tpu.memory_space<vmem>>, vector<1x2x8x8xf32>
    %82 = vector.shape_cast %81 : vector<1x2x8x8xf32> to vector<2x8x8xf32>
    %83 = vector.broadcast %11 : f32 to vector<2x8x8xf32>
    %84 = arith.mulf %83, %82 : vector<2x8x8xf32>
    %c13 = arith.constant 13 : index
    %c0_49 = arith.constant 0 : index
    %c0_50 = arith.constant 0 : index
    %c0_51 = arith.constant 0 : index
    %85 = vector.load %arg0[%c13, %c0_49, %c0_50, %c0_51] : memref<16x2x8x8xf32, #tpu.memory_space<vmem>>, vector<1x2x8x8xf32>
    %86 = vector.shape_cast %85 : vector<1x2x8x8xf32> to vector<2x8x8xf32>
    %87 = vector.broadcast %12 : f32 to vector<2x8x8xf32>
    %88 = arith.mulf %87, %86 : vector<2x8x8xf32>
    %89 = arith.addf %84, %88 : vector<2x8x8xf32>
    %c14 = arith.constant 14 : index
    %c0_52 = arith.constant 0 : index
    %c0_53 = arith.constant 0 : index
    %c0_54 = arith.constant 0 : index
    %90 = vector.load %arg0[%c14, %c0_52, %c0_53, %c0_54] : memref<16x2x8x8xf32, #tpu.memory_space<vmem>>, vector<1x2x8x8xf32>
    %91 = vector.shape_cast %90 : vector<1x2x8x8xf32> to vector<2x8x8xf32>
    %92 = vector.broadcast %13 : f32 to vector<2x8x8xf32>
    %93 = arith.mulf %92, %91 : vector<2x8x8xf32>
    %94 = arith.addf %89, %93 : vector<2x8x8xf32>
    %c15 = arith.constant 15 : index
    %c0_55 = arith.constant 0 : index
    %c0_56 = arith.constant 0 : index
    %c0_57 = arith.constant 0 : index
    %95 = vector.load %arg0[%c15, %c0_55, %c0_56, %c0_57] : memref<16x2x8x8xf32, #tpu.memory_space<vmem>>, vector<1x2x8x8xf32>
    %96 = vector.shape_cast %95 : vector<1x2x8x8xf32> to vector<2x8x8xf32>
    %97 = vector.broadcast %14 : f32 to vector<2x8x8xf32>
    %98 = arith.mulf %97, %96 : vector<2x8x8xf32>
    %99 = arith.addf %94, %98 : vector<2x8x8xf32>
    %100 = vector.broadcast %10 : f32 to vector<2x8x8xf32>
    %101 = arith.addf %99, %100 : vector<2x8x8xf32>
    %102 = math.tanh %101 : vector<2x8x8xf32>
    %103 = vector.extract_strided_slice %36 {offsets = [0, 0, 0], sizes = [2, 7, 6], strides = [1, 1, 1]} : vector<2x8x8xf32> to vector<2x7x6xf32>
    %c0_58 = arith.constant 0 : index
    %104 = memref.load %arg3[%c0_58] : memref<300xf32, #tpu.memory_space<smem>>
    %105 = vector.broadcast %104 : f32 to vector<2x7x6xf32>
    %106 = arith.mulf %105, %103 : vector<2x7x6xf32>
    %107 = arith.addf %1, %106 : vector<2x7x6xf32>
    %c60 = arith.constant 60 : index
    %108 = memref.load %arg3[%c60] : memref<300xf32, #tpu.memory_space<smem>>
    %109 = vector.broadcast %108 : f32 to vector<2x7x6xf32>
    %110 = arith.mulf %109, %103 : vector<2x7x6xf32>
    %111 = arith.addf %3, %110 : vector<2x7x6xf32>
    %c120 = arith.constant 120 : index
    %112 = memref.load %arg3[%c120] : memref<300xf32, #tpu.memory_space<smem>>
    %113 = vector.broadcast %112 : f32 to vector<2x7x6xf32>
    %114 = arith.mulf %113, %103 : vector<2x7x6xf32>
    %115 = arith.addf %5, %114 : vector<2x7x6xf32>
    %c180 = arith.constant 180 : index
    %116 = memref.load %arg3[%c180] : memref<300xf32, #tpu.memory_space<smem>>
    %117 = vector.broadcast %116 : f32 to vector<2x7x6xf32>
    %118 = arith.mulf %117, %103 : vector<2x7x6xf32>
    %119 = arith.addf %7, %118 : vector<2x7x6xf32>
    %c240 = arith.constant 240 : index
    %120 = memref.load %arg3[%c240] : memref<300xf32, #tpu.memory_space<smem>>
    %121 = vector.broadcast %120 : f32 to vector<2x7x6xf32>
    %122 = arith.mulf %121, %103 : vector<2x7x6xf32>
    %123 = arith.addf %9, %122 : vector<2x7x6xf32>
    %124 = vector.extract_strided_slice %58 {offsets = [0, 0, 0], sizes = [2, 7, 6], strides = [1, 1, 1]} : vector<2x8x8xf32> to vector<2x7x6xf32>
    %c1_59 = arith.constant 1 : index
    %125 = memref.load %arg3[%c1_59] : memref<300xf32, #tpu.memory_space<smem>>
    %126 = vector.broadcast %125 : f32 to vector<2x7x6xf32>
    %127 = arith.mulf %126, %124 : vector<2x7x6xf32>
    %128 = arith.addf %107, %127 : vector<2x7x6xf32>
    %c61 = arith.constant 61 : index
    %129 = memref.load %arg3[%c61] : memref<300xf32, #tpu.memory_space<smem>>
    %130 = vector.broadcast %129 : f32 to vector<2x7x6xf32>
    %131 = arith.mulf %130, %124 : vector<2x7x6xf32>
    %132 = arith.addf %111, %131 : vector<2x7x6xf32>
    %c121 = arith.constant 121 : index
    %133 = memref.load %arg3[%c121] : memref<300xf32, #tpu.memory_space<smem>>
    %134 = vector.broadcast %133 : f32 to vector<2x7x6xf32>
    %135 = arith.mulf %134, %124 : vector<2x7x6xf32>
    %136 = arith.addf %115, %135 : vector<2x7x6xf32>
    %c181 = arith.constant 181 : index
    %137 = memref.load %arg3[%c181] : memref<300xf32, #tpu.memory_space<smem>>
    %138 = vector.broadcast %137 : f32 to vector<2x7x6xf32>
    %139 = arith.mulf %138, %124 : vector<2x7x6xf32>
    %140 = arith.addf %119, %139 : vector<2x7x6xf32>
    %c241 = arith.constant 241 : index
    %141 = memref.load %arg3[%c241] : memref<300xf32, #tpu.memory_space<smem>>
    %142 = vector.broadcast %141 : f32 to vector<2x7x6xf32>
    %143 = arith.mulf %142, %124 : vector<2x7x6xf32>
    %144 = arith.addf %123, %143 : vector<2x7x6xf32>
    %145 = vector.extract_strided_slice %36 {offsets = [0, 0, 1], sizes = [2, 7, 6], strides = [1, 1, 1]} : vector<2x8x8xf32> to vector<2x7x6xf32>
    %c2_60 = arith.constant 2 : index
    %146 = memref.load %arg3[%c2_60] : memref<300xf32, #tpu.memory_space<smem>>
    %147 = vector.broadcast %146 : f32 to vector<2x7x6xf32>
    %148 = arith.mulf %147, %145 : vector<2x7x6xf32>
    %149 = arith.addf %128, %148 : vector<2x7x6xf32>
    %c62 = arith.constant 62 : index
    %150 = memref.load %arg3[%c62] : memref<300xf32, #tpu.memory_space<smem>>
    %151 = vector.broadcast %150 : f32 to vector<2x7x6xf32>
    %152 = arith.mulf %151, %145 : vector<2x7x6xf32>
    %153 = arith.addf %132, %152 : vector<2x7x6xf32>
    %c122 = arith.constant 122 : index
    %154 = memref.load %arg3[%c122] : memref<300xf32, #tpu.memory_space<smem>>
    %155 = vector.broadcast %154 : f32 to vector<2x7x6xf32>
    %156 = arith.mulf %155, %145 : vector<2x7x6xf32>
    %157 = arith.addf %136, %156 : vector<2x7x6xf32>
    %c182 = arith.constant 182 : index
    %158 = memref.load %arg3[%c182] : memref<300xf32, #tpu.memory_space<smem>>
    %159 = vector.broadcast %158 : f32 to vector<2x7x6xf32>
    %160 = arith.mulf %159, %145 : vector<2x7x6xf32>
    %161 = arith.addf %140, %160 : vector<2x7x6xf32>
    %c242 = arith.constant 242 : index
    %162 = memref.load %arg3[%c242] : memref<300xf32, #tpu.memory_space<smem>>
    %163 = vector.broadcast %162 : f32 to vector<2x7x6xf32>
    %164 = arith.mulf %163, %145 : vector<2x7x6xf32>
    %165 = arith.addf %144, %164 : vector<2x7x6xf32>
    %166 = vector.extract_strided_slice %58 {offsets = [0, 0, 1], sizes = [2, 7, 6], strides = [1, 1, 1]} : vector<2x8x8xf32> to vector<2x7x6xf32>
    %c3_61 = arith.constant 3 : index
    %167 = memref.load %arg3[%c3_61] : memref<300xf32, #tpu.memory_space<smem>>
    %168 = vector.broadcast %167 : f32 to vector<2x7x6xf32>
    %169 = arith.mulf %168, %166 : vector<2x7x6xf32>
    %170 = arith.addf %149, %169 : vector<2x7x6xf32>
    %c63 = arith.constant 63 : index
    %171 = memref.load %arg3[%c63] : memref<300xf32, #tpu.memory_space<smem>>
    %172 = vector.broadcast %171 : f32 to vector<2x7x6xf32>
    %173 = arith.mulf %172, %166 : vector<2x7x6xf32>
    %174 = arith.addf %153, %173 : vector<2x7x6xf32>
    %c123 = arith.constant 123 : index
    %175 = memref.load %arg3[%c123] : memref<300xf32, #tpu.memory_space<smem>>
    %176 = vector.broadcast %175 : f32 to vector<2x7x6xf32>
    %177 = arith.mulf %176, %166 : vector<2x7x6xf32>
    %178 = arith.addf %157, %177 : vector<2x7x6xf32>
    %c183 = arith.constant 183 : index
    %179 = memref.load %arg3[%c183] : memref<300xf32, #tpu.memory_space<smem>>
    %180 = vector.broadcast %179 : f32 to vector<2x7x6xf32>
    %181 = arith.mulf %180, %166 : vector<2x7x6xf32>
    %182 = arith.addf %161, %181 : vector<2x7x6xf32>
    %c243 = arith.constant 243 : index
    %183 = memref.load %arg3[%c243] : memref<300xf32, #tpu.memory_space<smem>>
    %184 = vector.broadcast %183 : f32 to vector<2x7x6xf32>
    %185 = arith.mulf %184, %166 : vector<2x7x6xf32>
    %186 = arith.addf %165, %185 : vector<2x7x6xf32>
    %187 = vector.extract_strided_slice %36 {offsets = [0, 0, 2], sizes = [2, 7, 6], strides = [1, 1, 1]} : vector<2x8x8xf32> to vector<2x7x6xf32>
    %c4_62 = arith.constant 4 : index
    %188 = memref.load %arg3[%c4_62] : memref<300xf32, #tpu.memory_space<smem>>
    %189 = vector.broadcast %188 : f32 to vector<2x7x6xf32>
    %190 = arith.mulf %189, %187 : vector<2x7x6xf32>
    %191 = arith.addf %170, %190 : vector<2x7x6xf32>
    %c64 = arith.constant 64 : index
    %192 = memref.load %arg3[%c64] : memref<300xf32, #tpu.memory_space<smem>>
    %193 = vector.broadcast %192 : f32 to vector<2x7x6xf32>
    %194 = arith.mulf %193, %187 : vector<2x7x6xf32>
    %195 = arith.addf %174, %194 : vector<2x7x6xf32>
    %c124 = arith.constant 124 : index
    %196 = memref.load %arg3[%c124] : memref<300xf32, #tpu.memory_space<smem>>
    %197 = vector.broadcast %196 : f32 to vector<2x7x6xf32>
    %198 = arith.mulf %197, %187 : vector<2x7x6xf32>
    %199 = arith.addf %178, %198 : vector<2x7x6xf32>
    %c184 = arith.constant 184 : index
    %200 = memref.load %arg3[%c184] : memref<300xf32, #tpu.memory_space<smem>>
    %201 = vector.broadcast %200 : f32 to vector<2x7x6xf32>
    %202 = arith.mulf %201, %187 : vector<2x7x6xf32>
    %203 = arith.addf %182, %202 : vector<2x7x6xf32>
    %c244 = arith.constant 244 : index
    %204 = memref.load %arg3[%c244] : memref<300xf32, #tpu.memory_space<smem>>
    %205 = vector.broadcast %204 : f32 to vector<2x7x6xf32>
    %206 = arith.mulf %205, %187 : vector<2x7x6xf32>
    %207 = arith.addf %186, %206 : vector<2x7x6xf32>
    %208 = vector.extract_strided_slice %80 {offsets = [0, 0, 0], sizes = [2, 7, 6], strides = [1, 1, 1]} : vector<2x8x8xf32> to vector<2x7x6xf32>
    %c5_63 = arith.constant 5 : index
    %209 = memref.load %arg3[%c5_63] : memref<300xf32, #tpu.memory_space<smem>>
    %210 = vector.broadcast %209 : f32 to vector<2x7x6xf32>
    %211 = arith.mulf %210, %208 : vector<2x7x6xf32>
    %212 = arith.addf %191, %211 : vector<2x7x6xf32>
    %c65 = arith.constant 65 : index
    %213 = memref.load %arg3[%c65] : memref<300xf32, #tpu.memory_space<smem>>
    %214 = vector.broadcast %213 : f32 to vector<2x7x6xf32>
    %215 = arith.mulf %214, %208 : vector<2x7x6xf32>
    %216 = arith.addf %195, %215 : vector<2x7x6xf32>
    %c125 = arith.constant 125 : index
    %217 = memref.load %arg3[%c125] : memref<300xf32, #tpu.memory_space<smem>>
    %218 = vector.broadcast %217 : f32 to vector<2x7x6xf32>
    %219 = arith.mulf %218, %208 : vector<2x7x6xf32>
    %220 = arith.addf %199, %219 : vector<2x7x6xf32>
    %c185 = arith.constant 185 : index
    %221 = memref.load %arg3[%c185] : memref<300xf32, #tpu.memory_space<smem>>
    %222 = vector.broadcast %221 : f32 to vector<2x7x6xf32>
    %223 = arith.mulf %222, %208 : vector<2x7x6xf32>
    %224 = arith.addf %203, %223 : vector<2x7x6xf32>
    %c245 = arith.constant 245 : index
    %225 = memref.load %arg3[%c245] : memref<300xf32, #tpu.memory_space<smem>>
    %226 = vector.broadcast %225 : f32 to vector<2x7x6xf32>
    %227 = arith.mulf %226, %208 : vector<2x7x6xf32>
    %228 = arith.addf %207, %227 : vector<2x7x6xf32>
    %229 = vector.extract_strided_slice %102 {offsets = [0, 0, 0], sizes = [2, 7, 6], strides = [1, 1, 1]} : vector<2x8x8xf32> to vector<2x7x6xf32>
    %c6_64 = arith.constant 6 : index
    %230 = memref.load %arg3[%c6_64] : memref<300xf32, #tpu.memory_space<smem>>
    %231 = vector.broadcast %230 : f32 to vector<2x7x6xf32>
    %232 = arith.mulf %231, %229 : vector<2x7x6xf32>
    %233 = arith.addf %212, %232 : vector<2x7x6xf32>
    %c66 = arith.constant 66 : index
    %234 = memref.load %arg3[%c66] : memref<300xf32, #tpu.memory_space<smem>>
    %235 = vector.broadcast %234 : f32 to vector<2x7x6xf32>
    %236 = arith.mulf %235, %229 : vector<2x7x6xf32>
    %237 = arith.addf %216, %236 : vector<2x7x6xf32>
    %c126 = arith.constant 126 : index
    %238 = memref.load %arg3[%c126] : memref<300xf32, #tpu.memory_space<smem>>
    %239 = vector.broadcast %238 : f32 to vector<2x7x6xf32>
    %240 = arith.mulf %239, %229 : vector<2x7x6xf32>
    %241 = arith.addf %220, %240 : vector<2x7x6xf32>
    %c186 = arith.constant 186 : index
    %242 = memref.load %arg3[%c186] : memref<300xf32, #tpu.memory_space<smem>>
    %243 = vector.broadcast %242 : f32 to vector<2x7x6xf32>
    %244 = arith.mulf %243, %229 : vector<2x7x6xf32>
    %245 = arith.addf %224, %244 : vector<2x7x6xf32>
    %c246 = arith.constant 246 : index
    %246 = memref.load %arg3[%c246] : memref<300xf32, #tpu.memory_space<smem>>
    %247 = vector.broadcast %246 : f32 to vector<2x7x6xf32>
    %248 = arith.mulf %247, %229 : vector<2x7x6xf32>
    %249 = arith.addf %228, %248 : vector<2x7x6xf32>
    %250 = vector.extract_strided_slice %80 {offsets = [0, 0, 1], sizes = [2, 7, 6], strides = [1, 1, 1]} : vector<2x8x8xf32> to vector<2x7x6xf32>
    %c7_65 = arith.constant 7 : index
    %251 = memref.load %arg3[%c7_65] : memref<300xf32, #tpu.memory_space<smem>>
    %252 = vector.broadcast %251 : f32 to vector<2x7x6xf32>
    %253 = arith.mulf %252, %250 : vector<2x7x6xf32>
    %254 = arith.addf %233, %253 : vector<2x7x6xf32>
    %c67 = arith.constant 67 : index
    %255 = memref.load %arg3[%c67] : memref<300xf32, #tpu.memory_space<smem>>
    %256 = vector.broadcast %255 : f32 to vector<2x7x6xf32>
    %257 = arith.mulf %256, %250 : vector<2x7x6xf32>
    %258 = arith.addf %237, %257 : vector<2x7x6xf32>
    %c127 = arith.constant 127 : index
    %259 = memref.load %arg3[%c127] : memref<300xf32, #tpu.memory_space<smem>>
    %260 = vector.broadcast %259 : f32 to vector<2x7x6xf32>
    %261 = arith.mulf %260, %250 : vector<2x7x6xf32>
    %262 = arith.addf %241, %261 : vector<2x7x6xf32>
    %c187 = arith.constant 187 : index
    %263 = memref.load %arg3[%c187] : memref<300xf32, #tpu.memory_space<smem>>
    %264 = vector.broadcast %263 : f32 to vector<2x7x6xf32>
    %265 = arith.mulf %264, %250 : vector<2x7x6xf32>
    %266 = arith.addf %245, %265 : vector<2x7x6xf32>
    %c247 = arith.constant 247 : index
    %267 = memref.load %arg3[%c247] : memref<300xf32, #tpu.memory_space<smem>>
    %268 = vector.broadcast %267 : f32 to vector<2x7x6xf32>
    %269 = arith.mulf %268, %250 : vector<2x7x6xf32>
    %270 = arith.addf %249, %269 : vector<2x7x6xf32>
    %271 = vector.extract_strided_slice %102 {offsets = [0, 0, 1], sizes = [2, 7, 6], strides = [1, 1, 1]} : vector<2x8x8xf32> to vector<2x7x6xf32>
    %c8_66 = arith.constant 8 : index
    %272 = memref.load %arg3[%c8_66] : memref<300xf32, #tpu.memory_space<smem>>
    %273 = vector.broadcast %272 : f32 to vector<2x7x6xf32>
    %274 = arith.mulf %273, %271 : vector<2x7x6xf32>
    %275 = arith.addf %254, %274 : vector<2x7x6xf32>
    %c68 = arith.constant 68 : index
    %276 = memref.load %arg3[%c68] : memref<300xf32, #tpu.memory_space<smem>>
    %277 = vector.broadcast %276 : f32 to vector<2x7x6xf32>
    %278 = arith.mulf %277, %271 : vector<2x7x6xf32>
    %279 = arith.addf %258, %278 : vector<2x7x6xf32>
    %c128 = arith.constant 128 : index
    %280 = memref.load %arg3[%c128] : memref<300xf32, #tpu.memory_space<smem>>
    %281 = vector.broadcast %280 : f32 to vector<2x7x6xf32>
    %282 = arith.mulf %281, %271 : vector<2x7x6xf32>
    %283 = arith.addf %262, %282 : vector<2x7x6xf32>
    %c188 = arith.constant 188 : index
    %284 = memref.load %arg3[%c188] : memref<300xf32, #tpu.memory_space<smem>>
    %285 = vector.broadcast %284 : f32 to vector<2x7x6xf32>
    %286 = arith.mulf %285, %271 : vector<2x7x6xf32>
    %287 = arith.addf %266, %286 : vector<2x7x6xf32>
    %c248 = arith.constant 248 : index
    %288 = memref.load %arg3[%c248] : memref<300xf32, #tpu.memory_space<smem>>
    %289 = vector.broadcast %288 : f32 to vector<2x7x6xf32>
    %290 = arith.mulf %289, %271 : vector<2x7x6xf32>
    %291 = arith.addf %270, %290 : vector<2x7x6xf32>
    %292 = vector.extract_strided_slice %80 {offsets = [0, 0, 2], sizes = [2, 7, 6], strides = [1, 1, 1]} : vector<2x8x8xf32> to vector<2x7x6xf32>
    %c9_67 = arith.constant 9 : index
    %293 = memref.load %arg3[%c9_67] : memref<300xf32, #tpu.memory_space<smem>>
    %294 = vector.broadcast %293 : f32 to vector<2x7x6xf32>
    %295 = arith.mulf %294, %292 : vector<2x7x6xf32>
    %296 = arith.addf %275, %295 : vector<2x7x6xf32>
    %c69 = arith.constant 69 : index
    %297 = memref.load %arg3[%c69] : memref<300xf32, #tpu.memory_space<smem>>
    %298 = vector.broadcast %297 : f32 to vector<2x7x6xf32>
    %299 = arith.mulf %298, %292 : vector<2x7x6xf32>
    %300 = arith.addf %279, %299 : vector<2x7x6xf32>
    %c129 = arith.constant 129 : index
    %301 = memref.load %arg3[%c129] : memref<300xf32, #tpu.memory_space<smem>>
    %302 = vector.broadcast %301 : f32 to vector<2x7x6xf32>
    %303 = arith.mulf %302, %292 : vector<2x7x6xf32>
    %304 = arith.addf %283, %303 : vector<2x7x6xf32>
    %c189 = arith.constant 189 : index
    %305 = memref.load %arg3[%c189] : memref<300xf32, #tpu.memory_space<smem>>
    %306 = vector.broadcast %305 : f32 to vector<2x7x6xf32>
    %307 = arith.mulf %306, %292 : vector<2x7x6xf32>
    %308 = arith.addf %287, %307 : vector<2x7x6xf32>
    %c249 = arith.constant 249 : index
    %309 = memref.load %arg3[%c249] : memref<300xf32, #tpu.memory_space<smem>>
    %310 = vector.broadcast %309 : f32 to vector<2x7x6xf32>
    %311 = arith.mulf %310, %292 : vector<2x7x6xf32>
    %312 = arith.addf %291, %311 : vector<2x7x6xf32>
    %313 = vector.extract_strided_slice %36 {offsets = [0, 1, 0], sizes = [2, 7, 6], strides = [1, 1, 1]} : vector<2x8x8xf32> to vector<2x7x6xf32>
    %c10_68 = arith.constant 10 : index
    %314 = memref.load %arg3[%c10_68] : memref<300xf32, #tpu.memory_space<smem>>
    %315 = vector.broadcast %314 : f32 to vector<2x7x6xf32>
    %316 = arith.mulf %315, %313 : vector<2x7x6xf32>
    %317 = arith.addf %296, %316 : vector<2x7x6xf32>
    %c70 = arith.constant 70 : index
    %318 = memref.load %arg3[%c70] : memref<300xf32, #tpu.memory_space<smem>>
    %319 = vector.broadcast %318 : f32 to vector<2x7x6xf32>
    %320 = arith.mulf %319, %313 : vector<2x7x6xf32>
    %321 = arith.addf %300, %320 : vector<2x7x6xf32>
    %c130 = arith.constant 130 : index
    %322 = memref.load %arg3[%c130] : memref<300xf32, #tpu.memory_space<smem>>
    %323 = vector.broadcast %322 : f32 to vector<2x7x6xf32>
    %324 = arith.mulf %323, %313 : vector<2x7x6xf32>
    %325 = arith.addf %304, %324 : vector<2x7x6xf32>
    %c190 = arith.constant 190 : index
    %326 = memref.load %arg3[%c190] : memref<300xf32, #tpu.memory_space<smem>>
    %327 = vector.broadcast %326 : f32 to vector<2x7x6xf32>
    %328 = arith.mulf %327, %313 : vector<2x7x6xf32>
    %329 = arith.addf %308, %328 : vector<2x7x6xf32>
    %c250 = arith.constant 250 : index
    %330 = memref.load %arg3[%c250] : memref<300xf32, #tpu.memory_space<smem>>
    %331 = vector.broadcast %330 : f32 to vector<2x7x6xf32>
    %332 = arith.mulf %331, %313 : vector<2x7x6xf32>
    %333 = arith.addf %312, %332 : vector<2x7x6xf32>
    %334 = vector.extract_strided_slice %58 {offsets = [0, 1, 0], sizes = [2, 7, 6], strides = [1, 1, 1]} : vector<2x8x8xf32> to vector<2x7x6xf32>
    %c11_69 = arith.constant 11 : index
    %335 = memref.load %arg3[%c11_69] : memref<300xf32, #tpu.memory_space<smem>>
    %336 = vector.broadcast %335 : f32 to vector<2x7x6xf32>
    %337 = arith.mulf %336, %334 : vector<2x7x6xf32>
    %338 = arith.addf %317, %337 : vector<2x7x6xf32>
    %c71 = arith.constant 71 : index
    %339 = memref.load %arg3[%c71] : memref<300xf32, #tpu.memory_space<smem>>
    %340 = vector.broadcast %339 : f32 to vector<2x7x6xf32>
    %341 = arith.mulf %340, %334 : vector<2x7x6xf32>
    %342 = arith.addf %321, %341 : vector<2x7x6xf32>
    %c131 = arith.constant 131 : index
    %343 = memref.load %arg3[%c131] : memref<300xf32, #tpu.memory_space<smem>>
    %344 = vector.broadcast %343 : f32 to vector<2x7x6xf32>
    %345 = arith.mulf %344, %334 : vector<2x7x6xf32>
    %346 = arith.addf %325, %345 : vector<2x7x6xf32>
    %c191 = arith.constant 191 : index
    %347 = memref.load %arg3[%c191] : memref<300xf32, #tpu.memory_space<smem>>
    %348 = vector.broadcast %347 : f32 to vector<2x7x6xf32>
    %349 = arith.mulf %348, %334 : vector<2x7x6xf32>
    %350 = arith.addf %329, %349 : vector<2x7x6xf32>
    %c251 = arith.constant 251 : index
    %351 = memref.load %arg3[%c251] : memref<300xf32, #tpu.memory_space<smem>>
    %352 = vector.broadcast %351 : f32 to vector<2x7x6xf32>
    %353 = arith.mulf %352, %334 : vector<2x7x6xf32>
    %354 = arith.addf %333, %353 : vector<2x7x6xf32>
    %355 = vector.extract_strided_slice %36 {offsets = [0, 1, 1], sizes = [2, 7, 6], strides = [1, 1, 1]} : vector<2x8x8xf32> to vector<2x7x6xf32>
    %c12_70 = arith.constant 12 : index
    %356 = memref.load %arg3[%c12_70] : memref<300xf32, #tpu.memory_space<smem>>
    %357 = vector.broadcast %356 : f32 to vector<2x7x6xf32>
    %358 = arith.mulf %357, %355 : vector<2x7x6xf32>
    %359 = arith.addf %338, %358 : vector<2x7x6xf32>
    %c72 = arith.constant 72 : index
    %360 = memref.load %arg3[%c72] : memref<300xf32, #tpu.memory_space<smem>>
    %361 = vector.broadcast %360 : f32 to vector<2x7x6xf32>
    %362 = arith.mulf %361, %355 : vector<2x7x6xf32>
    %363 = arith.addf %342, %362 : vector<2x7x6xf32>
    %c132 = arith.constant 132 : index
    %364 = memref.load %arg3[%c132] : memref<300xf32, #tpu.memory_space<smem>>
    %365 = vector.broadcast %364 : f32 to vector<2x7x6xf32>
    %366 = arith.mulf %365, %355 : vector<2x7x6xf32>
    %367 = arith.addf %346, %366 : vector<2x7x6xf32>
    %c192 = arith.constant 192 : index
    %368 = memref.load %arg3[%c192] : memref<300xf32, #tpu.memory_space<smem>>
    %369 = vector.broadcast %368 : f32 to vector<2x7x6xf32>
    %370 = arith.mulf %369, %355 : vector<2x7x6xf32>
    %371 = arith.addf %350, %370 : vector<2x7x6xf32>
    %c252 = arith.constant 252 : index
    %372 = memref.load %arg3[%c252] : memref<300xf32, #tpu.memory_space<smem>>
    %373 = vector.broadcast %372 : f32 to vector<2x7x6xf32>
    %374 = arith.mulf %373, %355 : vector<2x7x6xf32>
    %375 = arith.addf %354, %374 : vector<2x7x6xf32>
    %376 = vector.extract_strided_slice %58 {offsets = [0, 1, 1], sizes = [2, 7, 6], strides = [1, 1, 1]} : vector<2x8x8xf32> to vector<2x7x6xf32>
    %c13_71 = arith.constant 13 : index
    %377 = memref.load %arg3[%c13_71] : memref<300xf32, #tpu.memory_space<smem>>
    %378 = vector.broadcast %377 : f32 to vector<2x7x6xf32>
    %379 = arith.mulf %378, %376 : vector<2x7x6xf32>
    %380 = arith.addf %359, %379 : vector<2x7x6xf32>
    %c73 = arith.constant 73 : index
    %381 = memref.load %arg3[%c73] : memref<300xf32, #tpu.memory_space<smem>>
    %382 = vector.broadcast %381 : f32 to vector<2x7x6xf32>
    %383 = arith.mulf %382, %376 : vector<2x7x6xf32>
    %384 = arith.addf %363, %383 : vector<2x7x6xf32>
    %c133 = arith.constant 133 : index
    %385 = memref.load %arg3[%c133] : memref<300xf32, #tpu.memory_space<smem>>
    %386 = vector.broadcast %385 : f32 to vector<2x7x6xf32>
    %387 = arith.mulf %386, %376 : vector<2x7x6xf32>
    %388 = arith.addf %367, %387 : vector<2x7x6xf32>
    %c193 = arith.constant 193 : index
    %389 = memref.load %arg3[%c193] : memref<300xf32, #tpu.memory_space<smem>>
    %390 = vector.broadcast %389 : f32 to vector<2x7x6xf32>
    %391 = arith.mulf %390, %376 : vector<2x7x6xf32>
    %392 = arith.addf %371, %391 : vector<2x7x6xf32>
    %c253 = arith.constant 253 : index
    %393 = memref.load %arg3[%c253] : memref<300xf32, #tpu.memory_space<smem>>
    %394 = vector.broadcast %393 : f32 to vector<2x7x6xf32>
    %395 = arith.mulf %394, %376 : vector<2x7x6xf32>
    %396 = arith.addf %375, %395 : vector<2x7x6xf32>
    %397 = vector.extract_strided_slice %36 {offsets = [0, 1, 2], sizes = [2, 7, 6], strides = [1, 1, 1]} : vector<2x8x8xf32> to vector<2x7x6xf32>
    %c14_72 = arith.constant 14 : index
    %398 = memref.load %arg3[%c14_72] : memref<300xf32, #tpu.memory_space<smem>>
    %399 = vector.broadcast %398 : f32 to vector<2x7x6xf32>
    %400 = arith.mulf %399, %397 : vector<2x7x6xf32>
    %401 = arith.addf %380, %400 : vector<2x7x6xf32>
    %c74 = arith.constant 74 : index
    %402 = memref.load %arg3[%c74] : memref<300xf32, #tpu.memory_space<smem>>
    %403 = vector.broadcast %402 : f32 to vector<2x7x6xf32>
    %404 = arith.mulf %403, %397 : vector<2x7x6xf32>
    %405 = arith.addf %384, %404 : vector<2x7x6xf32>
    %c134 = arith.constant 134 : index
    %406 = memref.load %arg3[%c134] : memref<300xf32, #tpu.memory_space<smem>>
    %407 = vector.broadcast %406 : f32 to vector<2x7x6xf32>
    %408 = arith.mulf %407, %397 : vector<2x7x6xf32>
    %409 = arith.addf %388, %408 : vector<2x7x6xf32>
    %c194 = arith.constant 194 : index
    %410 = memref.load %arg3[%c194] : memref<300xf32, #tpu.memory_space<smem>>
    %411 = vector.broadcast %410 : f32 to vector<2x7x6xf32>
    %412 = arith.mulf %411, %397 : vector<2x7x6xf32>
    %413 = arith.addf %392, %412 : vector<2x7x6xf32>
    %c254 = arith.constant 254 : index
    %414 = memref.load %arg3[%c254] : memref<300xf32, #tpu.memory_space<smem>>
    %415 = vector.broadcast %414 : f32 to vector<2x7x6xf32>
    %416 = arith.mulf %415, %397 : vector<2x7x6xf32>
    %417 = arith.addf %396, %416 : vector<2x7x6xf32>
    %c1_73 = arith.constant 1 : index
    %418 = memref.load %arg2[%c1_73] : memref<4xf32, #tpu.memory_space<smem>>
    %c1_74 = arith.constant 1 : index
    %419 = memref.load %arg1[%c1_74] : memref<16xf32, #tpu.memory_space<smem>>
    %c5_75 = arith.constant 5 : index
    %420 = memref.load %arg1[%c5_75] : memref<16xf32, #tpu.memory_space<smem>>
    %c9_76 = arith.constant 9 : index
    %421 = memref.load %arg1[%c9_76] : memref<16xf32, #tpu.memory_space<smem>>
    %c13_77 = arith.constant 13 : index
    %422 = memref.load %arg1[%c13_77] : memref<16xf32, #tpu.memory_space<smem>>
    %c0_78 = arith.constant 0 : index
    %c0_79 = arith.constant 0 : index
    %c0_80 = arith.constant 0 : index
    %c0_81 = arith.constant 0 : index
    %423 = vector.load %arg0[%c0_78, %c0_79, %c0_80, %c0_81] : memref<16x2x8x8xf32, #tpu.memory_space<vmem>>, vector<1x2x8x8xf32>
    %424 = vector.shape_cast %423 : vector<1x2x8x8xf32> to vector<2x8x8xf32>
    %425 = vector.broadcast %419 : f32 to vector<2x8x8xf32>
    %426 = arith.mulf %425, %424 : vector<2x8x8xf32>
    %c1_82 = arith.constant 1 : index
    %c0_83 = arith.constant 0 : index
    %c0_84 = arith.constant 0 : index
    %c0_85 = arith.constant 0 : index
    %427 = vector.load %arg0[%c1_82, %c0_83, %c0_84, %c0_85] : memref<16x2x8x8xf32, #tpu.memory_space<vmem>>, vector<1x2x8x8xf32>
    %428 = vector.shape_cast %427 : vector<1x2x8x8xf32> to vector<2x8x8xf32>
    %429 = vector.broadcast %420 : f32 to vector<2x8x8xf32>
    %430 = arith.mulf %429, %428 : vector<2x8x8xf32>
    %431 = arith.addf %426, %430 : vector<2x8x8xf32>
    %c2_86 = arith.constant 2 : index
    %c0_87 = arith.constant 0 : index
    %c0_88 = arith.constant 0 : index
    %c0_89 = arith.constant 0 : index
    %432 = vector.load %arg0[%c2_86, %c0_87, %c0_88, %c0_89] : memref<16x2x8x8xf32, #tpu.memory_space<vmem>>, vector<1x2x8x8xf32>
    %433 = vector.shape_cast %432 : vector<1x2x8x8xf32> to vector<2x8x8xf32>
    %434 = vector.broadcast %421 : f32 to vector<2x8x8xf32>
    %435 = arith.mulf %434, %433 : vector<2x8x8xf32>
    %436 = arith.addf %431, %435 : vector<2x8x8xf32>
    %c3_90 = arith.constant 3 : index
    %c0_91 = arith.constant 0 : index
    %c0_92 = arith.constant 0 : index
    %c0_93 = arith.constant 0 : index
    %437 = vector.load %arg0[%c3_90, %c0_91, %c0_92, %c0_93] : memref<16x2x8x8xf32, #tpu.memory_space<vmem>>, vector<1x2x8x8xf32>
    %438 = vector.shape_cast %437 : vector<1x2x8x8xf32> to vector<2x8x8xf32>
    %439 = vector.broadcast %422 : f32 to vector<2x8x8xf32>
    %440 = arith.mulf %439, %438 : vector<2x8x8xf32>
    %441 = arith.addf %436, %440 : vector<2x8x8xf32>
    %442 = vector.broadcast %418 : f32 to vector<2x8x8xf32>
    %443 = arith.addf %441, %442 : vector<2x8x8xf32>
    %444 = math.tanh %443 : vector<2x8x8xf32>
    %c4_94 = arith.constant 4 : index
    %c0_95 = arith.constant 0 : index
    %c0_96 = arith.constant 0 : index
    %c0_97 = arith.constant 0 : index
    %445 = vector.load %arg0[%c4_94, %c0_95, %c0_96, %c0_97] : memref<16x2x8x8xf32, #tpu.memory_space<vmem>>, vector<1x2x8x8xf32>
    %446 = vector.shape_cast %445 : vector<1x2x8x8xf32> to vector<2x8x8xf32>
    %447 = vector.broadcast %419 : f32 to vector<2x8x8xf32>
    %448 = arith.mulf %447, %446 : vector<2x8x8xf32>
    %c5_98 = arith.constant 5 : index
    %c0_99 = arith.constant 0 : index
    %c0_100 = arith.constant 0 : index
    %c0_101 = arith.constant 0 : index
    %449 = vector.load %arg0[%c5_98, %c0_99, %c0_100, %c0_101] : memref<16x2x8x8xf32, #tpu.memory_space<vmem>>, vector<1x2x8x8xf32>
    %450 = vector.shape_cast %449 : vector<1x2x8x8xf32> to vector<2x8x8xf32>
    %451 = vector.broadcast %420 : f32 to vector<2x8x8xf32>
    %452 = arith.mulf %451, %450 : vector<2x8x8xf32>
    %453 = arith.addf %448, %452 : vector<2x8x8xf32>
    %c6_102 = arith.constant 6 : index
    %c0_103 = arith.constant 0 : index
    %c0_104 = arith.constant 0 : index
    %c0_105 = arith.constant 0 : index
    %454 = vector.load %arg0[%c6_102, %c0_103, %c0_104, %c0_105] : memref<16x2x8x8xf32, #tpu.memory_space<vmem>>, vector<1x2x8x8xf32>
    %455 = vector.shape_cast %454 : vector<1x2x8x8xf32> to vector<2x8x8xf32>
    %456 = vector.broadcast %421 : f32 to vector<2x8x8xf32>
    %457 = arith.mulf %456, %455 : vector<2x8x8xf32>
    %458 = arith.addf %453, %457 : vector<2x8x8xf32>
    %c7_106 = arith.constant 7 : index
    %c0_107 = arith.constant 0 : index
    %c0_108 = arith.constant 0 : index
    %c0_109 = arith.constant 0 : index
    %459 = vector.load %arg0[%c7_106, %c0_107, %c0_108, %c0_109] : memref<16x2x8x8xf32, #tpu.memory_space<vmem>>, vector<1x2x8x8xf32>
    %460 = vector.shape_cast %459 : vector<1x2x8x8xf32> to vector<2x8x8xf32>
    %461 = vector.broadcast %422 : f32 to vector<2x8x8xf32>
    %462 = arith.mulf %461, %460 : vector<2x8x8xf32>
    %463 = arith.addf %458, %462 : vector<2x8x8xf32>
    %464 = vector.broadcast %418 : f32 to vector<2x8x8xf32>
    %465 = arith.addf %463, %464 : vector<2x8x8xf32>
    %466 = math.tanh %465 : vector<2x8x8xf32>
    %c8_110 = arith.constant 8 : index
    %c0_111 = arith.constant 0 : index
    %c0_112 = arith.constant 0 : index
    %c0_113 = arith.constant 0 : index
    %467 = vector.load %arg0[%c8_110, %c0_111, %c0_112, %c0_113] : memref<16x2x8x8xf32, #tpu.memory_space<vmem>>, vector<1x2x8x8xf32>
    %468 = vector.shape_cast %467 : vector<1x2x8x8xf32> to vector<2x8x8xf32>
    %469 = vector.broadcast %419 : f32 to vector<2x8x8xf32>
    %470 = arith.mulf %469, %468 : vector<2x8x8xf32>
    %c9_114 = arith.constant 9 : index
    %c0_115 = arith.constant 0 : index
    %c0_116 = arith.constant 0 : index
    %c0_117 = arith.constant 0 : index
    %471 = vector.load %arg0[%c9_114, %c0_115, %c0_116, %c0_117] : memref<16x2x8x8xf32, #tpu.memory_space<vmem>>, vector<1x2x8x8xf32>
    %472 = vector.shape_cast %471 : vector<1x2x8x8xf32> to vector<2x8x8xf32>
    %473 = vector.broadcast %420 : f32 to vector<2x8x8xf32>
    %474 = arith.mulf %473, %472 : vector<2x8x8xf32>
    %475 = arith.addf %470, %474 : vector<2x8x8xf32>
    %c10_118 = arith.constant 10 : index
    %c0_119 = arith.constant 0 : index
    %c0_120 = arith.constant 0 : index
    %c0_121 = arith.constant 0 : index
    %476 = vector.load %arg0[%c10_118, %c0_119, %c0_120, %c0_121] : memref<16x2x8x8xf32, #tpu.memory_space<vmem>>, vector<1x2x8x8xf32>
    %477 = vector.shape_cast %476 : vector<1x2x8x8xf32> to vector<2x8x8xf32>
    %478 = vector.broadcast %421 : f32 to vector<2x8x8xf32>
    %479 = arith.mulf %478, %477 : vector<2x8x8xf32>
    %480 = arith.addf %475, %479 : vector<2x8x8xf32>
    %c11_122 = arith.constant 11 : index
    %c0_123 = arith.constant 0 : index
    %c0_124 = arith.constant 0 : index
    %c0_125 = arith.constant 0 : index
    %481 = vector.load %arg0[%c11_122, %c0_123, %c0_124, %c0_125] : memref<16x2x8x8xf32, #tpu.memory_space<vmem>>, vector<1x2x8x8xf32>
    %482 = vector.shape_cast %481 : vector<1x2x8x8xf32> to vector<2x8x8xf32>
    %483 = vector.broadcast %422 : f32 to vector<2x8x8xf32>
    %484 = arith.mulf %483, %482 : vector<2x8x8xf32>
    %485 = arith.addf %480, %484 : vector<2x8x8xf32>
    %486 = vector.broadcast %418 : f32 to vector<2x8x8xf32>
    %487 = arith.addf %485, %486 : vector<2x8x8xf32>
    %488 = math.tanh %487 : vector<2x8x8xf32>
    %c12_126 = arith.constant 12 : index
    %c0_127 = arith.constant 0 : index
    %c0_128 = arith.constant 0 : index
    %c0_129 = arith.constant 0 : index
    %489 = vector.load %arg0[%c12_126, %c0_127, %c0_128, %c0_129] : memref<16x2x8x8xf32, #tpu.memory_space<vmem>>, vector<1x2x8x8xf32>
    %490 = vector.shape_cast %489 : vector<1x2x8x8xf32> to vector<2x8x8xf32>
    %491 = vector.broadcast %419 : f32 to vector<2x8x8xf32>
    %492 = arith.mulf %491, %490 : vector<2x8x8xf32>
    %c13_130 = arith.constant 13 : index
    %c0_131 = arith.constant 0 : index
    %c0_132 = arith.constant 0 : index
    %c0_133 = arith.constant 0 : index
    %493 = vector.load %arg0[%c13_130, %c0_131, %c0_132, %c0_133] : memref<16x2x8x8xf32, #tpu.memory_space<vmem>>, vector<1x2x8x8xf32>
    %494 = vector.shape_cast %493 : vector<1x2x8x8xf32> to vector<2x8x8xf32>
    %495 = vector.broadcast %420 : f32 to vector<2x8x8xf32>
    %496 = arith.mulf %495, %494 : vector<2x8x8xf32>
    %497 = arith.addf %492, %496 : vector<2x8x8xf32>
    %c14_134 = arith.constant 14 : index
    %c0_135 = arith.constant 0 : index
    %c0_136 = arith.constant 0 : index
    %c0_137 = arith.constant 0 : index
    %498 = vector.load %arg0[%c14_134, %c0_135, %c0_136, %c0_137] : memref<16x2x8x8xf32, #tpu.memory_space<vmem>>, vector<1x2x8x8xf32>
    %499 = vector.shape_cast %498 : vector<1x2x8x8xf32> to vector<2x8x8xf32>
    %500 = vector.broadcast %421 : f32 to vector<2x8x8xf32>
    %501 = arith.mulf %500, %499 : vector<2x8x8xf32>
    %502 = arith.addf %497, %501 : vector<2x8x8xf32>
    %c15_138 = arith.constant 15 : index
    %c0_139 = arith.constant 0 : index
    %c0_140 = arith.constant 0 : index
    %c0_141 = arith.constant 0 : index
    %503 = vector.load %arg0[%c15_138, %c0_139, %c0_140, %c0_141] : memref<16x2x8x8xf32, #tpu.memory_space<vmem>>, vector<1x2x8x8xf32>
    %504 = vector.shape_cast %503 : vector<1x2x8x8xf32> to vector<2x8x8xf32>
    %505 = vector.broadcast %422 : f32 to vector<2x8x8xf32>
    %506 = arith.mulf %505, %504 : vector<2x8x8xf32>
    %507 = arith.addf %502, %506 : vector<2x8x8xf32>
    %508 = vector.broadcast %418 : f32 to vector<2x8x8xf32>
    %509 = arith.addf %507, %508 : vector<2x8x8xf32>
    %510 = math.tanh %509 : vector<2x8x8xf32>
    %511 = vector.extract_strided_slice %444 {offsets = [0, 0, 0], sizes = [2, 7, 6], strides = [1, 1, 1]} : vector<2x8x8xf32> to vector<2x7x6xf32>
    %c15_142 = arith.constant 15 : index
    %512 = memref.load %arg3[%c15_142] : memref<300xf32, #tpu.memory_space<smem>>
    %513 = vector.broadcast %512 : f32 to vector<2x7x6xf32>
    %514 = arith.mulf %513, %511 : vector<2x7x6xf32>
    %515 = arith.addf %401, %514 : vector<2x7x6xf32>
    %c75 = arith.constant 75 : index
    %516 = memref.load %arg3[%c75] : memref<300xf32, #tpu.memory_space<smem>>
    %517 = vector.broadcast %516 : f32 to vector<2x7x6xf32>
    %518 = arith.mulf %517, %511 : vector<2x7x6xf32>
    %519 = arith.addf %405, %518 : vector<2x7x6xf32>
    %c135 = arith.constant 135 : index
    %520 = memref.load %arg3[%c135] : memref<300xf32, #tpu.memory_space<smem>>
    %521 = vector.broadcast %520 : f32 to vector<2x7x6xf32>
    %522 = arith.mulf %521, %511 : vector<2x7x6xf32>
    %523 = arith.addf %409, %522 : vector<2x7x6xf32>
    %c195 = arith.constant 195 : index
    %524 = memref.load %arg3[%c195] : memref<300xf32, #tpu.memory_space<smem>>
    %525 = vector.broadcast %524 : f32 to vector<2x7x6xf32>
    %526 = arith.mulf %525, %511 : vector<2x7x6xf32>
    %527 = arith.addf %413, %526 : vector<2x7x6xf32>
    %c255 = arith.constant 255 : index
    %528 = memref.load %arg3[%c255] : memref<300xf32, #tpu.memory_space<smem>>
    %529 = vector.broadcast %528 : f32 to vector<2x7x6xf32>
    %530 = arith.mulf %529, %511 : vector<2x7x6xf32>
    %531 = arith.addf %417, %530 : vector<2x7x6xf32>
    %532 = vector.extract_strided_slice %466 {offsets = [0, 0, 0], sizes = [2, 7, 6], strides = [1, 1, 1]} : vector<2x8x8xf32> to vector<2x7x6xf32>
    %c16 = arith.constant 16 : index
    %533 = memref.load %arg3[%c16] : memref<300xf32, #tpu.memory_space<smem>>
    %534 = vector.broadcast %533 : f32 to vector<2x7x6xf32>
    %535 = arith.mulf %534, %532 : vector<2x7x6xf32>
    %536 = arith.addf %515, %535 : vector<2x7x6xf32>
    %c76 = arith.constant 76 : index
    %537 = memref.load %arg3[%c76] : memref<300xf32, #tpu.memory_space<smem>>
    %538 = vector.broadcast %537 : f32 to vector<2x7x6xf32>
    %539 = arith.mulf %538, %532 : vector<2x7x6xf32>
    %540 = arith.addf %519, %539 : vector<2x7x6xf32>
    %c136 = arith.constant 136 : index
    %541 = memref.load %arg3[%c136] : memref<300xf32, #tpu.memory_space<smem>>
    %542 = vector.broadcast %541 : f32 to vector<2x7x6xf32>
    %543 = arith.mulf %542, %532 : vector<2x7x6xf32>
    %544 = arith.addf %523, %543 : vector<2x7x6xf32>
    %c196 = arith.constant 196 : index
    %545 = memref.load %arg3[%c196] : memref<300xf32, #tpu.memory_space<smem>>
    %546 = vector.broadcast %545 : f32 to vector<2x7x6xf32>
    %547 = arith.mulf %546, %532 : vector<2x7x6xf32>
    %548 = arith.addf %527, %547 : vector<2x7x6xf32>
    %c256 = arith.constant 256 : index
    %549 = memref.load %arg3[%c256] : memref<300xf32, #tpu.memory_space<smem>>
    %550 = vector.broadcast %549 : f32 to vector<2x7x6xf32>
    %551 = arith.mulf %550, %532 : vector<2x7x6xf32>
    %552 = arith.addf %531, %551 : vector<2x7x6xf32>
    %553 = vector.extract_strided_slice %444 {offsets = [0, 0, 1], sizes = [2, 7, 6], strides = [1, 1, 1]} : vector<2x8x8xf32> to vector<2x7x6xf32>
    %c17 = arith.constant 17 : index
    %554 = memref.load %arg3[%c17] : memref<300xf32, #tpu.memory_space<smem>>
    %555 = vector.broadcast %554 : f32 to vector<2x7x6xf32>
    %556 = arith.mulf %555, %553 : vector<2x7x6xf32>
    %557 = arith.addf %536, %556 : vector<2x7x6xf32>
    %c77 = arith.constant 77 : index
    %558 = memref.load %arg3[%c77] : memref<300xf32, #tpu.memory_space<smem>>
    %559 = vector.broadcast %558 : f32 to vector<2x7x6xf32>
    %560 = arith.mulf %559, %553 : vector<2x7x6xf32>
    %561 = arith.addf %540, %560 : vector<2x7x6xf32>
    %c137 = arith.constant 137 : index
    %562 = memref.load %arg3[%c137] : memref<300xf32, #tpu.memory_space<smem>>
    %563 = vector.broadcast %562 : f32 to vector<2x7x6xf32>
    %564 = arith.mulf %563, %553 : vector<2x7x6xf32>
    %565 = arith.addf %544, %564 : vector<2x7x6xf32>
    %c197 = arith.constant 197 : index
    %566 = memref.load %arg3[%c197] : memref<300xf32, #tpu.memory_space<smem>>
    %567 = vector.broadcast %566 : f32 to vector<2x7x6xf32>
    %568 = arith.mulf %567, %553 : vector<2x7x6xf32>
    %569 = arith.addf %548, %568 : vector<2x7x6xf32>
    %c257 = arith.constant 257 : index
    %570 = memref.load %arg3[%c257] : memref<300xf32, #tpu.memory_space<smem>>
    %571 = vector.broadcast %570 : f32 to vector<2x7x6xf32>
    %572 = arith.mulf %571, %553 : vector<2x7x6xf32>
    %573 = arith.addf %552, %572 : vector<2x7x6xf32>
    %574 = vector.extract_strided_slice %466 {offsets = [0, 0, 1], sizes = [2, 7, 6], strides = [1, 1, 1]} : vector<2x8x8xf32> to vector<2x7x6xf32>
    %c18 = arith.constant 18 : index
    %575 = memref.load %arg3[%c18] : memref<300xf32, #tpu.memory_space<smem>>
    %576 = vector.broadcast %575 : f32 to vector<2x7x6xf32>
    %577 = arith.mulf %576, %574 : vector<2x7x6xf32>
    %578 = arith.addf %557, %577 : vector<2x7x6xf32>
    %c78 = arith.constant 78 : index
    %579 = memref.load %arg3[%c78] : memref<300xf32, #tpu.memory_space<smem>>
    %580 = vector.broadcast %579 : f32 to vector<2x7x6xf32>
    %581 = arith.mulf %580, %574 : vector<2x7x6xf32>
    %582 = arith.addf %561, %581 : vector<2x7x6xf32>
    %c138 = arith.constant 138 : index
    %583 = memref.load %arg3[%c138] : memref<300xf32, #tpu.memory_space<smem>>
    %584 = vector.broadcast %583 : f32 to vector<2x7x6xf32>
    %585 = arith.mulf %584, %574 : vector<2x7x6xf32>
    %586 = arith.addf %565, %585 : vector<2x7x6xf32>
    %c198 = arith.constant 198 : index
    %587 = memref.load %arg3[%c198] : memref<300xf32, #tpu.memory_space<smem>>
    %588 = vector.broadcast %587 : f32 to vector<2x7x6xf32>
    %589 = arith.mulf %588, %574 : vector<2x7x6xf32>
    %590 = arith.addf %569, %589 : vector<2x7x6xf32>
    %c258 = arith.constant 258 : index
    %591 = memref.load %arg3[%c258] : memref<300xf32, #tpu.memory_space<smem>>
    %592 = vector.broadcast %591 : f32 to vector<2x7x6xf32>
    %593 = arith.mulf %592, %574 : vector<2x7x6xf32>
    %594 = arith.addf %573, %593 : vector<2x7x6xf32>
    %595 = vector.extract_strided_slice %444 {offsets = [0, 0, 2], sizes = [2, 7, 6], strides = [1, 1, 1]} : vector<2x8x8xf32> to vector<2x7x6xf32>
    %c19 = arith.constant 19 : index
    %596 = memref.load %arg3[%c19] : memref<300xf32, #tpu.memory_space<smem>>
    %597 = vector.broadcast %596 : f32 to vector<2x7x6xf32>
    %598 = arith.mulf %597, %595 : vector<2x7x6xf32>
    %599 = arith.addf %578, %598 : vector<2x7x6xf32>
    %c79 = arith.constant 79 : index
    %600 = memref.load %arg3[%c79] : memref<300xf32, #tpu.memory_space<smem>>
    %601 = vector.broadcast %600 : f32 to vector<2x7x6xf32>
    %602 = arith.mulf %601, %595 : vector<2x7x6xf32>
    %603 = arith.addf %582, %602 : vector<2x7x6xf32>
    %c139 = arith.constant 139 : index
    %604 = memref.load %arg3[%c139] : memref<300xf32, #tpu.memory_space<smem>>
    %605 = vector.broadcast %604 : f32 to vector<2x7x6xf32>
    %606 = arith.mulf %605, %595 : vector<2x7x6xf32>
    %607 = arith.addf %586, %606 : vector<2x7x6xf32>
    %c199 = arith.constant 199 : index
    %608 = memref.load %arg3[%c199] : memref<300xf32, #tpu.memory_space<smem>>
    %609 = vector.broadcast %608 : f32 to vector<2x7x6xf32>
    %610 = arith.mulf %609, %595 : vector<2x7x6xf32>
    %611 = arith.addf %590, %610 : vector<2x7x6xf32>
    %c259 = arith.constant 259 : index
    %612 = memref.load %arg3[%c259] : memref<300xf32, #tpu.memory_space<smem>>
    %613 = vector.broadcast %612 : f32 to vector<2x7x6xf32>
    %614 = arith.mulf %613, %595 : vector<2x7x6xf32>
    %615 = arith.addf %594, %614 : vector<2x7x6xf32>
    %616 = vector.extract_strided_slice %488 {offsets = [0, 0, 0], sizes = [2, 7, 6], strides = [1, 1, 1]} : vector<2x8x8xf32> to vector<2x7x6xf32>
    %c20 = arith.constant 20 : index
    %617 = memref.load %arg3[%c20] : memref<300xf32, #tpu.memory_space<smem>>
    %618 = vector.broadcast %617 : f32 to vector<2x7x6xf32>
    %619 = arith.mulf %618, %616 : vector<2x7x6xf32>
    %620 = arith.addf %599, %619 : vector<2x7x6xf32>
    %c80 = arith.constant 80 : index
    %621 = memref.load %arg3[%c80] : memref<300xf32, #tpu.memory_space<smem>>
    %622 = vector.broadcast %621 : f32 to vector<2x7x6xf32>
    %623 = arith.mulf %622, %616 : vector<2x7x6xf32>
    %624 = arith.addf %603, %623 : vector<2x7x6xf32>
    %c140 = arith.constant 140 : index
    %625 = memref.load %arg3[%c140] : memref<300xf32, #tpu.memory_space<smem>>
    %626 = vector.broadcast %625 : f32 to vector<2x7x6xf32>
    %627 = arith.mulf %626, %616 : vector<2x7x6xf32>
    %628 = arith.addf %607, %627 : vector<2x7x6xf32>
    %c200 = arith.constant 200 : index
    %629 = memref.load %arg3[%c200] : memref<300xf32, #tpu.memory_space<smem>>
    %630 = vector.broadcast %629 : f32 to vector<2x7x6xf32>
    %631 = arith.mulf %630, %616 : vector<2x7x6xf32>
    %632 = arith.addf %611, %631 : vector<2x7x6xf32>
    %c260 = arith.constant 260 : index
    %633 = memref.load %arg3[%c260] : memref<300xf32, #tpu.memory_space<smem>>
    %634 = vector.broadcast %633 : f32 to vector<2x7x6xf32>
    %635 = arith.mulf %634, %616 : vector<2x7x6xf32>
    %636 = arith.addf %615, %635 : vector<2x7x6xf32>
    %637 = vector.extract_strided_slice %510 {offsets = [0, 0, 0], sizes = [2, 7, 6], strides = [1, 1, 1]} : vector<2x8x8xf32> to vector<2x7x6xf32>
    %c21 = arith.constant 21 : index
    %638 = memref.load %arg3[%c21] : memref<300xf32, #tpu.memory_space<smem>>
    %639 = vector.broadcast %638 : f32 to vector<2x7x6xf32>
    %640 = arith.mulf %639, %637 : vector<2x7x6xf32>
    %641 = arith.addf %620, %640 : vector<2x7x6xf32>
    %c81 = arith.constant 81 : index
    %642 = memref.load %arg3[%c81] : memref<300xf32, #tpu.memory_space<smem>>
    %643 = vector.broadcast %642 : f32 to vector<2x7x6xf32>
    %644 = arith.mulf %643, %637 : vector<2x7x6xf32>
    %645 = arith.addf %624, %644 : vector<2x7x6xf32>
    %c141 = arith.constant 141 : index
    %646 = memref.load %arg3[%c141] : memref<300xf32, #tpu.memory_space<smem>>
    %647 = vector.broadcast %646 : f32 to vector<2x7x6xf32>
    %648 = arith.mulf %647, %637 : vector<2x7x6xf32>
    %649 = arith.addf %628, %648 : vector<2x7x6xf32>
    %c201 = arith.constant 201 : index
    %650 = memref.load %arg3[%c201] : memref<300xf32, #tpu.memory_space<smem>>
    %651 = vector.broadcast %650 : f32 to vector<2x7x6xf32>
    %652 = arith.mulf %651, %637 : vector<2x7x6xf32>
    %653 = arith.addf %632, %652 : vector<2x7x6xf32>
    %c261 = arith.constant 261 : index
    %654 = memref.load %arg3[%c261] : memref<300xf32, #tpu.memory_space<smem>>
    %655 = vector.broadcast %654 : f32 to vector<2x7x6xf32>
    %656 = arith.mulf %655, %637 : vector<2x7x6xf32>
    %657 = arith.addf %636, %656 : vector<2x7x6xf32>
    %658 = vector.extract_strided_slice %488 {offsets = [0, 0, 1], sizes = [2, 7, 6], strides = [1, 1, 1]} : vector<2x8x8xf32> to vector<2x7x6xf32>
    %c22 = arith.constant 22 : index
    %659 = memref.load %arg3[%c22] : memref<300xf32, #tpu.memory_space<smem>>
    %660 = vector.broadcast %659 : f32 to vector<2x7x6xf32>
    %661 = arith.mulf %660, %658 : vector<2x7x6xf32>
    %662 = arith.addf %641, %661 : vector<2x7x6xf32>
    %c82 = arith.constant 82 : index
    %663 = memref.load %arg3[%c82] : memref<300xf32, #tpu.memory_space<smem>>
    %664 = vector.broadcast %663 : f32 to vector<2x7x6xf32>
    %665 = arith.mulf %664, %658 : vector<2x7x6xf32>
    %666 = arith.addf %645, %665 : vector<2x7x6xf32>
    %c142 = arith.constant 142 : index
    %667 = memref.load %arg3[%c142] : memref<300xf32, #tpu.memory_space<smem>>
    %668 = vector.broadcast %667 : f32 to vector<2x7x6xf32>
    %669 = arith.mulf %668, %658 : vector<2x7x6xf32>
    %670 = arith.addf %649, %669 : vector<2x7x6xf32>
    %c202 = arith.constant 202 : index
    %671 = memref.load %arg3[%c202] : memref<300xf32, #tpu.memory_space<smem>>
    %672 = vector.broadcast %671 : f32 to vector<2x7x6xf32>
    %673 = arith.mulf %672, %658 : vector<2x7x6xf32>
    %674 = arith.addf %653, %673 : vector<2x7x6xf32>
    %c262 = arith.constant 262 : index
    %675 = memref.load %arg3[%c262] : memref<300xf32, #tpu.memory_space<smem>>
    %676 = vector.broadcast %675 : f32 to vector<2x7x6xf32>
    %677 = arith.mulf %676, %658 : vector<2x7x6xf32>
    %678 = arith.addf %657, %677 : vector<2x7x6xf32>
    %679 = vector.extract_strided_slice %510 {offsets = [0, 0, 1], sizes = [2, 7, 6], strides = [1, 1, 1]} : vector<2x8x8xf32> to vector<2x7x6xf32>
    %c23 = arith.constant 23 : index
    %680 = memref.load %arg3[%c23] : memref<300xf32, #tpu.memory_space<smem>>
    %681 = vector.broadcast %680 : f32 to vector<2x7x6xf32>
    %682 = arith.mulf %681, %679 : vector<2x7x6xf32>
    %683 = arith.addf %662, %682 : vector<2x7x6xf32>
    %c83 = arith.constant 83 : index
    %684 = memref.load %arg3[%c83] : memref<300xf32, #tpu.memory_space<smem>>
    %685 = vector.broadcast %684 : f32 to vector<2x7x6xf32>
    %686 = arith.mulf %685, %679 : vector<2x7x6xf32>
    %687 = arith.addf %666, %686 : vector<2x7x6xf32>
    %c143 = arith.constant 143 : index
    %688 = memref.load %arg3[%c143] : memref<300xf32, #tpu.memory_space<smem>>
    %689 = vector.broadcast %688 : f32 to vector<2x7x6xf32>
    %690 = arith.mulf %689, %679 : vector<2x7x6xf32>
    %691 = arith.addf %670, %690 : vector<2x7x6xf32>
    %c203 = arith.constant 203 : index
    %692 = memref.load %arg3[%c203] : memref<300xf32, #tpu.memory_space<smem>>
    %693 = vector.broadcast %692 : f32 to vector<2x7x6xf32>
    %694 = arith.mulf %693, %679 : vector<2x7x6xf32>
    %695 = arith.addf %674, %694 : vector<2x7x6xf32>
    %c263 = arith.constant 263 : index
    %696 = memref.load %arg3[%c263] : memref<300xf32, #tpu.memory_space<smem>>
    %697 = vector.broadcast %696 : f32 to vector<2x7x6xf32>
    %698 = arith.mulf %697, %679 : vector<2x7x6xf32>
    %699 = arith.addf %678, %698 : vector<2x7x6xf32>
    %700 = vector.extract_strided_slice %488 {offsets = [0, 0, 2], sizes = [2, 7, 6], strides = [1, 1, 1]} : vector<2x8x8xf32> to vector<2x7x6xf32>
    %c24 = arith.constant 24 : index
    %701 = memref.load %arg3[%c24] : memref<300xf32, #tpu.memory_space<smem>>
    %702 = vector.broadcast %701 : f32 to vector<2x7x6xf32>
    %703 = arith.mulf %702, %700 : vector<2x7x6xf32>
    %704 = arith.addf %683, %703 : vector<2x7x6xf32>
    %c84 = arith.constant 84 : index
    %705 = memref.load %arg3[%c84] : memref<300xf32, #tpu.memory_space<smem>>
    %706 = vector.broadcast %705 : f32 to vector<2x7x6xf32>
    %707 = arith.mulf %706, %700 : vector<2x7x6xf32>
    %708 = arith.addf %687, %707 : vector<2x7x6xf32>
    %c144 = arith.constant 144 : index
    %709 = memref.load %arg3[%c144] : memref<300xf32, #tpu.memory_space<smem>>
    %710 = vector.broadcast %709 : f32 to vector<2x7x6xf32>
    %711 = arith.mulf %710, %700 : vector<2x7x6xf32>
    %712 = arith.addf %691, %711 : vector<2x7x6xf32>
    %c204 = arith.constant 204 : index
    %713 = memref.load %arg3[%c204] : memref<300xf32, #tpu.memory_space<smem>>
    %714 = vector.broadcast %713 : f32 to vector<2x7x6xf32>
    %715 = arith.mulf %714, %700 : vector<2x7x6xf32>
    %716 = arith.addf %695, %715 : vector<2x7x6xf32>
    %c264 = arith.constant 264 : index
    %717 = memref.load %arg3[%c264] : memref<300xf32, #tpu.memory_space<smem>>
    %718 = vector.broadcast %717 : f32 to vector<2x7x6xf32>
    %719 = arith.mulf %718, %700 : vector<2x7x6xf32>
    %720 = arith.addf %699, %719 : vector<2x7x6xf32>
    %721 = vector.extract_strided_slice %444 {offsets = [0, 1, 0], sizes = [2, 7, 6], strides = [1, 1, 1]} : vector<2x8x8xf32> to vector<2x7x6xf32>
    %c25 = arith.constant 25 : index
    %722 = memref.load %arg3[%c25] : memref<300xf32, #tpu.memory_space<smem>>
    %723 = vector.broadcast %722 : f32 to vector<2x7x6xf32>
    %724 = arith.mulf %723, %721 : vector<2x7x6xf32>
    %725 = arith.addf %704, %724 : vector<2x7x6xf32>
    %c85 = arith.constant 85 : index
    %726 = memref.load %arg3[%c85] : memref<300xf32, #tpu.memory_space<smem>>
    %727 = vector.broadcast %726 : f32 to vector<2x7x6xf32>
    %728 = arith.mulf %727, %721 : vector<2x7x6xf32>
    %729 = arith.addf %708, %728 : vector<2x7x6xf32>
    %c145 = arith.constant 145 : index
    %730 = memref.load %arg3[%c145] : memref<300xf32, #tpu.memory_space<smem>>
    %731 = vector.broadcast %730 : f32 to vector<2x7x6xf32>
    %732 = arith.mulf %731, %721 : vector<2x7x6xf32>
    %733 = arith.addf %712, %732 : vector<2x7x6xf32>
    %c205 = arith.constant 205 : index
    %734 = memref.load %arg3[%c205] : memref<300xf32, #tpu.memory_space<smem>>
    %735 = vector.broadcast %734 : f32 to vector<2x7x6xf32>
    %736 = arith.mulf %735, %721 : vector<2x7x6xf32>
    %737 = arith.addf %716, %736 : vector<2x7x6xf32>
    %c265 = arith.constant 265 : index
    %738 = memref.load %arg3[%c265] : memref<300xf32, #tpu.memory_space<smem>>
    %739 = vector.broadcast %738 : f32 to vector<2x7x6xf32>
    %740 = arith.mulf %739, %721 : vector<2x7x6xf32>
    %741 = arith.addf %720, %740 : vector<2x7x6xf32>
    %742 = vector.extract_strided_slice %466 {offsets = [0, 1, 0], sizes = [2, 7, 6], strides = [1, 1, 1]} : vector<2x8x8xf32> to vector<2x7x6xf32>
    %c26 = arith.constant 26 : index
    %743 = memref.load %arg3[%c26] : memref<300xf32, #tpu.memory_space<smem>>
    %744 = vector.broadcast %743 : f32 to vector<2x7x6xf32>
    %745 = arith.mulf %744, %742 : vector<2x7x6xf32>
    %746 = arith.addf %725, %745 : vector<2x7x6xf32>
    %c86 = arith.constant 86 : index
    %747 = memref.load %arg3[%c86] : memref<300xf32, #tpu.memory_space<smem>>
    %748 = vector.broadcast %747 : f32 to vector<2x7x6xf32>
    %749 = arith.mulf %748, %742 : vector<2x7x6xf32>
    %750 = arith.addf %729, %749 : vector<2x7x6xf32>
    %c146 = arith.constant 146 : index
    %751 = memref.load %arg3[%c146] : memref<300xf32, #tpu.memory_space<smem>>
    %752 = vector.broadcast %751 : f32 to vector<2x7x6xf32>
    %753 = arith.mulf %752, %742 : vector<2x7x6xf32>
    %754 = arith.addf %733, %753 : vector<2x7x6xf32>
    %c206 = arith.constant 206 : index
    %755 = memref.load %arg3[%c206] : memref<300xf32, #tpu.memory_space<smem>>
    %756 = vector.broadcast %755 : f32 to vector<2x7x6xf32>
    %757 = arith.mulf %756, %742 : vector<2x7x6xf32>
    %758 = arith.addf %737, %757 : vector<2x7x6xf32>
    %c266 = arith.constant 266 : index
    %759 = memref.load %arg3[%c266] : memref<300xf32, #tpu.memory_space<smem>>
    %760 = vector.broadcast %759 : f32 to vector<2x7x6xf32>
    %761 = arith.mulf %760, %742 : vector<2x7x6xf32>
    %762 = arith.addf %741, %761 : vector<2x7x6xf32>
    %763 = vector.extract_strided_slice %444 {offsets = [0, 1, 1], sizes = [2, 7, 6], strides = [1, 1, 1]} : vector<2x8x8xf32> to vector<2x7x6xf32>
    %c27 = arith.constant 27 : index
    %764 = memref.load %arg3[%c27] : memref<300xf32, #tpu.memory_space<smem>>
    %765 = vector.broadcast %764 : f32 to vector<2x7x6xf32>
    %766 = arith.mulf %765, %763 : vector<2x7x6xf32>
    %767 = arith.addf %746, %766 : vector<2x7x6xf32>
    %c87 = arith.constant 87 : index
    %768 = memref.load %arg3[%c87] : memref<300xf32, #tpu.memory_space<smem>>
    %769 = vector.broadcast %768 : f32 to vector<2x7x6xf32>
    %770 = arith.mulf %769, %763 : vector<2x7x6xf32>
    %771 = arith.addf %750, %770 : vector<2x7x6xf32>
    %c147 = arith.constant 147 : index
    %772 = memref.load %arg3[%c147] : memref<300xf32, #tpu.memory_space<smem>>
    %773 = vector.broadcast %772 : f32 to vector<2x7x6xf32>
    %774 = arith.mulf %773, %763 : vector<2x7x6xf32>
    %775 = arith.addf %754, %774 : vector<2x7x6xf32>
    %c207 = arith.constant 207 : index
    %776 = memref.load %arg3[%c207] : memref<300xf32, #tpu.memory_space<smem>>
    %777 = vector.broadcast %776 : f32 to vector<2x7x6xf32>
    %778 = arith.mulf %777, %763 : vector<2x7x6xf32>
    %779 = arith.addf %758, %778 : vector<2x7x6xf32>
    %c267 = arith.constant 267 : index
    %780 = memref.load %arg3[%c267] : memref<300xf32, #tpu.memory_space<smem>>
    %781 = vector.broadcast %780 : f32 to vector<2x7x6xf32>
    %782 = arith.mulf %781, %763 : vector<2x7x6xf32>
    %783 = arith.addf %762, %782 : vector<2x7x6xf32>
    %784 = vector.extract_strided_slice %466 {offsets = [0, 1, 1], sizes = [2, 7, 6], strides = [1, 1, 1]} : vector<2x8x8xf32> to vector<2x7x6xf32>
    %c28 = arith.constant 28 : index
    %785 = memref.load %arg3[%c28] : memref<300xf32, #tpu.memory_space<smem>>
    %786 = vector.broadcast %785 : f32 to vector<2x7x6xf32>
    %787 = arith.mulf %786, %784 : vector<2x7x6xf32>
    %788 = arith.addf %767, %787 : vector<2x7x6xf32>
    %c88 = arith.constant 88 : index
    %789 = memref.load %arg3[%c88] : memref<300xf32, #tpu.memory_space<smem>>
    %790 = vector.broadcast %789 : f32 to vector<2x7x6xf32>
    %791 = arith.mulf %790, %784 : vector<2x7x6xf32>
    %792 = arith.addf %771, %791 : vector<2x7x6xf32>
    %c148 = arith.constant 148 : index
    %793 = memref.load %arg3[%c148] : memref<300xf32, #tpu.memory_space<smem>>
    %794 = vector.broadcast %793 : f32 to vector<2x7x6xf32>
    %795 = arith.mulf %794, %784 : vector<2x7x6xf32>
    %796 = arith.addf %775, %795 : vector<2x7x6xf32>
    %c208 = arith.constant 208 : index
    %797 = memref.load %arg3[%c208] : memref<300xf32, #tpu.memory_space<smem>>
    %798 = vector.broadcast %797 : f32 to vector<2x7x6xf32>
    %799 = arith.mulf %798, %784 : vector<2x7x6xf32>
    %800 = arith.addf %779, %799 : vector<2x7x6xf32>
    %c268 = arith.constant 268 : index
    %801 = memref.load %arg3[%c268] : memref<300xf32, #tpu.memory_space<smem>>
    %802 = vector.broadcast %801 : f32 to vector<2x7x6xf32>
    %803 = arith.mulf %802, %784 : vector<2x7x6xf32>
    %804 = arith.addf %783, %803 : vector<2x7x6xf32>
    %805 = vector.extract_strided_slice %444 {offsets = [0, 1, 2], sizes = [2, 7, 6], strides = [1, 1, 1]} : vector<2x8x8xf32> to vector<2x7x6xf32>
    %c29 = arith.constant 29 : index
    %806 = memref.load %arg3[%c29] : memref<300xf32, #tpu.memory_space<smem>>
    %807 = vector.broadcast %806 : f32 to vector<2x7x6xf32>
    %808 = arith.mulf %807, %805 : vector<2x7x6xf32>
    %809 = arith.addf %788, %808 : vector<2x7x6xf32>
    %c89 = arith.constant 89 : index
    %810 = memref.load %arg3[%c89] : memref<300xf32, #tpu.memory_space<smem>>
    %811 = vector.broadcast %810 : f32 to vector<2x7x6xf32>
    %812 = arith.mulf %811, %805 : vector<2x7x6xf32>
    %813 = arith.addf %792, %812 : vector<2x7x6xf32>
    %c149 = arith.constant 149 : index
    %814 = memref.load %arg3[%c149] : memref<300xf32, #tpu.memory_space<smem>>
    %815 = vector.broadcast %814 : f32 to vector<2x7x6xf32>
    %816 = arith.mulf %815, %805 : vector<2x7x6xf32>
    %817 = arith.addf %796, %816 : vector<2x7x6xf32>
    %c209 = arith.constant 209 : index
    %818 = memref.load %arg3[%c209] : memref<300xf32, #tpu.memory_space<smem>>
    %819 = vector.broadcast %818 : f32 to vector<2x7x6xf32>
    %820 = arith.mulf %819, %805 : vector<2x7x6xf32>
    %821 = arith.addf %800, %820 : vector<2x7x6xf32>
    %c269 = arith.constant 269 : index
    %822 = memref.load %arg3[%c269] : memref<300xf32, #tpu.memory_space<smem>>
    %823 = vector.broadcast %822 : f32 to vector<2x7x6xf32>
    %824 = arith.mulf %823, %805 : vector<2x7x6xf32>
    %825 = arith.addf %804, %824 : vector<2x7x6xf32>
    %c2_143 = arith.constant 2 : index
    %826 = memref.load %arg2[%c2_143] : memref<4xf32, #tpu.memory_space<smem>>
    %c2_144 = arith.constant 2 : index
    %827 = memref.load %arg1[%c2_144] : memref<16xf32, #tpu.memory_space<smem>>
    %c6_145 = arith.constant 6 : index
    %828 = memref.load %arg1[%c6_145] : memref<16xf32, #tpu.memory_space<smem>>
    %c10_146 = arith.constant 10 : index
    %829 = memref.load %arg1[%c10_146] : memref<16xf32, #tpu.memory_space<smem>>
    %c14_147 = arith.constant 14 : index
    %830 = memref.load %arg1[%c14_147] : memref<16xf32, #tpu.memory_space<smem>>
    %c0_148 = arith.constant 0 : index
    %c0_149 = arith.constant 0 : index
    %c0_150 = arith.constant 0 : index
    %c0_151 = arith.constant 0 : index
    %831 = vector.load %arg0[%c0_148, %c0_149, %c0_150, %c0_151] : memref<16x2x8x8xf32, #tpu.memory_space<vmem>>, vector<1x2x8x8xf32>
    %832 = vector.shape_cast %831 : vector<1x2x8x8xf32> to vector<2x8x8xf32>
    %833 = vector.broadcast %827 : f32 to vector<2x8x8xf32>
    %834 = arith.mulf %833, %832 : vector<2x8x8xf32>
    %c1_152 = arith.constant 1 : index
    %c0_153 = arith.constant 0 : index
    %c0_154 = arith.constant 0 : index
    %c0_155 = arith.constant 0 : index
    %835 = vector.load %arg0[%c1_152, %c0_153, %c0_154, %c0_155] : memref<16x2x8x8xf32, #tpu.memory_space<vmem>>, vector<1x2x8x8xf32>
    %836 = vector.shape_cast %835 : vector<1x2x8x8xf32> to vector<2x8x8xf32>
    %837 = vector.broadcast %828 : f32 to vector<2x8x8xf32>
    %838 = arith.mulf %837, %836 : vector<2x8x8xf32>
    %839 = arith.addf %834, %838 : vector<2x8x8xf32>
    %c2_156 = arith.constant 2 : index
    %c0_157 = arith.constant 0 : index
    %c0_158 = arith.constant 0 : index
    %c0_159 = arith.constant 0 : index
    %840 = vector.load %arg0[%c2_156, %c0_157, %c0_158, %c0_159] : memref<16x2x8x8xf32, #tpu.memory_space<vmem>>, vector<1x2x8x8xf32>
    %841 = vector.shape_cast %840 : vector<1x2x8x8xf32> to vector<2x8x8xf32>
    %842 = vector.broadcast %829 : f32 to vector<2x8x8xf32>
    %843 = arith.mulf %842, %841 : vector<2x8x8xf32>
    %844 = arith.addf %839, %843 : vector<2x8x8xf32>
    %c3_160 = arith.constant 3 : index
    %c0_161 = arith.constant 0 : index
    %c0_162 = arith.constant 0 : index
    %c0_163 = arith.constant 0 : index
    %845 = vector.load %arg0[%c3_160, %c0_161, %c0_162, %c0_163] : memref<16x2x8x8xf32, #tpu.memory_space<vmem>>, vector<1x2x8x8xf32>
    %846 = vector.shape_cast %845 : vector<1x2x8x8xf32> to vector<2x8x8xf32>
    %847 = vector.broadcast %830 : f32 to vector<2x8x8xf32>
    %848 = arith.mulf %847, %846 : vector<2x8x8xf32>
    %849 = arith.addf %844, %848 : vector<2x8x8xf32>
    %850 = vector.broadcast %826 : f32 to vector<2x8x8xf32>
    %851 = arith.addf %849, %850 : vector<2x8x8xf32>
    %852 = math.tanh %851 : vector<2x8x8xf32>
    %c4_164 = arith.constant 4 : index
    %c0_165 = arith.constant 0 : index
    %c0_166 = arith.constant 0 : index
    %c0_167 = arith.constant 0 : index
    %853 = vector.load %arg0[%c4_164, %c0_165, %c0_166, %c0_167] : memref<16x2x8x8xf32, #tpu.memory_space<vmem>>, vector<1x2x8x8xf32>
    %854 = vector.shape_cast %853 : vector<1x2x8x8xf32> to vector<2x8x8xf32>
    %855 = vector.broadcast %827 : f32 to vector<2x8x8xf32>
    %856 = arith.mulf %855, %854 : vector<2x8x8xf32>
    %c5_168 = arith.constant 5 : index
    %c0_169 = arith.constant 0 : index
    %c0_170 = arith.constant 0 : index
    %c0_171 = arith.constant 0 : index
    %857 = vector.load %arg0[%c5_168, %c0_169, %c0_170, %c0_171] : memref<16x2x8x8xf32, #tpu.memory_space<vmem>>, vector<1x2x8x8xf32>
    %858 = vector.shape_cast %857 : vector<1x2x8x8xf32> to vector<2x8x8xf32>
    %859 = vector.broadcast %828 : f32 to vector<2x8x8xf32>
    %860 = arith.mulf %859, %858 : vector<2x8x8xf32>
    %861 = arith.addf %856, %860 : vector<2x8x8xf32>
    %c6_172 = arith.constant 6 : index
    %c0_173 = arith.constant 0 : index
    %c0_174 = arith.constant 0 : index
    %c0_175 = arith.constant 0 : index
    %862 = vector.load %arg0[%c6_172, %c0_173, %c0_174, %c0_175] : memref<16x2x8x8xf32, #tpu.memory_space<vmem>>, vector<1x2x8x8xf32>
    %863 = vector.shape_cast %862 : vector<1x2x8x8xf32> to vector<2x8x8xf32>
    %864 = vector.broadcast %829 : f32 to vector<2x8x8xf32>
    %865 = arith.mulf %864, %863 : vector<2x8x8xf32>
    %866 = arith.addf %861, %865 : vector<2x8x8xf32>
    %c7_176 = arith.constant 7 : index
    %c0_177 = arith.constant 0 : index
    %c0_178 = arith.constant 0 : index
    %c0_179 = arith.constant 0 : index
    %867 = vector.load %arg0[%c7_176, %c0_177, %c0_178, %c0_179] : memref<16x2x8x8xf32, #tpu.memory_space<vmem>>, vector<1x2x8x8xf32>
    %868 = vector.shape_cast %867 : vector<1x2x8x8xf32> to vector<2x8x8xf32>
    %869 = vector.broadcast %830 : f32 to vector<2x8x8xf32>
    %870 = arith.mulf %869, %868 : vector<2x8x8xf32>
    %871 = arith.addf %866, %870 : vector<2x8x8xf32>
    %872 = vector.broadcast %826 : f32 to vector<2x8x8xf32>
    %873 = arith.addf %871, %872 : vector<2x8x8xf32>
    %874 = math.tanh %873 : vector<2x8x8xf32>
    %c8_180 = arith.constant 8 : index
    %c0_181 = arith.constant 0 : index
    %c0_182 = arith.constant 0 : index
    %c0_183 = arith.constant 0 : index
    %875 = vector.load %arg0[%c8_180, %c0_181, %c0_182, %c0_183] : memref<16x2x8x8xf32, #tpu.memory_space<vmem>>, vector<1x2x8x8xf32>
    %876 = vector.shape_cast %875 : vector<1x2x8x8xf32> to vector<2x8x8xf32>
    %877 = vector.broadcast %827 : f32 to vector<2x8x8xf32>
    %878 = arith.mulf %877, %876 : vector<2x8x8xf32>
    %c9_184 = arith.constant 9 : index
    %c0_185 = arith.constant 0 : index
    %c0_186 = arith.constant 0 : index
    %c0_187 = arith.constant 0 : index
    %879 = vector.load %arg0[%c9_184, %c0_185, %c0_186, %c0_187] : memref<16x2x8x8xf32, #tpu.memory_space<vmem>>, vector<1x2x8x8xf32>
    %880 = vector.shape_cast %879 : vector<1x2x8x8xf32> to vector<2x8x8xf32>
    %881 = vector.broadcast %828 : f32 to vector<2x8x8xf32>
    %882 = arith.mulf %881, %880 : vector<2x8x8xf32>
    %883 = arith.addf %878, %882 : vector<2x8x8xf32>
    %c10_188 = arith.constant 10 : index
    %c0_189 = arith.constant 0 : index
    %c0_190 = arith.constant 0 : index
    %c0_191 = arith.constant 0 : index
    %884 = vector.load %arg0[%c10_188, %c0_189, %c0_190, %c0_191] : memref<16x2x8x8xf32, #tpu.memory_space<vmem>>, vector<1x2x8x8xf32>
    %885 = vector.shape_cast %884 : vector<1x2x8x8xf32> to vector<2x8x8xf32>
    %886 = vector.broadcast %829 : f32 to vector<2x8x8xf32>
    %887 = arith.mulf %886, %885 : vector<2x8x8xf32>
    %888 = arith.addf %883, %887 : vector<2x8x8xf32>
    %c11_192 = arith.constant 11 : index
    %c0_193 = arith.constant 0 : index
    %c0_194 = arith.constant 0 : index
    %c0_195 = arith.constant 0 : index
    %889 = vector.load %arg0[%c11_192, %c0_193, %c0_194, %c0_195] : memref<16x2x8x8xf32, #tpu.memory_space<vmem>>, vector<1x2x8x8xf32>
    %890 = vector.shape_cast %889 : vector<1x2x8x8xf32> to vector<2x8x8xf32>
    %891 = vector.broadcast %830 : f32 to vector<2x8x8xf32>
    %892 = arith.mulf %891, %890 : vector<2x8x8xf32>
    %893 = arith.addf %888, %892 : vector<2x8x8xf32>
    %894 = vector.broadcast %826 : f32 to vector<2x8x8xf32>
    %895 = arith.addf %893, %894 : vector<2x8x8xf32>
    %896 = math.tanh %895 : vector<2x8x8xf32>
    %c12_196 = arith.constant 12 : index
    %c0_197 = arith.constant 0 : index
    %c0_198 = arith.constant 0 : index
    %c0_199 = arith.constant 0 : index
    %897 = vector.load %arg0[%c12_196, %c0_197, %c0_198, %c0_199] : memref<16x2x8x8xf32, #tpu.memory_space<vmem>>, vector<1x2x8x8xf32>
    %898 = vector.shape_cast %897 : vector<1x2x8x8xf32> to vector<2x8x8xf32>
    %899 = vector.broadcast %827 : f32 to vector<2x8x8xf32>
    %900 = arith.mulf %899, %898 : vector<2x8x8xf32>
    %c13_200 = arith.constant 13 : index
    %c0_201 = arith.constant 0 : index
    %c0_202 = arith.constant 0 : index
    %c0_203 = arith.constant 0 : index
    %901 = vector.load %arg0[%c13_200, %c0_201, %c0_202, %c0_203] : memref<16x2x8x8xf32, #tpu.memory_space<vmem>>, vector<1x2x8x8xf32>
    %902 = vector.shape_cast %901 : vector<1x2x8x8xf32> to vector<2x8x8xf32>
    %903 = vector.broadcast %828 : f32 to vector<2x8x8xf32>
    %904 = arith.mulf %903, %902 : vector<2x8x8xf32>
    %905 = arith.addf %900, %904 : vector<2x8x8xf32>
    %c14_204 = arith.constant 14 : index
    %c0_205 = arith.constant 0 : index
    %c0_206 = arith.constant 0 : index
    %c0_207 = arith.constant 0 : index
    %906 = vector.load %arg0[%c14_204, %c0_205, %c0_206, %c0_207] : memref<16x2x8x8xf32, #tpu.memory_space<vmem>>, vector<1x2x8x8xf32>
    %907 = vector.shape_cast %906 : vector<1x2x8x8xf32> to vector<2x8x8xf32>
    %908 = vector.broadcast %829 : f32 to vector<2x8x8xf32>
    %909 = arith.mulf %908, %907 : vector<2x8x8xf32>
    %910 = arith.addf %905, %909 : vector<2x8x8xf32>
    %c15_208 = arith.constant 15 : index
    %c0_209 = arith.constant 0 : index
    %c0_210 = arith.constant 0 : index
    %c0_211 = arith.constant 0 : index
    %911 = vector.load %arg0[%c15_208, %c0_209, %c0_210, %c0_211] : memref<16x2x8x8xf32, #tpu.memory_space<vmem>>, vector<1x2x8x8xf32>
    %912 = vector.shape_cast %911 : vector<1x2x8x8xf32> to vector<2x8x8xf32>
    %913 = vector.broadcast %830 : f32 to vector<2x8x8xf32>
    %914 = arith.mulf %913, %912 : vector<2x8x8xf32>
    %915 = arith.addf %910, %914 : vector<2x8x8xf32>
    %916 = vector.broadcast %826 : f32 to vector<2x8x8xf32>
    %917 = arith.addf %915, %916 : vector<2x8x8xf32>
    %918 = math.tanh %917 : vector<2x8x8xf32>
    %919 = vector.extract_strided_slice %852 {offsets = [0, 0, 0], sizes = [2, 7, 6], strides = [1, 1, 1]} : vector<2x8x8xf32> to vector<2x7x6xf32>
    %c30 = arith.constant 30 : index
    %920 = memref.load %arg3[%c30] : memref<300xf32, #tpu.memory_space<smem>>
    %921 = vector.broadcast %920 : f32 to vector<2x7x6xf32>
    %922 = arith.mulf %921, %919 : vector<2x7x6xf32>
    %923 = arith.addf %809, %922 : vector<2x7x6xf32>
    %c90 = arith.constant 90 : index
    %924 = memref.load %arg3[%c90] : memref<300xf32, #tpu.memory_space<smem>>
    %925 = vector.broadcast %924 : f32 to vector<2x7x6xf32>
    %926 = arith.mulf %925, %919 : vector<2x7x6xf32>
    %927 = arith.addf %813, %926 : vector<2x7x6xf32>
    %c150 = arith.constant 150 : index
    %928 = memref.load %arg3[%c150] : memref<300xf32, #tpu.memory_space<smem>>
    %929 = vector.broadcast %928 : f32 to vector<2x7x6xf32>
    %930 = arith.mulf %929, %919 : vector<2x7x6xf32>
    %931 = arith.addf %817, %930 : vector<2x7x6xf32>
    %c210 = arith.constant 210 : index
    %932 = memref.load %arg3[%c210] : memref<300xf32, #tpu.memory_space<smem>>
    %933 = vector.broadcast %932 : f32 to vector<2x7x6xf32>
    %934 = arith.mulf %933, %919 : vector<2x7x6xf32>
    %935 = arith.addf %821, %934 : vector<2x7x6xf32>
    %c270 = arith.constant 270 : index
    %936 = memref.load %arg3[%c270] : memref<300xf32, #tpu.memory_space<smem>>
    %937 = vector.broadcast %936 : f32 to vector<2x7x6xf32>
    %938 = arith.mulf %937, %919 : vector<2x7x6xf32>
    %939 = arith.addf %825, %938 : vector<2x7x6xf32>
    %940 = vector.extract_strided_slice %874 {offsets = [0, 0, 0], sizes = [2, 7, 6], strides = [1, 1, 1]} : vector<2x8x8xf32> to vector<2x7x6xf32>
    %c31 = arith.constant 31 : index
    %941 = memref.load %arg3[%c31] : memref<300xf32, #tpu.memory_space<smem>>
    %942 = vector.broadcast %941 : f32 to vector<2x7x6xf32>
    %943 = arith.mulf %942, %940 : vector<2x7x6xf32>
    %944 = arith.addf %923, %943 : vector<2x7x6xf32>
    %c91 = arith.constant 91 : index
    %945 = memref.load %arg3[%c91] : memref<300xf32, #tpu.memory_space<smem>>
    %946 = vector.broadcast %945 : f32 to vector<2x7x6xf32>
    %947 = arith.mulf %946, %940 : vector<2x7x6xf32>
    %948 = arith.addf %927, %947 : vector<2x7x6xf32>
    %c151 = arith.constant 151 : index
    %949 = memref.load %arg3[%c151] : memref<300xf32, #tpu.memory_space<smem>>
    %950 = vector.broadcast %949 : f32 to vector<2x7x6xf32>
    %951 = arith.mulf %950, %940 : vector<2x7x6xf32>
    %952 = arith.addf %931, %951 : vector<2x7x6xf32>
    %c211 = arith.constant 211 : index
    %953 = memref.load %arg3[%c211] : memref<300xf32, #tpu.memory_space<smem>>
    %954 = vector.broadcast %953 : f32 to vector<2x7x6xf32>
    %955 = arith.mulf %954, %940 : vector<2x7x6xf32>
    %956 = arith.addf %935, %955 : vector<2x7x6xf32>
    %c271 = arith.constant 271 : index
    %957 = memref.load %arg3[%c271] : memref<300xf32, #tpu.memory_space<smem>>
    %958 = vector.broadcast %957 : f32 to vector<2x7x6xf32>
    %959 = arith.mulf %958, %940 : vector<2x7x6xf32>
    %960 = arith.addf %939, %959 : vector<2x7x6xf32>
    %961 = vector.extract_strided_slice %852 {offsets = [0, 0, 1], sizes = [2, 7, 6], strides = [1, 1, 1]} : vector<2x8x8xf32> to vector<2x7x6xf32>
    %c32 = arith.constant 32 : index
    %962 = memref.load %arg3[%c32] : memref<300xf32, #tpu.memory_space<smem>>
    %963 = vector.broadcast %962 : f32 to vector<2x7x6xf32>
    %964 = arith.mulf %963, %961 : vector<2x7x6xf32>
    %965 = arith.addf %944, %964 : vector<2x7x6xf32>
    %c92 = arith.constant 92 : index
    %966 = memref.load %arg3[%c92] : memref<300xf32, #tpu.memory_space<smem>>
    %967 = vector.broadcast %966 : f32 to vector<2x7x6xf32>
    %968 = arith.mulf %967, %961 : vector<2x7x6xf32>
    %969 = arith.addf %948, %968 : vector<2x7x6xf32>
    %c152 = arith.constant 152 : index
    %970 = memref.load %arg3[%c152] : memref<300xf32, #tpu.memory_space<smem>>
    %971 = vector.broadcast %970 : f32 to vector<2x7x6xf32>
    %972 = arith.mulf %971, %961 : vector<2x7x6xf32>
    %973 = arith.addf %952, %972 : vector<2x7x6xf32>
    %c212 = arith.constant 212 : index
    %974 = memref.load %arg3[%c212] : memref<300xf32, #tpu.memory_space<smem>>
    %975 = vector.broadcast %974 : f32 to vector<2x7x6xf32>
    %976 = arith.mulf %975, %961 : vector<2x7x6xf32>
    %977 = arith.addf %956, %976 : vector<2x7x6xf32>
    %c272 = arith.constant 272 : index
    %978 = memref.load %arg3[%c272] : memref<300xf32, #tpu.memory_space<smem>>
    %979 = vector.broadcast %978 : f32 to vector<2x7x6xf32>
    %980 = arith.mulf %979, %961 : vector<2x7x6xf32>
    %981 = arith.addf %960, %980 : vector<2x7x6xf32>
    %982 = vector.extract_strided_slice %874 {offsets = [0, 0, 1], sizes = [2, 7, 6], strides = [1, 1, 1]} : vector<2x8x8xf32> to vector<2x7x6xf32>
    %c33 = arith.constant 33 : index
    %983 = memref.load %arg3[%c33] : memref<300xf32, #tpu.memory_space<smem>>
    %984 = vector.broadcast %983 : f32 to vector<2x7x6xf32>
    %985 = arith.mulf %984, %982 : vector<2x7x6xf32>
    %986 = arith.addf %965, %985 : vector<2x7x6xf32>
    %c93 = arith.constant 93 : index
    %987 = memref.load %arg3[%c93] : memref<300xf32, #tpu.memory_space<smem>>
    %988 = vector.broadcast %987 : f32 to vector<2x7x6xf32>
    %989 = arith.mulf %988, %982 : vector<2x7x6xf32>
    %990 = arith.addf %969, %989 : vector<2x7x6xf32>
    %c153 = arith.constant 153 : index
    %991 = memref.load %arg3[%c153] : memref<300xf32, #tpu.memory_space<smem>>
    %992 = vector.broadcast %991 : f32 to vector<2x7x6xf32>
    %993 = arith.mulf %992, %982 : vector<2x7x6xf32>
    %994 = arith.addf %973, %993 : vector<2x7x6xf32>
    %c213 = arith.constant 213 : index
    %995 = memref.load %arg3[%c213] : memref<300xf32, #tpu.memory_space<smem>>
    %996 = vector.broadcast %995 : f32 to vector<2x7x6xf32>
    %997 = arith.mulf %996, %982 : vector<2x7x6xf32>
    %998 = arith.addf %977, %997 : vector<2x7x6xf32>
    %c273 = arith.constant 273 : index
    %999 = memref.load %arg3[%c273] : memref<300xf32, #tpu.memory_space<smem>>
    %1000 = vector.broadcast %999 : f32 to vector<2x7x6xf32>
    %1001 = arith.mulf %1000, %982 : vector<2x7x6xf32>
    %1002 = arith.addf %981, %1001 : vector<2x7x6xf32>
    %1003 = vector.extract_strided_slice %852 {offsets = [0, 0, 2], sizes = [2, 7, 6], strides = [1, 1, 1]} : vector<2x8x8xf32> to vector<2x7x6xf32>
    %c34 = arith.constant 34 : index
    %1004 = memref.load %arg3[%c34] : memref<300xf32, #tpu.memory_space<smem>>
    %1005 = vector.broadcast %1004 : f32 to vector<2x7x6xf32>
    %1006 = arith.mulf %1005, %1003 : vector<2x7x6xf32>
    %1007 = arith.addf %986, %1006 : vector<2x7x6xf32>
    %c94 = arith.constant 94 : index
    %1008 = memref.load %arg3[%c94] : memref<300xf32, #tpu.memory_space<smem>>
    %1009 = vector.broadcast %1008 : f32 to vector<2x7x6xf32>
    %1010 = arith.mulf %1009, %1003 : vector<2x7x6xf32>
    %1011 = arith.addf %990, %1010 : vector<2x7x6xf32>
    %c154 = arith.constant 154 : index
    %1012 = memref.load %arg3[%c154] : memref<300xf32, #tpu.memory_space<smem>>
    %1013 = vector.broadcast %1012 : f32 to vector<2x7x6xf32>
    %1014 = arith.mulf %1013, %1003 : vector<2x7x6xf32>
    %1015 = arith.addf %994, %1014 : vector<2x7x6xf32>
    %c214 = arith.constant 214 : index
    %1016 = memref.load %arg3[%c214] : memref<300xf32, #tpu.memory_space<smem>>
    %1017 = vector.broadcast %1016 : f32 to vector<2x7x6xf32>
    %1018 = arith.mulf %1017, %1003 : vector<2x7x6xf32>
    %1019 = arith.addf %998, %1018 : vector<2x7x6xf32>
    %c274 = arith.constant 274 : index
    %1020 = memref.load %arg3[%c274] : memref<300xf32, #tpu.memory_space<smem>>
    %1021 = vector.broadcast %1020 : f32 to vector<2x7x6xf32>
    %1022 = arith.mulf %1021, %1003 : vector<2x7x6xf32>
    %1023 = arith.addf %1002, %1022 : vector<2x7x6xf32>
    %1024 = vector.extract_strided_slice %896 {offsets = [0, 0, 0], sizes = [2, 7, 6], strides = [1, 1, 1]} : vector<2x8x8xf32> to vector<2x7x6xf32>
    %c35 = arith.constant 35 : index
    %1025 = memref.load %arg3[%c35] : memref<300xf32, #tpu.memory_space<smem>>
    %1026 = vector.broadcast %1025 : f32 to vector<2x7x6xf32>
    %1027 = arith.mulf %1026, %1024 : vector<2x7x6xf32>
    %1028 = arith.addf %1007, %1027 : vector<2x7x6xf32>
    %c95 = arith.constant 95 : index
    %1029 = memref.load %arg3[%c95] : memref<300xf32, #tpu.memory_space<smem>>
    %1030 = vector.broadcast %1029 : f32 to vector<2x7x6xf32>
    %1031 = arith.mulf %1030, %1024 : vector<2x7x6xf32>
    %1032 = arith.addf %1011, %1031 : vector<2x7x6xf32>
    %c155 = arith.constant 155 : index
    %1033 = memref.load %arg3[%c155] : memref<300xf32, #tpu.memory_space<smem>>
    %1034 = vector.broadcast %1033 : f32 to vector<2x7x6xf32>
    %1035 = arith.mulf %1034, %1024 : vector<2x7x6xf32>
    %1036 = arith.addf %1015, %1035 : vector<2x7x6xf32>
    %c215 = arith.constant 215 : index
    %1037 = memref.load %arg3[%c215] : memref<300xf32, #tpu.memory_space<smem>>
    %1038 = vector.broadcast %1037 : f32 to vector<2x7x6xf32>
    %1039 = arith.mulf %1038, %1024 : vector<2x7x6xf32>
    %1040 = arith.addf %1019, %1039 : vector<2x7x6xf32>
    %c275 = arith.constant 275 : index
    %1041 = memref.load %arg3[%c275] : memref<300xf32, #tpu.memory_space<smem>>
    %1042 = vector.broadcast %1041 : f32 to vector<2x7x6xf32>
    %1043 = arith.mulf %1042, %1024 : vector<2x7x6xf32>
    %1044 = arith.addf %1023, %1043 : vector<2x7x6xf32>
    %1045 = vector.extract_strided_slice %918 {offsets = [0, 0, 0], sizes = [2, 7, 6], strides = [1, 1, 1]} : vector<2x8x8xf32> to vector<2x7x6xf32>
    %c36 = arith.constant 36 : index
    %1046 = memref.load %arg3[%c36] : memref<300xf32, #tpu.memory_space<smem>>
    %1047 = vector.broadcast %1046 : f32 to vector<2x7x6xf32>
    %1048 = arith.mulf %1047, %1045 : vector<2x7x6xf32>
    %1049 = arith.addf %1028, %1048 : vector<2x7x6xf32>
    %c96 = arith.constant 96 : index
    %1050 = memref.load %arg3[%c96] : memref<300xf32, #tpu.memory_space<smem>>
    %1051 = vector.broadcast %1050 : f32 to vector<2x7x6xf32>
    %1052 = arith.mulf %1051, %1045 : vector<2x7x6xf32>
    %1053 = arith.addf %1032, %1052 : vector<2x7x6xf32>
    %c156 = arith.constant 156 : index
    %1054 = memref.load %arg3[%c156] : memref<300xf32, #tpu.memory_space<smem>>
    %1055 = vector.broadcast %1054 : f32 to vector<2x7x6xf32>
    %1056 = arith.mulf %1055, %1045 : vector<2x7x6xf32>
    %1057 = arith.addf %1036, %1056 : vector<2x7x6xf32>
    %c216 = arith.constant 216 : index
    %1058 = memref.load %arg3[%c216] : memref<300xf32, #tpu.memory_space<smem>>
    %1059 = vector.broadcast %1058 : f32 to vector<2x7x6xf32>
    %1060 = arith.mulf %1059, %1045 : vector<2x7x6xf32>
    %1061 = arith.addf %1040, %1060 : vector<2x7x6xf32>
    %c276 = arith.constant 276 : index
    %1062 = memref.load %arg3[%c276] : memref<300xf32, #tpu.memory_space<smem>>
    %1063 = vector.broadcast %1062 : f32 to vector<2x7x6xf32>
    %1064 = arith.mulf %1063, %1045 : vector<2x7x6xf32>
    %1065 = arith.addf %1044, %1064 : vector<2x7x6xf32>
    %1066 = vector.extract_strided_slice %896 {offsets = [0, 0, 1], sizes = [2, 7, 6], strides = [1, 1, 1]} : vector<2x8x8xf32> to vector<2x7x6xf32>
    %c37 = arith.constant 37 : index
    %1067 = memref.load %arg3[%c37] : memref<300xf32, #tpu.memory_space<smem>>
    %1068 = vector.broadcast %1067 : f32 to vector<2x7x6xf32>
    %1069 = arith.mulf %1068, %1066 : vector<2x7x6xf32>
    %1070 = arith.addf %1049, %1069 : vector<2x7x6xf32>
    %c97 = arith.constant 97 : index
    %1071 = memref.load %arg3[%c97] : memref<300xf32, #tpu.memory_space<smem>>
    %1072 = vector.broadcast %1071 : f32 to vector<2x7x6xf32>
    %1073 = arith.mulf %1072, %1066 : vector<2x7x6xf32>
    %1074 = arith.addf %1053, %1073 : vector<2x7x6xf32>
    %c157 = arith.constant 157 : index
    %1075 = memref.load %arg3[%c157] : memref<300xf32, #tpu.memory_space<smem>>
    %1076 = vector.broadcast %1075 : f32 to vector<2x7x6xf32>
    %1077 = arith.mulf %1076, %1066 : vector<2x7x6xf32>
    %1078 = arith.addf %1057, %1077 : vector<2x7x6xf32>
    %c217 = arith.constant 217 : index
    %1079 = memref.load %arg3[%c217] : memref<300xf32, #tpu.memory_space<smem>>
    %1080 = vector.broadcast %1079 : f32 to vector<2x7x6xf32>
    %1081 = arith.mulf %1080, %1066 : vector<2x7x6xf32>
    %1082 = arith.addf %1061, %1081 : vector<2x7x6xf32>
    %c277 = arith.constant 277 : index
    %1083 = memref.load %arg3[%c277] : memref<300xf32, #tpu.memory_space<smem>>
    %1084 = vector.broadcast %1083 : f32 to vector<2x7x6xf32>
    %1085 = arith.mulf %1084, %1066 : vector<2x7x6xf32>
    %1086 = arith.addf %1065, %1085 : vector<2x7x6xf32>
    %1087 = vector.extract_strided_slice %918 {offsets = [0, 0, 1], sizes = [2, 7, 6], strides = [1, 1, 1]} : vector<2x8x8xf32> to vector<2x7x6xf32>
    %c38 = arith.constant 38 : index
    %1088 = memref.load %arg3[%c38] : memref<300xf32, #tpu.memory_space<smem>>
    %1089 = vector.broadcast %1088 : f32 to vector<2x7x6xf32>
    %1090 = arith.mulf %1089, %1087 : vector<2x7x6xf32>
    %1091 = arith.addf %1070, %1090 : vector<2x7x6xf32>
    %c98 = arith.constant 98 : index
    %1092 = memref.load %arg3[%c98] : memref<300xf32, #tpu.memory_space<smem>>
    %1093 = vector.broadcast %1092 : f32 to vector<2x7x6xf32>
    %1094 = arith.mulf %1093, %1087 : vector<2x7x6xf32>
    %1095 = arith.addf %1074, %1094 : vector<2x7x6xf32>
    %c158 = arith.constant 158 : index
    %1096 = memref.load %arg3[%c158] : memref<300xf32, #tpu.memory_space<smem>>
    %1097 = vector.broadcast %1096 : f32 to vector<2x7x6xf32>
    %1098 = arith.mulf %1097, %1087 : vector<2x7x6xf32>
    %1099 = arith.addf %1078, %1098 : vector<2x7x6xf32>
    %c218 = arith.constant 218 : index
    %1100 = memref.load %arg3[%c218] : memref<300xf32, #tpu.memory_space<smem>>
    %1101 = vector.broadcast %1100 : f32 to vector<2x7x6xf32>
    %1102 = arith.mulf %1101, %1087 : vector<2x7x6xf32>
    %1103 = arith.addf %1082, %1102 : vector<2x7x6xf32>
    %c278 = arith.constant 278 : index
    %1104 = memref.load %arg3[%c278] : memref<300xf32, #tpu.memory_space<smem>>
    %1105 = vector.broadcast %1104 : f32 to vector<2x7x6xf32>
    %1106 = arith.mulf %1105, %1087 : vector<2x7x6xf32>
    %1107 = arith.addf %1086, %1106 : vector<2x7x6xf32>
    %1108 = vector.extract_strided_slice %896 {offsets = [0, 0, 2], sizes = [2, 7, 6], strides = [1, 1, 1]} : vector<2x8x8xf32> to vector<2x7x6xf32>
    %c39 = arith.constant 39 : index
    %1109 = memref.load %arg3[%c39] : memref<300xf32, #tpu.memory_space<smem>>
    %1110 = vector.broadcast %1109 : f32 to vector<2x7x6xf32>
    %1111 = arith.mulf %1110, %1108 : vector<2x7x6xf32>
    %1112 = arith.addf %1091, %1111 : vector<2x7x6xf32>
    %c99 = arith.constant 99 : index
    %1113 = memref.load %arg3[%c99] : memref<300xf32, #tpu.memory_space<smem>>
    %1114 = vector.broadcast %1113 : f32 to vector<2x7x6xf32>
    %1115 = arith.mulf %1114, %1108 : vector<2x7x6xf32>
    %1116 = arith.addf %1095, %1115 : vector<2x7x6xf32>
    %c159 = arith.constant 159 : index
    %1117 = memref.load %arg3[%c159] : memref<300xf32, #tpu.memory_space<smem>>
    %1118 = vector.broadcast %1117 : f32 to vector<2x7x6xf32>
    %1119 = arith.mulf %1118, %1108 : vector<2x7x6xf32>
    %1120 = arith.addf %1099, %1119 : vector<2x7x6xf32>
    %c219 = arith.constant 219 : index
    %1121 = memref.load %arg3[%c219] : memref<300xf32, #tpu.memory_space<smem>>
    %1122 = vector.broadcast %1121 : f32 to vector<2x7x6xf32>
    %1123 = arith.mulf %1122, %1108 : vector<2x7x6xf32>
    %1124 = arith.addf %1103, %1123 : vector<2x7x6xf32>
    %c279 = arith.constant 279 : index
    %1125 = memref.load %arg3[%c279] : memref<300xf32, #tpu.memory_space<smem>>
    %1126 = vector.broadcast %1125 : f32 to vector<2x7x6xf32>
    %1127 = arith.mulf %1126, %1108 : vector<2x7x6xf32>
    %1128 = arith.addf %1107, %1127 : vector<2x7x6xf32>
    %1129 = vector.extract_strided_slice %852 {offsets = [0, 1, 0], sizes = [2, 7, 6], strides = [1, 1, 1]} : vector<2x8x8xf32> to vector<2x7x6xf32>
    %c40 = arith.constant 40 : index
    %1130 = memref.load %arg3[%c40] : memref<300xf32, #tpu.memory_space<smem>>
    %1131 = vector.broadcast %1130 : f32 to vector<2x7x6xf32>
    %1132 = arith.mulf %1131, %1129 : vector<2x7x6xf32>
    %1133 = arith.addf %1112, %1132 : vector<2x7x6xf32>
    %c100 = arith.constant 100 : index
    %1134 = memref.load %arg3[%c100] : memref<300xf32, #tpu.memory_space<smem>>
    %1135 = vector.broadcast %1134 : f32 to vector<2x7x6xf32>
    %1136 = arith.mulf %1135, %1129 : vector<2x7x6xf32>
    %1137 = arith.addf %1116, %1136 : vector<2x7x6xf32>
    %c160 = arith.constant 160 : index
    %1138 = memref.load %arg3[%c160] : memref<300xf32, #tpu.memory_space<smem>>
    %1139 = vector.broadcast %1138 : f32 to vector<2x7x6xf32>
    %1140 = arith.mulf %1139, %1129 : vector<2x7x6xf32>
    %1141 = arith.addf %1120, %1140 : vector<2x7x6xf32>
    %c220 = arith.constant 220 : index
    %1142 = memref.load %arg3[%c220] : memref<300xf32, #tpu.memory_space<smem>>
    %1143 = vector.broadcast %1142 : f32 to vector<2x7x6xf32>
    %1144 = arith.mulf %1143, %1129 : vector<2x7x6xf32>
    %1145 = arith.addf %1124, %1144 : vector<2x7x6xf32>
    %c280 = arith.constant 280 : index
    %1146 = memref.load %arg3[%c280] : memref<300xf32, #tpu.memory_space<smem>>
    %1147 = vector.broadcast %1146 : f32 to vector<2x7x6xf32>
    %1148 = arith.mulf %1147, %1129 : vector<2x7x6xf32>
    %1149 = arith.addf %1128, %1148 : vector<2x7x6xf32>
    %1150 = vector.extract_strided_slice %874 {offsets = [0, 1, 0], sizes = [2, 7, 6], strides = [1, 1, 1]} : vector<2x8x8xf32> to vector<2x7x6xf32>
    %c41 = arith.constant 41 : index
    %1151 = memref.load %arg3[%c41] : memref<300xf32, #tpu.memory_space<smem>>
    %1152 = vector.broadcast %1151 : f32 to vector<2x7x6xf32>
    %1153 = arith.mulf %1152, %1150 : vector<2x7x6xf32>
    %1154 = arith.addf %1133, %1153 : vector<2x7x6xf32>
    %c101 = arith.constant 101 : index
    %1155 = memref.load %arg3[%c101] : memref<300xf32, #tpu.memory_space<smem>>
    %1156 = vector.broadcast %1155 : f32 to vector<2x7x6xf32>
    %1157 = arith.mulf %1156, %1150 : vector<2x7x6xf32>
    %1158 = arith.addf %1137, %1157 : vector<2x7x6xf32>
    %c161 = arith.constant 161 : index
    %1159 = memref.load %arg3[%c161] : memref<300xf32, #tpu.memory_space<smem>>
    %1160 = vector.broadcast %1159 : f32 to vector<2x7x6xf32>
    %1161 = arith.mulf %1160, %1150 : vector<2x7x6xf32>
    %1162 = arith.addf %1141, %1161 : vector<2x7x6xf32>
    %c221 = arith.constant 221 : index
    %1163 = memref.load %arg3[%c221] : memref<300xf32, #tpu.memory_space<smem>>
    %1164 = vector.broadcast %1163 : f32 to vector<2x7x6xf32>
    %1165 = arith.mulf %1164, %1150 : vector<2x7x6xf32>
    %1166 = arith.addf %1145, %1165 : vector<2x7x6xf32>
    %c281 = arith.constant 281 : index
    %1167 = memref.load %arg3[%c281] : memref<300xf32, #tpu.memory_space<smem>>
    %1168 = vector.broadcast %1167 : f32 to vector<2x7x6xf32>
    %1169 = arith.mulf %1168, %1150 : vector<2x7x6xf32>
    %1170 = arith.addf %1149, %1169 : vector<2x7x6xf32>
    %1171 = vector.extract_strided_slice %852 {offsets = [0, 1, 1], sizes = [2, 7, 6], strides = [1, 1, 1]} : vector<2x8x8xf32> to vector<2x7x6xf32>
    %c42 = arith.constant 42 : index
    %1172 = memref.load %arg3[%c42] : memref<300xf32, #tpu.memory_space<smem>>
    %1173 = vector.broadcast %1172 : f32 to vector<2x7x6xf32>
    %1174 = arith.mulf %1173, %1171 : vector<2x7x6xf32>
    %1175 = arith.addf %1154, %1174 : vector<2x7x6xf32>
    %c102 = arith.constant 102 : index
    %1176 = memref.load %arg3[%c102] : memref<300xf32, #tpu.memory_space<smem>>
    %1177 = vector.broadcast %1176 : f32 to vector<2x7x6xf32>
    %1178 = arith.mulf %1177, %1171 : vector<2x7x6xf32>
    %1179 = arith.addf %1158, %1178 : vector<2x7x6xf32>
    %c162 = arith.constant 162 : index
    %1180 = memref.load %arg3[%c162] : memref<300xf32, #tpu.memory_space<smem>>
    %1181 = vector.broadcast %1180 : f32 to vector<2x7x6xf32>
    %1182 = arith.mulf %1181, %1171 : vector<2x7x6xf32>
    %1183 = arith.addf %1162, %1182 : vector<2x7x6xf32>
    %c222 = arith.constant 222 : index
    %1184 = memref.load %arg3[%c222] : memref<300xf32, #tpu.memory_space<smem>>
    %1185 = vector.broadcast %1184 : f32 to vector<2x7x6xf32>
    %1186 = arith.mulf %1185, %1171 : vector<2x7x6xf32>
    %1187 = arith.addf %1166, %1186 : vector<2x7x6xf32>
    %c282 = arith.constant 282 : index
    %1188 = memref.load %arg3[%c282] : memref<300xf32, #tpu.memory_space<smem>>
    %1189 = vector.broadcast %1188 : f32 to vector<2x7x6xf32>
    %1190 = arith.mulf %1189, %1171 : vector<2x7x6xf32>
    %1191 = arith.addf %1170, %1190 : vector<2x7x6xf32>
    %1192 = vector.extract_strided_slice %874 {offsets = [0, 1, 1], sizes = [2, 7, 6], strides = [1, 1, 1]} : vector<2x8x8xf32> to vector<2x7x6xf32>
    %c43 = arith.constant 43 : index
    %1193 = memref.load %arg3[%c43] : memref<300xf32, #tpu.memory_space<smem>>
    %1194 = vector.broadcast %1193 : f32 to vector<2x7x6xf32>
    %1195 = arith.mulf %1194, %1192 : vector<2x7x6xf32>
    %1196 = arith.addf %1175, %1195 : vector<2x7x6xf32>
    %c103 = arith.constant 103 : index
    %1197 = memref.load %arg3[%c103] : memref<300xf32, #tpu.memory_space<smem>>
    %1198 = vector.broadcast %1197 : f32 to vector<2x7x6xf32>
    %1199 = arith.mulf %1198, %1192 : vector<2x7x6xf32>
    %1200 = arith.addf %1179, %1199 : vector<2x7x6xf32>
    %c163 = arith.constant 163 : index
    %1201 = memref.load %arg3[%c163] : memref<300xf32, #tpu.memory_space<smem>>
    %1202 = vector.broadcast %1201 : f32 to vector<2x7x6xf32>
    %1203 = arith.mulf %1202, %1192 : vector<2x7x6xf32>
    %1204 = arith.addf %1183, %1203 : vector<2x7x6xf32>
    %c223 = arith.constant 223 : index
    %1205 = memref.load %arg3[%c223] : memref<300xf32, #tpu.memory_space<smem>>
    %1206 = vector.broadcast %1205 : f32 to vector<2x7x6xf32>
    %1207 = arith.mulf %1206, %1192 : vector<2x7x6xf32>
    %1208 = arith.addf %1187, %1207 : vector<2x7x6xf32>
    %c283 = arith.constant 283 : index
    %1209 = memref.load %arg3[%c283] : memref<300xf32, #tpu.memory_space<smem>>
    %1210 = vector.broadcast %1209 : f32 to vector<2x7x6xf32>
    %1211 = arith.mulf %1210, %1192 : vector<2x7x6xf32>
    %1212 = arith.addf %1191, %1211 : vector<2x7x6xf32>
    %1213 = vector.extract_strided_slice %852 {offsets = [0, 1, 2], sizes = [2, 7, 6], strides = [1, 1, 1]} : vector<2x8x8xf32> to vector<2x7x6xf32>
    %c44 = arith.constant 44 : index
    %1214 = memref.load %arg3[%c44] : memref<300xf32, #tpu.memory_space<smem>>
    %1215 = vector.broadcast %1214 : f32 to vector<2x7x6xf32>
    %1216 = arith.mulf %1215, %1213 : vector<2x7x6xf32>
    %1217 = arith.addf %1196, %1216 : vector<2x7x6xf32>
    %c104 = arith.constant 104 : index
    %1218 = memref.load %arg3[%c104] : memref<300xf32, #tpu.memory_space<smem>>
    %1219 = vector.broadcast %1218 : f32 to vector<2x7x6xf32>
    %1220 = arith.mulf %1219, %1213 : vector<2x7x6xf32>
    %1221 = arith.addf %1200, %1220 : vector<2x7x6xf32>
    %c164 = arith.constant 164 : index
    %1222 = memref.load %arg3[%c164] : memref<300xf32, #tpu.memory_space<smem>>
    %1223 = vector.broadcast %1222 : f32 to vector<2x7x6xf32>
    %1224 = arith.mulf %1223, %1213 : vector<2x7x6xf32>
    %1225 = arith.addf %1204, %1224 : vector<2x7x6xf32>
    %c224 = arith.constant 224 : index
    %1226 = memref.load %arg3[%c224] : memref<300xf32, #tpu.memory_space<smem>>
    %1227 = vector.broadcast %1226 : f32 to vector<2x7x6xf32>
    %1228 = arith.mulf %1227, %1213 : vector<2x7x6xf32>
    %1229 = arith.addf %1208, %1228 : vector<2x7x6xf32>
    %c284 = arith.constant 284 : index
    %1230 = memref.load %arg3[%c284] : memref<300xf32, #tpu.memory_space<smem>>
    %1231 = vector.broadcast %1230 : f32 to vector<2x7x6xf32>
    %1232 = arith.mulf %1231, %1213 : vector<2x7x6xf32>
    %1233 = arith.addf %1212, %1232 : vector<2x7x6xf32>
    %c3_212 = arith.constant 3 : index
    %1234 = memref.load %arg2[%c3_212] : memref<4xf32, #tpu.memory_space<smem>>
    %c3_213 = arith.constant 3 : index
    %1235 = memref.load %arg1[%c3_213] : memref<16xf32, #tpu.memory_space<smem>>
    %c7_214 = arith.constant 7 : index
    %1236 = memref.load %arg1[%c7_214] : memref<16xf32, #tpu.memory_space<smem>>
    %c11_215 = arith.constant 11 : index
    %1237 = memref.load %arg1[%c11_215] : memref<16xf32, #tpu.memory_space<smem>>
    %c15_216 = arith.constant 15 : index
    %1238 = memref.load %arg1[%c15_216] : memref<16xf32, #tpu.memory_space<smem>>
    %c0_217 = arith.constant 0 : index
    %c0_218 = arith.constant 0 : index
    %c0_219 = arith.constant 0 : index
    %c0_220 = arith.constant 0 : index
    %1239 = vector.load %arg0[%c0_217, %c0_218, %c0_219, %c0_220] : memref<16x2x8x8xf32, #tpu.memory_space<vmem>>, vector<1x2x8x8xf32>
    %1240 = vector.shape_cast %1239 : vector<1x2x8x8xf32> to vector<2x8x8xf32>
    %1241 = vector.broadcast %1235 : f32 to vector<2x8x8xf32>
    %1242 = arith.mulf %1241, %1240 : vector<2x8x8xf32>
    %c1_221 = arith.constant 1 : index
    %c0_222 = arith.constant 0 : index
    %c0_223 = arith.constant 0 : index
    %c0_224 = arith.constant 0 : index
    %1243 = vector.load %arg0[%c1_221, %c0_222, %c0_223, %c0_224] : memref<16x2x8x8xf32, #tpu.memory_space<vmem>>, vector<1x2x8x8xf32>
    %1244 = vector.shape_cast %1243 : vector<1x2x8x8xf32> to vector<2x8x8xf32>
    %1245 = vector.broadcast %1236 : f32 to vector<2x8x8xf32>
    %1246 = arith.mulf %1245, %1244 : vector<2x8x8xf32>
    %1247 = arith.addf %1242, %1246 : vector<2x8x8xf32>
    %c2_225 = arith.constant 2 : index
    %c0_226 = arith.constant 0 : index
    %c0_227 = arith.constant 0 : index
    %c0_228 = arith.constant 0 : index
    %1248 = vector.load %arg0[%c2_225, %c0_226, %c0_227, %c0_228] : memref<16x2x8x8xf32, #tpu.memory_space<vmem>>, vector<1x2x8x8xf32>
    %1249 = vector.shape_cast %1248 : vector<1x2x8x8xf32> to vector<2x8x8xf32>
    %1250 = vector.broadcast %1237 : f32 to vector<2x8x8xf32>
    %1251 = arith.mulf %1250, %1249 : vector<2x8x8xf32>
    %1252 = arith.addf %1247, %1251 : vector<2x8x8xf32>
    %c3_229 = arith.constant 3 : index
    %c0_230 = arith.constant 0 : index
    %c0_231 = arith.constant 0 : index
    %c0_232 = arith.constant 0 : index
    %1253 = vector.load %arg0[%c3_229, %c0_230, %c0_231, %c0_232] : memref<16x2x8x8xf32, #tpu.memory_space<vmem>>, vector<1x2x8x8xf32>
    %1254 = vector.shape_cast %1253 : vector<1x2x8x8xf32> to vector<2x8x8xf32>
    %1255 = vector.broadcast %1238 : f32 to vector<2x8x8xf32>
    %1256 = arith.mulf %1255, %1254 : vector<2x8x8xf32>
    %1257 = arith.addf %1252, %1256 : vector<2x8x8xf32>
    %1258 = vector.broadcast %1234 : f32 to vector<2x8x8xf32>
    %1259 = arith.addf %1257, %1258 : vector<2x8x8xf32>
    %1260 = math.tanh %1259 : vector<2x8x8xf32>
    %c4_233 = arith.constant 4 : index
    %c0_234 = arith.constant 0 : index
    %c0_235 = arith.constant 0 : index
    %c0_236 = arith.constant 0 : index
    %1261 = vector.load %arg0[%c4_233, %c0_234, %c0_235, %c0_236] : memref<16x2x8x8xf32, #tpu.memory_space<vmem>>, vector<1x2x8x8xf32>
    %1262 = vector.shape_cast %1261 : vector<1x2x8x8xf32> to vector<2x8x8xf32>
    %1263 = vector.broadcast %1235 : f32 to vector<2x8x8xf32>
    %1264 = arith.mulf %1263, %1262 : vector<2x8x8xf32>
    %c5_237 = arith.constant 5 : index
    %c0_238 = arith.constant 0 : index
    %c0_239 = arith.constant 0 : index
    %c0_240 = arith.constant 0 : index
    %1265 = vector.load %arg0[%c5_237, %c0_238, %c0_239, %c0_240] : memref<16x2x8x8xf32, #tpu.memory_space<vmem>>, vector<1x2x8x8xf32>
    %1266 = vector.shape_cast %1265 : vector<1x2x8x8xf32> to vector<2x8x8xf32>
    %1267 = vector.broadcast %1236 : f32 to vector<2x8x8xf32>
    %1268 = arith.mulf %1267, %1266 : vector<2x8x8xf32>
    %1269 = arith.addf %1264, %1268 : vector<2x8x8xf32>
    %c6_241 = arith.constant 6 : index
    %c0_242 = arith.constant 0 : index
    %c0_243 = arith.constant 0 : index
    %c0_244 = arith.constant 0 : index
    %1270 = vector.load %arg0[%c6_241, %c0_242, %c0_243, %c0_244] : memref<16x2x8x8xf32, #tpu.memory_space<vmem>>, vector<1x2x8x8xf32>
    %1271 = vector.shape_cast %1270 : vector<1x2x8x8xf32> to vector<2x8x8xf32>
    %1272 = vector.broadcast %1237 : f32 to vector<2x8x8xf32>
    %1273 = arith.mulf %1272, %1271 : vector<2x8x8xf32>
    %1274 = arith.addf %1269, %1273 : vector<2x8x8xf32>
    %c7_245 = arith.constant 7 : index
    %c0_246 = arith.constant 0 : index
    %c0_247 = arith.constant 0 : index
    %c0_248 = arith.constant 0 : index
    %1275 = vector.load %arg0[%c7_245, %c0_246, %c0_247, %c0_248] : memref<16x2x8x8xf32, #tpu.memory_space<vmem>>, vector<1x2x8x8xf32>
    %1276 = vector.shape_cast %1275 : vector<1x2x8x8xf32> to vector<2x8x8xf32>
    %1277 = vector.broadcast %1238 : f32 to vector<2x8x8xf32>
    %1278 = arith.mulf %1277, %1276 : vector<2x8x8xf32>
    %1279 = arith.addf %1274, %1278 : vector<2x8x8xf32>
    %1280 = vector.broadcast %1234 : f32 to vector<2x8x8xf32>
    %1281 = arith.addf %1279, %1280 : vector<2x8x8xf32>
    %1282 = math.tanh %1281 : vector<2x8x8xf32>
    %c8_249 = arith.constant 8 : index
    %c0_250 = arith.constant 0 : index
    %c0_251 = arith.constant 0 : index
    %c0_252 = arith.constant 0 : index
    %1283 = vector.load %arg0[%c8_249, %c0_250, %c0_251, %c0_252] : memref<16x2x8x8xf32, #tpu.memory_space<vmem>>, vector<1x2x8x8xf32>
    %1284 = vector.shape_cast %1283 : vector<1x2x8x8xf32> to vector<2x8x8xf32>
    %1285 = vector.broadcast %1235 : f32 to vector<2x8x8xf32>
    %1286 = arith.mulf %1285, %1284 : vector<2x8x8xf32>
    %c9_253 = arith.constant 9 : index
    %c0_254 = arith.constant 0 : index
    %c0_255 = arith.constant 0 : index
    %c0_256 = arith.constant 0 : index
    %1287 = vector.load %arg0[%c9_253, %c0_254, %c0_255, %c0_256] : memref<16x2x8x8xf32, #tpu.memory_space<vmem>>, vector<1x2x8x8xf32>
    %1288 = vector.shape_cast %1287 : vector<1x2x8x8xf32> to vector<2x8x8xf32>
    %1289 = vector.broadcast %1236 : f32 to vector<2x8x8xf32>
    %1290 = arith.mulf %1289, %1288 : vector<2x8x8xf32>
    %1291 = arith.addf %1286, %1290 : vector<2x8x8xf32>
    %c10_257 = arith.constant 10 : index
    %c0_258 = arith.constant 0 : index
    %c0_259 = arith.constant 0 : index
    %c0_260 = arith.constant 0 : index
    %1292 = vector.load %arg0[%c10_257, %c0_258, %c0_259, %c0_260] : memref<16x2x8x8xf32, #tpu.memory_space<vmem>>, vector<1x2x8x8xf32>
    %1293 = vector.shape_cast %1292 : vector<1x2x8x8xf32> to vector<2x8x8xf32>
    %1294 = vector.broadcast %1237 : f32 to vector<2x8x8xf32>
    %1295 = arith.mulf %1294, %1293 : vector<2x8x8xf32>
    %1296 = arith.addf %1291, %1295 : vector<2x8x8xf32>
    %c11_261 = arith.constant 11 : index
    %c0_262 = arith.constant 0 : index
    %c0_263 = arith.constant 0 : index
    %c0_264 = arith.constant 0 : index
    %1297 = vector.load %arg0[%c11_261, %c0_262, %c0_263, %c0_264] : memref<16x2x8x8xf32, #tpu.memory_space<vmem>>, vector<1x2x8x8xf32>
    %1298 = vector.shape_cast %1297 : vector<1x2x8x8xf32> to vector<2x8x8xf32>
    %1299 = vector.broadcast %1238 : f32 to vector<2x8x8xf32>
    %1300 = arith.mulf %1299, %1298 : vector<2x8x8xf32>
    %1301 = arith.addf %1296, %1300 : vector<2x8x8xf32>
    %1302 = vector.broadcast %1234 : f32 to vector<2x8x8xf32>
    %1303 = arith.addf %1301, %1302 : vector<2x8x8xf32>
    %1304 = math.tanh %1303 : vector<2x8x8xf32>
    %c12_265 = arith.constant 12 : index
    %c0_266 = arith.constant 0 : index
    %c0_267 = arith.constant 0 : index
    %c0_268 = arith.constant 0 : index
    %1305 = vector.load %arg0[%c12_265, %c0_266, %c0_267, %c0_268] : memref<16x2x8x8xf32, #tpu.memory_space<vmem>>, vector<1x2x8x8xf32>
    %1306 = vector.shape_cast %1305 : vector<1x2x8x8xf32> to vector<2x8x8xf32>
    %1307 = vector.broadcast %1235 : f32 to vector<2x8x8xf32>
    %1308 = arith.mulf %1307, %1306 : vector<2x8x8xf32>
    %c13_269 = arith.constant 13 : index
    %c0_270 = arith.constant 0 : index
    %c0_271 = arith.constant 0 : index
    %c0_272 = arith.constant 0 : index
    %1309 = vector.load %arg0[%c13_269, %c0_270, %c0_271, %c0_272] : memref<16x2x8x8xf32, #tpu.memory_space<vmem>>, vector<1x2x8x8xf32>
    %1310 = vector.shape_cast %1309 : vector<1x2x8x8xf32> to vector<2x8x8xf32>
    %1311 = vector.broadcast %1236 : f32 to vector<2x8x8xf32>
    %1312 = arith.mulf %1311, %1310 : vector<2x8x8xf32>
    %1313 = arith.addf %1308, %1312 : vector<2x8x8xf32>
    %c14_273 = arith.constant 14 : index
    %c0_274 = arith.constant 0 : index
    %c0_275 = arith.constant 0 : index
    %c0_276 = arith.constant 0 : index
    %1314 = vector.load %arg0[%c14_273, %c0_274, %c0_275, %c0_276] : memref<16x2x8x8xf32, #tpu.memory_space<vmem>>, vector<1x2x8x8xf32>
    %1315 = vector.shape_cast %1314 : vector<1x2x8x8xf32> to vector<2x8x8xf32>
    %1316 = vector.broadcast %1237 : f32 to vector<2x8x8xf32>
    %1317 = arith.mulf %1316, %1315 : vector<2x8x8xf32>
    %1318 = arith.addf %1313, %1317 : vector<2x8x8xf32>
    %c15_277 = arith.constant 15 : index
    %c0_278 = arith.constant 0 : index
    %c0_279 = arith.constant 0 : index
    %c0_280 = arith.constant 0 : index
    %1319 = vector.load %arg0[%c15_277, %c0_278, %c0_279, %c0_280] : memref<16x2x8x8xf32, #tpu.memory_space<vmem>>, vector<1x2x8x8xf32>
    %1320 = vector.shape_cast %1319 : vector<1x2x8x8xf32> to vector<2x8x8xf32>
    %1321 = vector.broadcast %1238 : f32 to vector<2x8x8xf32>
    %1322 = arith.mulf %1321, %1320 : vector<2x8x8xf32>
    %1323 = arith.addf %1318, %1322 : vector<2x8x8xf32>
    %1324 = vector.broadcast %1234 : f32 to vector<2x8x8xf32>
    %1325 = arith.addf %1323, %1324 : vector<2x8x8xf32>
    %1326 = math.tanh %1325 : vector<2x8x8xf32>
    %1327 = vector.extract_strided_slice %1260 {offsets = [0, 0, 0], sizes = [2, 7, 6], strides = [1, 1, 1]} : vector<2x8x8xf32> to vector<2x7x6xf32>
    %c45 = arith.constant 45 : index
    %1328 = memref.load %arg3[%c45] : memref<300xf32, #tpu.memory_space<smem>>
    %1329 = vector.broadcast %1328 : f32 to vector<2x7x6xf32>
    %1330 = arith.mulf %1329, %1327 : vector<2x7x6xf32>
    %1331 = arith.addf %1217, %1330 : vector<2x7x6xf32>
    %c105 = arith.constant 105 : index
    %1332 = memref.load %arg3[%c105] : memref<300xf32, #tpu.memory_space<smem>>
    %1333 = vector.broadcast %1332 : f32 to vector<2x7x6xf32>
    %1334 = arith.mulf %1333, %1327 : vector<2x7x6xf32>
    %1335 = arith.addf %1221, %1334 : vector<2x7x6xf32>
    %c165 = arith.constant 165 : index
    %1336 = memref.load %arg3[%c165] : memref<300xf32, #tpu.memory_space<smem>>
    %1337 = vector.broadcast %1336 : f32 to vector<2x7x6xf32>
    %1338 = arith.mulf %1337, %1327 : vector<2x7x6xf32>
    %1339 = arith.addf %1225, %1338 : vector<2x7x6xf32>
    %c225 = arith.constant 225 : index
    %1340 = memref.load %arg3[%c225] : memref<300xf32, #tpu.memory_space<smem>>
    %1341 = vector.broadcast %1340 : f32 to vector<2x7x6xf32>
    %1342 = arith.mulf %1341, %1327 : vector<2x7x6xf32>
    %1343 = arith.addf %1229, %1342 : vector<2x7x6xf32>
    %c285 = arith.constant 285 : index
    %1344 = memref.load %arg3[%c285] : memref<300xf32, #tpu.memory_space<smem>>
    %1345 = vector.broadcast %1344 : f32 to vector<2x7x6xf32>
    %1346 = arith.mulf %1345, %1327 : vector<2x7x6xf32>
    %1347 = arith.addf %1233, %1346 : vector<2x7x6xf32>
    %1348 = vector.extract_strided_slice %1282 {offsets = [0, 0, 0], sizes = [2, 7, 6], strides = [1, 1, 1]} : vector<2x8x8xf32> to vector<2x7x6xf32>
    %c46 = arith.constant 46 : index
    %1349 = memref.load %arg3[%c46] : memref<300xf32, #tpu.memory_space<smem>>
    %1350 = vector.broadcast %1349 : f32 to vector<2x7x6xf32>
    %1351 = arith.mulf %1350, %1348 : vector<2x7x6xf32>
    %1352 = arith.addf %1331, %1351 : vector<2x7x6xf32>
    %c106 = arith.constant 106 : index
    %1353 = memref.load %arg3[%c106] : memref<300xf32, #tpu.memory_space<smem>>
    %1354 = vector.broadcast %1353 : f32 to vector<2x7x6xf32>
    %1355 = arith.mulf %1354, %1348 : vector<2x7x6xf32>
    %1356 = arith.addf %1335, %1355 : vector<2x7x6xf32>
    %c166 = arith.constant 166 : index
    %1357 = memref.load %arg3[%c166] : memref<300xf32, #tpu.memory_space<smem>>
    %1358 = vector.broadcast %1357 : f32 to vector<2x7x6xf32>
    %1359 = arith.mulf %1358, %1348 : vector<2x7x6xf32>
    %1360 = arith.addf %1339, %1359 : vector<2x7x6xf32>
    %c226 = arith.constant 226 : index
    %1361 = memref.load %arg3[%c226] : memref<300xf32, #tpu.memory_space<smem>>
    %1362 = vector.broadcast %1361 : f32 to vector<2x7x6xf32>
    %1363 = arith.mulf %1362, %1348 : vector<2x7x6xf32>
    %1364 = arith.addf %1343, %1363 : vector<2x7x6xf32>
    %c286 = arith.constant 286 : index
    %1365 = memref.load %arg3[%c286] : memref<300xf32, #tpu.memory_space<smem>>
    %1366 = vector.broadcast %1365 : f32 to vector<2x7x6xf32>
    %1367 = arith.mulf %1366, %1348 : vector<2x7x6xf32>
    %1368 = arith.addf %1347, %1367 : vector<2x7x6xf32>
    %1369 = vector.extract_strided_slice %1260 {offsets = [0, 0, 1], sizes = [2, 7, 6], strides = [1, 1, 1]} : vector<2x8x8xf32> to vector<2x7x6xf32>
    %c47 = arith.constant 47 : index
    %1370 = memref.load %arg3[%c47] : memref<300xf32, #tpu.memory_space<smem>>
    %1371 = vector.broadcast %1370 : f32 to vector<2x7x6xf32>
    %1372 = arith.mulf %1371, %1369 : vector<2x7x6xf32>
    %1373 = arith.addf %1352, %1372 : vector<2x7x6xf32>
    %c107 = arith.constant 107 : index
    %1374 = memref.load %arg3[%c107] : memref<300xf32, #tpu.memory_space<smem>>
    %1375 = vector.broadcast %1374 : f32 to vector<2x7x6xf32>
    %1376 = arith.mulf %1375, %1369 : vector<2x7x6xf32>
    %1377 = arith.addf %1356, %1376 : vector<2x7x6xf32>
    %c167 = arith.constant 167 : index
    %1378 = memref.load %arg3[%c167] : memref<300xf32, #tpu.memory_space<smem>>
    %1379 = vector.broadcast %1378 : f32 to vector<2x7x6xf32>
    %1380 = arith.mulf %1379, %1369 : vector<2x7x6xf32>
    %1381 = arith.addf %1360, %1380 : vector<2x7x6xf32>
    %c227 = arith.constant 227 : index
    %1382 = memref.load %arg3[%c227] : memref<300xf32, #tpu.memory_space<smem>>
    %1383 = vector.broadcast %1382 : f32 to vector<2x7x6xf32>
    %1384 = arith.mulf %1383, %1369 : vector<2x7x6xf32>
    %1385 = arith.addf %1364, %1384 : vector<2x7x6xf32>
    %c287 = arith.constant 287 : index
    %1386 = memref.load %arg3[%c287] : memref<300xf32, #tpu.memory_space<smem>>
    %1387 = vector.broadcast %1386 : f32 to vector<2x7x6xf32>
    %1388 = arith.mulf %1387, %1369 : vector<2x7x6xf32>
    %1389 = arith.addf %1368, %1388 : vector<2x7x6xf32>
    %1390 = vector.extract_strided_slice %1282 {offsets = [0, 0, 1], sizes = [2, 7, 6], strides = [1, 1, 1]} : vector<2x8x8xf32> to vector<2x7x6xf32>
    %c48 = arith.constant 48 : index
    %1391 = memref.load %arg3[%c48] : memref<300xf32, #tpu.memory_space<smem>>
    %1392 = vector.broadcast %1391 : f32 to vector<2x7x6xf32>
    %1393 = arith.mulf %1392, %1390 : vector<2x7x6xf32>
    %1394 = arith.addf %1373, %1393 : vector<2x7x6xf32>
    %c108 = arith.constant 108 : index
    %1395 = memref.load %arg3[%c108] : memref<300xf32, #tpu.memory_space<smem>>
    %1396 = vector.broadcast %1395 : f32 to vector<2x7x6xf32>
    %1397 = arith.mulf %1396, %1390 : vector<2x7x6xf32>
    %1398 = arith.addf %1377, %1397 : vector<2x7x6xf32>
    %c168 = arith.constant 168 : index
    %1399 = memref.load %arg3[%c168] : memref<300xf32, #tpu.memory_space<smem>>
    %1400 = vector.broadcast %1399 : f32 to vector<2x7x6xf32>
    %1401 = arith.mulf %1400, %1390 : vector<2x7x6xf32>
    %1402 = arith.addf %1381, %1401 : vector<2x7x6xf32>
    %c228 = arith.constant 228 : index
    %1403 = memref.load %arg3[%c228] : memref<300xf32, #tpu.memory_space<smem>>
    %1404 = vector.broadcast %1403 : f32 to vector<2x7x6xf32>
    %1405 = arith.mulf %1404, %1390 : vector<2x7x6xf32>
    %1406 = arith.addf %1385, %1405 : vector<2x7x6xf32>
    %c288 = arith.constant 288 : index
    %1407 = memref.load %arg3[%c288] : memref<300xf32, #tpu.memory_space<smem>>
    %1408 = vector.broadcast %1407 : f32 to vector<2x7x6xf32>
    %1409 = arith.mulf %1408, %1390 : vector<2x7x6xf32>
    %1410 = arith.addf %1389, %1409 : vector<2x7x6xf32>
    %1411 = vector.extract_strided_slice %1260 {offsets = [0, 0, 2], sizes = [2, 7, 6], strides = [1, 1, 1]} : vector<2x8x8xf32> to vector<2x7x6xf32>
    %c49 = arith.constant 49 : index
    %1412 = memref.load %arg3[%c49] : memref<300xf32, #tpu.memory_space<smem>>
    %1413 = vector.broadcast %1412 : f32 to vector<2x7x6xf32>
    %1414 = arith.mulf %1413, %1411 : vector<2x7x6xf32>
    %1415 = arith.addf %1394, %1414 : vector<2x7x6xf32>
    %c109 = arith.constant 109 : index
    %1416 = memref.load %arg3[%c109] : memref<300xf32, #tpu.memory_space<smem>>
    %1417 = vector.broadcast %1416 : f32 to vector<2x7x6xf32>
    %1418 = arith.mulf %1417, %1411 : vector<2x7x6xf32>
    %1419 = arith.addf %1398, %1418 : vector<2x7x6xf32>
    %c169 = arith.constant 169 : index
    %1420 = memref.load %arg3[%c169] : memref<300xf32, #tpu.memory_space<smem>>
    %1421 = vector.broadcast %1420 : f32 to vector<2x7x6xf32>
    %1422 = arith.mulf %1421, %1411 : vector<2x7x6xf32>
    %1423 = arith.addf %1402, %1422 : vector<2x7x6xf32>
    %c229 = arith.constant 229 : index
    %1424 = memref.load %arg3[%c229] : memref<300xf32, #tpu.memory_space<smem>>
    %1425 = vector.broadcast %1424 : f32 to vector<2x7x6xf32>
    %1426 = arith.mulf %1425, %1411 : vector<2x7x6xf32>
    %1427 = arith.addf %1406, %1426 : vector<2x7x6xf32>
    %c289 = arith.constant 289 : index
    %1428 = memref.load %arg3[%c289] : memref<300xf32, #tpu.memory_space<smem>>
    %1429 = vector.broadcast %1428 : f32 to vector<2x7x6xf32>
    %1430 = arith.mulf %1429, %1411 : vector<2x7x6xf32>
    %1431 = arith.addf %1410, %1430 : vector<2x7x6xf32>
    %1432 = vector.extract_strided_slice %1304 {offsets = [0, 0, 0], sizes = [2, 7, 6], strides = [1, 1, 1]} : vector<2x8x8xf32> to vector<2x7x6xf32>
    %c50 = arith.constant 50 : index
    %1433 = memref.load %arg3[%c50] : memref<300xf32, #tpu.memory_space<smem>>
    %1434 = vector.broadcast %1433 : f32 to vector<2x7x6xf32>
    %1435 = arith.mulf %1434, %1432 : vector<2x7x6xf32>
    %1436 = arith.addf %1415, %1435 : vector<2x7x6xf32>
    %c110 = arith.constant 110 : index
    %1437 = memref.load %arg3[%c110] : memref<300xf32, #tpu.memory_space<smem>>
    %1438 = vector.broadcast %1437 : f32 to vector<2x7x6xf32>
    %1439 = arith.mulf %1438, %1432 : vector<2x7x6xf32>
    %1440 = arith.addf %1419, %1439 : vector<2x7x6xf32>
    %c170 = arith.constant 170 : index
    %1441 = memref.load %arg3[%c170] : memref<300xf32, #tpu.memory_space<smem>>
    %1442 = vector.broadcast %1441 : f32 to vector<2x7x6xf32>
    %1443 = arith.mulf %1442, %1432 : vector<2x7x6xf32>
    %1444 = arith.addf %1423, %1443 : vector<2x7x6xf32>
    %c230 = arith.constant 230 : index
    %1445 = memref.load %arg3[%c230] : memref<300xf32, #tpu.memory_space<smem>>
    %1446 = vector.broadcast %1445 : f32 to vector<2x7x6xf32>
    %1447 = arith.mulf %1446, %1432 : vector<2x7x6xf32>
    %1448 = arith.addf %1427, %1447 : vector<2x7x6xf32>
    %c290 = arith.constant 290 : index
    %1449 = memref.load %arg3[%c290] : memref<300xf32, #tpu.memory_space<smem>>
    %1450 = vector.broadcast %1449 : f32 to vector<2x7x6xf32>
    %1451 = arith.mulf %1450, %1432 : vector<2x7x6xf32>
    %1452 = arith.addf %1431, %1451 : vector<2x7x6xf32>
    %1453 = vector.extract_strided_slice %1326 {offsets = [0, 0, 0], sizes = [2, 7, 6], strides = [1, 1, 1]} : vector<2x8x8xf32> to vector<2x7x6xf32>
    %c51 = arith.constant 51 : index
    %1454 = memref.load %arg3[%c51] : memref<300xf32, #tpu.memory_space<smem>>
    %1455 = vector.broadcast %1454 : f32 to vector<2x7x6xf32>
    %1456 = arith.mulf %1455, %1453 : vector<2x7x6xf32>
    %1457 = arith.addf %1436, %1456 : vector<2x7x6xf32>
    %c111 = arith.constant 111 : index
    %1458 = memref.load %arg3[%c111] : memref<300xf32, #tpu.memory_space<smem>>
    %1459 = vector.broadcast %1458 : f32 to vector<2x7x6xf32>
    %1460 = arith.mulf %1459, %1453 : vector<2x7x6xf32>
    %1461 = arith.addf %1440, %1460 : vector<2x7x6xf32>
    %c171 = arith.constant 171 : index
    %1462 = memref.load %arg3[%c171] : memref<300xf32, #tpu.memory_space<smem>>
    %1463 = vector.broadcast %1462 : f32 to vector<2x7x6xf32>
    %1464 = arith.mulf %1463, %1453 : vector<2x7x6xf32>
    %1465 = arith.addf %1444, %1464 : vector<2x7x6xf32>
    %c231 = arith.constant 231 : index
    %1466 = memref.load %arg3[%c231] : memref<300xf32, #tpu.memory_space<smem>>
    %1467 = vector.broadcast %1466 : f32 to vector<2x7x6xf32>
    %1468 = arith.mulf %1467, %1453 : vector<2x7x6xf32>
    %1469 = arith.addf %1448, %1468 : vector<2x7x6xf32>
    %c291 = arith.constant 291 : index
    %1470 = memref.load %arg3[%c291] : memref<300xf32, #tpu.memory_space<smem>>
    %1471 = vector.broadcast %1470 : f32 to vector<2x7x6xf32>
    %1472 = arith.mulf %1471, %1453 : vector<2x7x6xf32>
    %1473 = arith.addf %1452, %1472 : vector<2x7x6xf32>
    %1474 = vector.extract_strided_slice %1304 {offsets = [0, 0, 1], sizes = [2, 7, 6], strides = [1, 1, 1]} : vector<2x8x8xf32> to vector<2x7x6xf32>
    %c52 = arith.constant 52 : index
    %1475 = memref.load %arg3[%c52] : memref<300xf32, #tpu.memory_space<smem>>
    %1476 = vector.broadcast %1475 : f32 to vector<2x7x6xf32>
    %1477 = arith.mulf %1476, %1474 : vector<2x7x6xf32>
    %1478 = arith.addf %1457, %1477 : vector<2x7x6xf32>
    %c112 = arith.constant 112 : index
    %1479 = memref.load %arg3[%c112] : memref<300xf32, #tpu.memory_space<smem>>
    %1480 = vector.broadcast %1479 : f32 to vector<2x7x6xf32>
    %1481 = arith.mulf %1480, %1474 : vector<2x7x6xf32>
    %1482 = arith.addf %1461, %1481 : vector<2x7x6xf32>
    %c172 = arith.constant 172 : index
    %1483 = memref.load %arg3[%c172] : memref<300xf32, #tpu.memory_space<smem>>
    %1484 = vector.broadcast %1483 : f32 to vector<2x7x6xf32>
    %1485 = arith.mulf %1484, %1474 : vector<2x7x6xf32>
    %1486 = arith.addf %1465, %1485 : vector<2x7x6xf32>
    %c232 = arith.constant 232 : index
    %1487 = memref.load %arg3[%c232] : memref<300xf32, #tpu.memory_space<smem>>
    %1488 = vector.broadcast %1487 : f32 to vector<2x7x6xf32>
    %1489 = arith.mulf %1488, %1474 : vector<2x7x6xf32>
    %1490 = arith.addf %1469, %1489 : vector<2x7x6xf32>
    %c292 = arith.constant 292 : index
    %1491 = memref.load %arg3[%c292] : memref<300xf32, #tpu.memory_space<smem>>
    %1492 = vector.broadcast %1491 : f32 to vector<2x7x6xf32>
    %1493 = arith.mulf %1492, %1474 : vector<2x7x6xf32>
    %1494 = arith.addf %1473, %1493 : vector<2x7x6xf32>
    %1495 = vector.extract_strided_slice %1326 {offsets = [0, 0, 1], sizes = [2, 7, 6], strides = [1, 1, 1]} : vector<2x8x8xf32> to vector<2x7x6xf32>
    %c53 = arith.constant 53 : index
    %1496 = memref.load %arg3[%c53] : memref<300xf32, #tpu.memory_space<smem>>
    %1497 = vector.broadcast %1496 : f32 to vector<2x7x6xf32>
    %1498 = arith.mulf %1497, %1495 : vector<2x7x6xf32>
    %1499 = arith.addf %1478, %1498 : vector<2x7x6xf32>
    %c113 = arith.constant 113 : index
    %1500 = memref.load %arg3[%c113] : memref<300xf32, #tpu.memory_space<smem>>
    %1501 = vector.broadcast %1500 : f32 to vector<2x7x6xf32>
    %1502 = arith.mulf %1501, %1495 : vector<2x7x6xf32>
    %1503 = arith.addf %1482, %1502 : vector<2x7x6xf32>
    %c173 = arith.constant 173 : index
    %1504 = memref.load %arg3[%c173] : memref<300xf32, #tpu.memory_space<smem>>
    %1505 = vector.broadcast %1504 : f32 to vector<2x7x6xf32>
    %1506 = arith.mulf %1505, %1495 : vector<2x7x6xf32>
    %1507 = arith.addf %1486, %1506 : vector<2x7x6xf32>
    %c233 = arith.constant 233 : index
    %1508 = memref.load %arg3[%c233] : memref<300xf32, #tpu.memory_space<smem>>
    %1509 = vector.broadcast %1508 : f32 to vector<2x7x6xf32>
    %1510 = arith.mulf %1509, %1495 : vector<2x7x6xf32>
    %1511 = arith.addf %1490, %1510 : vector<2x7x6xf32>
    %c293 = arith.constant 293 : index
    %1512 = memref.load %arg3[%c293] : memref<300xf32, #tpu.memory_space<smem>>
    %1513 = vector.broadcast %1512 : f32 to vector<2x7x6xf32>
    %1514 = arith.mulf %1513, %1495 : vector<2x7x6xf32>
    %1515 = arith.addf %1494, %1514 : vector<2x7x6xf32>
    %1516 = vector.extract_strided_slice %1304 {offsets = [0, 0, 2], sizes = [2, 7, 6], strides = [1, 1, 1]} : vector<2x8x8xf32> to vector<2x7x6xf32>
    %c54 = arith.constant 54 : index
    %1517 = memref.load %arg3[%c54] : memref<300xf32, #tpu.memory_space<smem>>
    %1518 = vector.broadcast %1517 : f32 to vector<2x7x6xf32>
    %1519 = arith.mulf %1518, %1516 : vector<2x7x6xf32>
    %1520 = arith.addf %1499, %1519 : vector<2x7x6xf32>
    %c114 = arith.constant 114 : index
    %1521 = memref.load %arg3[%c114] : memref<300xf32, #tpu.memory_space<smem>>
    %1522 = vector.broadcast %1521 : f32 to vector<2x7x6xf32>
    %1523 = arith.mulf %1522, %1516 : vector<2x7x6xf32>
    %1524 = arith.addf %1503, %1523 : vector<2x7x6xf32>
    %c174 = arith.constant 174 : index
    %1525 = memref.load %arg3[%c174] : memref<300xf32, #tpu.memory_space<smem>>
    %1526 = vector.broadcast %1525 : f32 to vector<2x7x6xf32>
    %1527 = arith.mulf %1526, %1516 : vector<2x7x6xf32>
    %1528 = arith.addf %1507, %1527 : vector<2x7x6xf32>
    %c234 = arith.constant 234 : index
    %1529 = memref.load %arg3[%c234] : memref<300xf32, #tpu.memory_space<smem>>
    %1530 = vector.broadcast %1529 : f32 to vector<2x7x6xf32>
    %1531 = arith.mulf %1530, %1516 : vector<2x7x6xf32>
    %1532 = arith.addf %1511, %1531 : vector<2x7x6xf32>
    %c294 = arith.constant 294 : index
    %1533 = memref.load %arg3[%c294] : memref<300xf32, #tpu.memory_space<smem>>
    %1534 = vector.broadcast %1533 : f32 to vector<2x7x6xf32>
    %1535 = arith.mulf %1534, %1516 : vector<2x7x6xf32>
    %1536 = arith.addf %1515, %1535 : vector<2x7x6xf32>
    %1537 = vector.extract_strided_slice %1260 {offsets = [0, 1, 0], sizes = [2, 7, 6], strides = [1, 1, 1]} : vector<2x8x8xf32> to vector<2x7x6xf32>
    %c55 = arith.constant 55 : index
    %1538 = memref.load %arg3[%c55] : memref<300xf32, #tpu.memory_space<smem>>
    %1539 = vector.broadcast %1538 : f32 to vector<2x7x6xf32>
    %1540 = arith.mulf %1539, %1537 : vector<2x7x6xf32>
    %1541 = arith.addf %1520, %1540 : vector<2x7x6xf32>
    %c115 = arith.constant 115 : index
    %1542 = memref.load %arg3[%c115] : memref<300xf32, #tpu.memory_space<smem>>
    %1543 = vector.broadcast %1542 : f32 to vector<2x7x6xf32>
    %1544 = arith.mulf %1543, %1537 : vector<2x7x6xf32>
    %1545 = arith.addf %1524, %1544 : vector<2x7x6xf32>
    %c175 = arith.constant 175 : index
    %1546 = memref.load %arg3[%c175] : memref<300xf32, #tpu.memory_space<smem>>
    %1547 = vector.broadcast %1546 : f32 to vector<2x7x6xf32>
    %1548 = arith.mulf %1547, %1537 : vector<2x7x6xf32>
    %1549 = arith.addf %1528, %1548 : vector<2x7x6xf32>
    %c235 = arith.constant 235 : index
    %1550 = memref.load %arg3[%c235] : memref<300xf32, #tpu.memory_space<smem>>
    %1551 = vector.broadcast %1550 : f32 to vector<2x7x6xf32>
    %1552 = arith.mulf %1551, %1537 : vector<2x7x6xf32>
    %1553 = arith.addf %1532, %1552 : vector<2x7x6xf32>
    %c295 = arith.constant 295 : index
    %1554 = memref.load %arg3[%c295] : memref<300xf32, #tpu.memory_space<smem>>
    %1555 = vector.broadcast %1554 : f32 to vector<2x7x6xf32>
    %1556 = arith.mulf %1555, %1537 : vector<2x7x6xf32>
    %1557 = arith.addf %1536, %1556 : vector<2x7x6xf32>
    %1558 = vector.extract_strided_slice %1282 {offsets = [0, 1, 0], sizes = [2, 7, 6], strides = [1, 1, 1]} : vector<2x8x8xf32> to vector<2x7x6xf32>
    %c56 = arith.constant 56 : index
    %1559 = memref.load %arg3[%c56] : memref<300xf32, #tpu.memory_space<smem>>
    %1560 = vector.broadcast %1559 : f32 to vector<2x7x6xf32>
    %1561 = arith.mulf %1560, %1558 : vector<2x7x6xf32>
    %1562 = arith.addf %1541, %1561 : vector<2x7x6xf32>
    %c116 = arith.constant 116 : index
    %1563 = memref.load %arg3[%c116] : memref<300xf32, #tpu.memory_space<smem>>
    %1564 = vector.broadcast %1563 : f32 to vector<2x7x6xf32>
    %1565 = arith.mulf %1564, %1558 : vector<2x7x6xf32>
    %1566 = arith.addf %1545, %1565 : vector<2x7x6xf32>
    %c176 = arith.constant 176 : index
    %1567 = memref.load %arg3[%c176] : memref<300xf32, #tpu.memory_space<smem>>
    %1568 = vector.broadcast %1567 : f32 to vector<2x7x6xf32>
    %1569 = arith.mulf %1568, %1558 : vector<2x7x6xf32>
    %1570 = arith.addf %1549, %1569 : vector<2x7x6xf32>
    %c236 = arith.constant 236 : index
    %1571 = memref.load %arg3[%c236] : memref<300xf32, #tpu.memory_space<smem>>
    %1572 = vector.broadcast %1571 : f32 to vector<2x7x6xf32>
    %1573 = arith.mulf %1572, %1558 : vector<2x7x6xf32>
    %1574 = arith.addf %1553, %1573 : vector<2x7x6xf32>
    %c296 = arith.constant 296 : index
    %1575 = memref.load %arg3[%c296] : memref<300xf32, #tpu.memory_space<smem>>
    %1576 = vector.broadcast %1575 : f32 to vector<2x7x6xf32>
    %1577 = arith.mulf %1576, %1558 : vector<2x7x6xf32>
    %1578 = arith.addf %1557, %1577 : vector<2x7x6xf32>
    %1579 = vector.extract_strided_slice %1260 {offsets = [0, 1, 1], sizes = [2, 7, 6], strides = [1, 1, 1]} : vector<2x8x8xf32> to vector<2x7x6xf32>
    %c57 = arith.constant 57 : index
    %1580 = memref.load %arg3[%c57] : memref<300xf32, #tpu.memory_space<smem>>
    %1581 = vector.broadcast %1580 : f32 to vector<2x7x6xf32>
    %1582 = arith.mulf %1581, %1579 : vector<2x7x6xf32>
    %1583 = arith.addf %1562, %1582 : vector<2x7x6xf32>
    %c117 = arith.constant 117 : index
    %1584 = memref.load %arg3[%c117] : memref<300xf32, #tpu.memory_space<smem>>
    %1585 = vector.broadcast %1584 : f32 to vector<2x7x6xf32>
    %1586 = arith.mulf %1585, %1579 : vector<2x7x6xf32>
    %1587 = arith.addf %1566, %1586 : vector<2x7x6xf32>
    %c177 = arith.constant 177 : index
    %1588 = memref.load %arg3[%c177] : memref<300xf32, #tpu.memory_space<smem>>
    %1589 = vector.broadcast %1588 : f32 to vector<2x7x6xf32>
    %1590 = arith.mulf %1589, %1579 : vector<2x7x6xf32>
    %1591 = arith.addf %1570, %1590 : vector<2x7x6xf32>
    %c237 = arith.constant 237 : index
    %1592 = memref.load %arg3[%c237] : memref<300xf32, #tpu.memory_space<smem>>
    %1593 = vector.broadcast %1592 : f32 to vector<2x7x6xf32>
    %1594 = arith.mulf %1593, %1579 : vector<2x7x6xf32>
    %1595 = arith.addf %1574, %1594 : vector<2x7x6xf32>
    %c297 = arith.constant 297 : index
    %1596 = memref.load %arg3[%c297] : memref<300xf32, #tpu.memory_space<smem>>
    %1597 = vector.broadcast %1596 : f32 to vector<2x7x6xf32>
    %1598 = arith.mulf %1597, %1579 : vector<2x7x6xf32>
    %1599 = arith.addf %1578, %1598 : vector<2x7x6xf32>
    %1600 = vector.extract_strided_slice %1282 {offsets = [0, 1, 1], sizes = [2, 7, 6], strides = [1, 1, 1]} : vector<2x8x8xf32> to vector<2x7x6xf32>
    %c58 = arith.constant 58 : index
    %1601 = memref.load %arg3[%c58] : memref<300xf32, #tpu.memory_space<smem>>
    %1602 = vector.broadcast %1601 : f32 to vector<2x7x6xf32>
    %1603 = arith.mulf %1602, %1600 : vector<2x7x6xf32>
    %1604 = arith.addf %1583, %1603 : vector<2x7x6xf32>
    %c118 = arith.constant 118 : index
    %1605 = memref.load %arg3[%c118] : memref<300xf32, #tpu.memory_space<smem>>
    %1606 = vector.broadcast %1605 : f32 to vector<2x7x6xf32>
    %1607 = arith.mulf %1606, %1600 : vector<2x7x6xf32>
    %1608 = arith.addf %1587, %1607 : vector<2x7x6xf32>
    %c178 = arith.constant 178 : index
    %1609 = memref.load %arg3[%c178] : memref<300xf32, #tpu.memory_space<smem>>
    %1610 = vector.broadcast %1609 : f32 to vector<2x7x6xf32>
    %1611 = arith.mulf %1610, %1600 : vector<2x7x6xf32>
    %1612 = arith.addf %1591, %1611 : vector<2x7x6xf32>
    %c238 = arith.constant 238 : index
    %1613 = memref.load %arg3[%c238] : memref<300xf32, #tpu.memory_space<smem>>
    %1614 = vector.broadcast %1613 : f32 to vector<2x7x6xf32>
    %1615 = arith.mulf %1614, %1600 : vector<2x7x6xf32>
    %1616 = arith.addf %1595, %1615 : vector<2x7x6xf32>
    %c298 = arith.constant 298 : index
    %1617 = memref.load %arg3[%c298] : memref<300xf32, #tpu.memory_space<smem>>
    %1618 = vector.broadcast %1617 : f32 to vector<2x7x6xf32>
    %1619 = arith.mulf %1618, %1600 : vector<2x7x6xf32>
    %1620 = arith.addf %1599, %1619 : vector<2x7x6xf32>
    %1621 = vector.extract_strided_slice %1260 {offsets = [0, 1, 2], sizes = [2, 7, 6], strides = [1, 1, 1]} : vector<2x8x8xf32> to vector<2x7x6xf32>
    %c59 = arith.constant 59 : index
    %1622 = memref.load %arg3[%c59] : memref<300xf32, #tpu.memory_space<smem>>
    %1623 = vector.broadcast %1622 : f32 to vector<2x7x6xf32>
    %1624 = arith.mulf %1623, %1621 : vector<2x7x6xf32>
    %1625 = arith.addf %1604, %1624 : vector<2x7x6xf32>
    %c119 = arith.constant 119 : index
    %1626 = memref.load %arg3[%c119] : memref<300xf32, #tpu.memory_space<smem>>
    %1627 = vector.broadcast %1626 : f32 to vector<2x7x6xf32>
    %1628 = arith.mulf %1627, %1621 : vector<2x7x6xf32>
    %1629 = arith.addf %1608, %1628 : vector<2x7x6xf32>
    %c179 = arith.constant 179 : index
    %1630 = memref.load %arg3[%c179] : memref<300xf32, #tpu.memory_space<smem>>
    %1631 = vector.broadcast %1630 : f32 to vector<2x7x6xf32>
    %1632 = arith.mulf %1631, %1621 : vector<2x7x6xf32>
    %1633 = arith.addf %1612, %1632 : vector<2x7x6xf32>
    %c239 = arith.constant 239 : index
    %1634 = memref.load %arg3[%c239] : memref<300xf32, #tpu.memory_space<smem>>
    %1635 = vector.broadcast %1634 : f32 to vector<2x7x6xf32>
    %1636 = arith.mulf %1635, %1621 : vector<2x7x6xf32>
    %1637 = arith.addf %1616, %1636 : vector<2x7x6xf32>
    %c299 = arith.constant 299 : index
    %1638 = memref.load %arg3[%c299] : memref<300xf32, #tpu.memory_space<smem>>
    %1639 = vector.broadcast %1638 : f32 to vector<2x7x6xf32>
    %1640 = arith.mulf %1639, %1621 : vector<2x7x6xf32>
    %1641 = arith.addf %1620, %1640 : vector<2x7x6xf32>
    %1642 = math.tanh %1625 : vector<2x7x6xf32>
    %1643 = vector.extract_strided_slice %1642 {offsets = [0, 0, 0], sizes = [1, 7, 6], strides = [1, 1, 1]} : vector<2x7x6xf32> to vector<1x7x6xf32>
    %1644 = vector.shape_cast %1643 : vector<1x7x6xf32> to vector<7x6xf32>
    %c0_281 = arith.constant 0 : index
    %c0_282 = arith.constant 0 : index
    %c0_283 = arith.constant 0 : index
    %c0_284 = arith.constant 0 : index
    %1645 = vector.load %arg5[%c0_281, %c0_282, %c0_283, %c0_284] : memref<2x5x7x6xf32, #tpu.memory_space<vmem>>, vector<1x1x7x6xf32>
    %1646 = vector.shape_cast %1645 : vector<1x1x7x6xf32> to vector<7x6xf32>
    %1647 = vector.shape_cast %1644 : vector<7x6xf32> to vector<1x1x7x6xf32>
    tpu.vector_store %arg5[%c0_281, %c0_282, %c0_283, %c0_284], %1647 {strides = array<i32>} : memref<2x5x7x6xf32, #tpu.memory_space<vmem>>, vector<1x1x7x6xf32>,
    %1648 = vector.extract_strided_slice %1642 {offsets = [1, 0, 0], sizes = [1, 7, 6], strides = [1, 1, 1]} : vector<2x7x6xf32> to vector<1x7x6xf32>
    %1649 = vector.shape_cast %1648 : vector<1x7x6xf32> to vector<7x6xf32>
    %c1_285 = arith.constant 1 : index
    %c0_286 = arith.constant 0 : index
    %c0_287 = arith.constant 0 : index
    %c0_288 = arith.constant 0 : index
    %1650 = vector.load %arg5[%c1_285, %c0_286, %c0_287, %c0_288] : memref<2x5x7x6xf32, #tpu.memory_space<vmem>>, vector<1x1x7x6xf32>
    %1651 = vector.shape_cast %1650 : vector<1x1x7x6xf32> to vector<7x6xf32>
    %1652 = vector.shape_cast %1649 : vector<7x6xf32> to vector<1x1x7x6xf32>
    tpu.vector_store %arg5[%c1_285, %c0_286, %c0_287, %c0_288], %1652 {strides = array<i32>} : memref<2x5x7x6xf32, #tpu.memory_space<vmem>>, vector<1x1x7x6xf32>,
    %1653 = math.tanh %1629 : vector<2x7x6xf32>
    %1654 = vector.extract_strided_slice %1653 {offsets = [0, 0, 0], sizes = [1, 7, 6], strides = [1, 1, 1]} : vector<2x7x6xf32> to vector<1x7x6xf32>
    %1655 = vector.shape_cast %1654 : vector<1x7x6xf32> to vector<7x6xf32>
    %c0_289 = arith.constant 0 : index
    %c1_290 = arith.constant 1 : index
    %c0_291 = arith.constant 0 : index
    %c0_292 = arith.constant 0 : index
    %1656 = vector.load %arg5[%c0_289, %c1_290, %c0_291, %c0_292] : memref<2x5x7x6xf32, #tpu.memory_space<vmem>>, vector<1x1x7x6xf32>
    %1657 = vector.shape_cast %1656 : vector<1x1x7x6xf32> to vector<7x6xf32>
    %1658 = vector.shape_cast %1655 : vector<7x6xf32> to vector<1x1x7x6xf32>
    tpu.vector_store %arg5[%c0_289, %c1_290, %c0_291, %c0_292], %1658 {strides = array<i32>} : memref<2x5x7x6xf32, #tpu.memory_space<vmem>>, vector<1x1x7x6xf32>,
    %1659 = vector.extract_strided_slice %1653 {offsets = [1, 0, 0], sizes = [1, 7, 6], strides = [1, 1, 1]} : vector<2x7x6xf32> to vector<1x7x6xf32>
    %1660 = vector.shape_cast %1659 : vector<1x7x6xf32> to vector<7x6xf32>
    %c1_293 = arith.constant 1 : index
    %c1_294 = arith.constant 1 : index
    %c0_295 = arith.constant 0 : index
    %c0_296 = arith.constant 0 : index
    %1661 = vector.load %arg5[%c1_293, %c1_294, %c0_295, %c0_296] : memref<2x5x7x6xf32, #tpu.memory_space<vmem>>, vector<1x1x7x6xf32>
    %1662 = vector.shape_cast %1661 : vector<1x1x7x6xf32> to vector<7x6xf32>
    %1663 = vector.shape_cast %1660 : vector<7x6xf32> to vector<1x1x7x6xf32>
    tpu.vector_store %arg5[%c1_293, %c1_294, %c0_295, %c0_296], %1663 {strides = array<i32>} : memref<2x5x7x6xf32, #tpu.memory_space<vmem>>, vector<1x1x7x6xf32>,
    %1664 = math.tanh %1633 : vector<2x7x6xf32>
    %1665 = vector.extract_strided_slice %1664 {offsets = [0, 0, 0], sizes = [1, 7, 6], strides = [1, 1, 1]} : vector<2x7x6xf32> to vector<1x7x6xf32>
    %1666 = vector.shape_cast %1665 : vector<1x7x6xf32> to vector<7x6xf32>
    %c0_297 = arith.constant 0 : index
    %c2_298 = arith.constant 2 : index
    %c0_299 = arith.constant 0 : index
    %c0_300 = arith.constant 0 : index
    %1667 = vector.load %arg5[%c0_297, %c2_298, %c0_299, %c0_300] : memref<2x5x7x6xf32, #tpu.memory_space<vmem>>, vector<1x1x7x6xf32>
    %1668 = vector.shape_cast %1667 : vector<1x1x7x6xf32> to vector<7x6xf32>
    %1669 = vector.shape_cast %1666 : vector<7x6xf32> to vector<1x1x7x6xf32>
    tpu.vector_store %arg5[%c0_297, %c2_298, %c0_299, %c0_300], %1669 {strides = array<i32>} : memref<2x5x7x6xf32, #tpu.memory_space<vmem>>, vector<1x1x7x6xf32>,
    %1670 = vector.extract_strided_slice %1664 {offsets = [1, 0, 0], sizes = [1, 7, 6], strides = [1, 1, 1]} : vector<2x7x6xf32> to vector<1x7x6xf32>
    %1671 = vector.shape_cast %1670 : vector<1x7x6xf32> to vector<7x6xf32>
    %c1_301 = arith.constant 1 : index
    %c2_302 = arith.constant 2 : index
    %c0_303 = arith.constant 0 : index
    %c0_304 = arith.constant 0 : index
    %1672 = vector.load %arg5[%c1_301, %c2_302, %c0_303, %c0_304] : memref<2x5x7x6xf32, #tpu.memory_space<vmem>>, vector<1x1x7x6xf32>
    %1673 = vector.shape_cast %1672 : vector<1x1x7x6xf32> to vector<7x6xf32>
    %1674 = vector.shape_cast %1671 : vector<7x6xf32> to vector<1x1x7x6xf32>
    tpu.vector_store %arg5[%c1_301, %c2_302, %c0_303, %c0_304], %1674 {strides = array<i32>} : memref<2x5x7x6xf32, #tpu.memory_space<vmem>>, vector<1x1x7x6xf32>,
    %1675 = math.tanh %1637 : vector<2x7x6xf32>
    %1676 = vector.extract_strided_slice %1675 {offsets = [0, 0, 0], sizes = [1, 7, 6], strides = [1, 1, 1]} : vector<2x7x6xf32> to vector<1x7x6xf32>
    %1677 = vector.shape_cast %1676 : vector<1x7x6xf32> to vector<7x6xf32>
    %c0_305 = arith.constant 0 : index
    %c3_306 = arith.constant 3 : index
    %c0_307 = arith.constant 0 : index
    %c0_308 = arith.constant 0 : index
    %1678 = vector.load %arg5[%c0_305, %c3_306, %c0_307, %c0_308] : memref<2x5x7x6xf32, #tpu.memory_space<vmem>>, vector<1x1x7x6xf32>
    %1679 = vector.shape_cast %1678 : vector<1x1x7x6xf32> to vector<7x6xf32>
    %1680 = vector.shape_cast %1677 : vector<7x6xf32> to vector<1x1x7x6xf32>
    tpu.vector_store %arg5[%c0_305, %c3_306, %c0_307, %c0_308], %1680 {strides = array<i32>} : memref<2x5x7x6xf32, #tpu.memory_space<vmem>>, vector<1x1x7x6xf32>,
    %1681 = vector.extract_strided_slice %1675 {offsets = [1, 0, 0], sizes = [1, 7, 6], strides = [1, 1, 1]} : vector<2x7x6xf32> to vector<1x7x6xf32>
    %1682 = vector.shape_cast %1681 : vector<1x7x6xf32> to vector<7x6xf32>
    %c1_309 = arith.constant 1 : index
    %c3_310 = arith.constant 3 : index
    %c0_311 = arith.constant 0 : index
    %c0_312 = arith.constant 0 : index
    %1683 = vector.load %arg5[%c1_309, %c3_310, %c0_311, %c0_312] : memref<2x5x7x6xf32, #tpu.memory_space<vmem>>, vector<1x1x7x6xf32>
    %1684 = vector.shape_cast %1683 : vector<1x1x7x6xf32> to vector<7x6xf32>
    %1685 = vector.shape_cast %1682 : vector<7x6xf32> to vector<1x1x7x6xf32>
    tpu.vector_store %arg5[%c1_309, %c3_310, %c0_311, %c0_312], %1685 {strides = array<i32>} : memref<2x5x7x6xf32, #tpu.memory_space<vmem>>, vector<1x1x7x6xf32>,
    %1686 = math.tanh %1641 : vector<2x7x6xf32>
    %1687 = vector.extract_strided_slice %1686 {offsets = [0, 0, 0], sizes = [1, 7, 6], strides = [1, 1, 1]} : vector<2x7x6xf32> to vector<1x7x6xf32>
    %1688 = vector.shape_cast %1687 : vector<1x7x6xf32> to vector<7x6xf32>
    %c0_313 = arith.constant 0 : index
    %c4_314 = arith.constant 4 : index
    %c0_315 = arith.constant 0 : index
    %c0_316 = arith.constant 0 : index
    %1689 = vector.load %arg5[%c0_313, %c4_314, %c0_315, %c0_316] : memref<2x5x7x6xf32, #tpu.memory_space<vmem>>, vector<1x1x7x6xf32>
    %1690 = vector.shape_cast %1689 : vector<1x1x7x6xf32> to vector<7x6xf32>
    %1691 = vector.shape_cast %1688 : vector<7x6xf32> to vector<1x1x7x6xf32>
    tpu.vector_store %arg5[%c0_313, %c4_314, %c0_315, %c0_316], %1691 {strides = array<i32>} : memref<2x5x7x6xf32, #tpu.memory_space<vmem>>, vector<1x1x7x6xf32>,
    %1692 = vector.extract_strided_slice %1686 {offsets = [1, 0, 0], sizes = [1, 7, 6], strides = [1, 1, 1]} : vector<2x7x6xf32> to vector<1x7x6xf32>
    %1693 = vector.shape_cast %1692 : vector<1x7x6xf32> to vector<7x6xf32>
    %c1_317 = arith.constant 1 : index
    %c4_318 = arith.constant 4 : index
    %c0_319 = arith.constant 0 : index
    %c0_320 = arith.constant 0 : index
    %1694 = vector.load %arg5[%c1_317, %c4_318, %c0_319, %c0_320] : memref<2x5x7x6xf32, #tpu.memory_space<vmem>>, vector<1x1x7x6xf32>
    %1695 = vector.shape_cast %1694 : vector<1x1x7x6xf32> to vector<7x6xf32>
    %1696 = vector.shape_cast %1693 : vector<7x6xf32> to vector<1x1x7x6xf32>
    tpu.vector_store %arg5[%c1_317, %c4_318, %c0_319, %c0_320], %1696 {strides = array<i32>} : memref<2x5x7x6xf32, #tpu.memory_space<vmem>>, vector<1x1x7x6xf32>,
    return
  }
}

</mosaic_0001>

<llo_original>
// kernel: squeeze.1
$region0: #{squeeze.1}
  %s0 = inlined_call_operand.vmem [shape: f32[4,4], index: 0, kind: input, shape index: {}]
  %s1 = inlined_call_operand.vmem [shape: f32[16], index: 1, kind: output, shape index: {}]
  $region1: #{squeeze.1} parent=0
    #allocation0 [shape = 'u8[4096]{0}', space=vmem, size = 0x1000, scoped, tag = 'scoped mem for output reshape']
    #allocation1 [shape = 'u8[4096]{0}', space=vmem, size = 0x1000, scoped, tag = 'scoped mem for input reshape']
    %s3 = ssub.s32 16, 1
    %v4 = vld [vmem:[%s0] sm:%s3]
    %5 = vst [vmem:[#allocation1] sm:%s3] %v4
    %v6 = vld [vmem:[#allocation1] sm:$0x1]
    %vm7 = vcmask 31744
    %8 = vst.msk [vmem:[#allocation0] sm:$0x1] %vm7, %v6
    %s9 = scalar_lea.vmem [#allocation1], 3
    %v10 = vld [vmem:[%s9] sm:$0x1]
    %11 = vrot.lane.b32.xlu0 %v10, 12
    %v12 = vpop.permute.xlu0 %11
    %vm13 = vcmask 130144
    %14 = vst.msk [vmem:[#allocation0] sm:$0x1] %vm13, %v12
    %s15 = scalar_lea.vmem [#allocation1], 2
    %v16 = vld [vmem:[%s15] sm:$0x1]
    %17 = vrot.lane.b32.xlu0 %v16, 8
    %v18 = vpop.permute.xlu0 %17
    %vm19 = vcmask 97344
    %20 = vst.msk [vmem:[#allocation0] sm:$0x1] %vm19, %v18
    %s21 = scalar_lea.vmem [#allocation1], 1
    %v22 = vld [vmem:[%s21] sm:$0x1]
    %23 = vrot.lane.b32.xlu0 %v22, 4
    %v24 = vpop.permute.xlu0 %23
    %vm25 = vcmask 64544
    %26 = vst.msk [vmem:[#allocation0] sm:$0x1] %vm25, %v24
    %s28 = ssub.s32 2, 1
    %v29 = vld [vmem:[#allocation0] sm:%s28]
    %s31 = ssub.s32 2, 1
    %32 = vst [vmem:[%s1] sm:%s31] %v29

// kernel: model_forward.1
$region0: #{model_forward.1}
  #allocation0 [shape = 'u32[]', space=smem, size = 0x4, offset = 0x4, fixed_abs, tag = 'smem constant byte address 0x4 - core index']
  #allocation1 [shape = 'u32[72,128]{1,0:T(1,128)}', space=vmem, size = 0x9000, scoped, tag = 'internal scratch']
  %s0 = inlined_call_operand.vmem [shape: f32[16,2,8,8], index: 0, kind: input, shape index: {}]
  %s1 = inlined_call_operand.vmem [shape: f32[16], index: 1, kind: input, shape index: {}]
  %s2 = inlined_call_operand.vmem [shape: f32[4], index: 2, kind: input, shape index: {}]
  %s3 = inlined_call_operand.vmem [shape: f32[300], index: 3, kind: input, shape index: {}]
  %s4 = inlined_call_operand.vmem [shape: f32[5], index: 4, kind: input, shape index: {}]
  %s5 = inlined_call_operand.vmem [shape: f32[2,5,7,6], index: 5, kind: output, shape index: {}]
  %s6 = sld [smem:[#allocation0]]
  $region46: #{model_forward.1} parent=0
    _
  %s8 = ssub.s32 1, %s6
  %s9 = scalar_select 0, %s8, %s6
  $region1: #{model_forward.1} parent=0
    #allocation2 [shape = 'u8[512]{0}', space=smem, size = 0x200, scoped, tag = 'input window, operand 1, single buffered']
    #allocation3 [shape = 's32[1]{0}', space=sflag, size = 0x4, scoped, tag = 'scoped memory for model_forward.1']
    #allocation4 [shape = 'u8[512]{0}', space=smem, size = 0x200, scoped, tag = 'input window, operand 2, single buffered']
    #allocation5 [shape = 's32[1]{0}', space=sflag, size = 0x4, scoped, tag = 'scoped memory for model_forward.1']
    #allocation6 [shape = 'u8[1536]{0}', space=smem, size = 0x600, scoped, tag = 'input window, operand 3, single buffered']
    #allocation7 [shape = 'u8[512]{0}', space=smem, size = 0x200, scoped, tag = 'input window, operand 4, single buffered']
    #allocation8 [shape = 's32[1]{0}', space=sflag, size = 0x4, scoped, tag = 'scoped memory for model_forward.1']
    %10 = vsyncpa [#allocation3], 0
    %11 = vsyncpa [#allocation5], 0
    %12 = vsyncpa [#allocation8], 0
    // Predicated region
    $region2: #{model_forward.1} parent=1 // pred_check
      _
    $region3: #{model_forward.1} parent=1 // pred_check_branch
      %14 = sbr.rel (0) target = $region5
    $region4: #{model_forward.1} parent=1 // pred_region
      _
    $region5: #{model_forward.1} parent=1 // pred_fallthru
      _
    // Predicated region
    $region6: #{model_forward.1} parent=1 // pred_check
      _
    $region7: #{model_forward.1} parent=1 // pred_check_branch
      %16 = sbr.rel (0) target = $region9
    $region8: #{model_forward.1} parent=1 // pred_region
      %18 = vsyncadd [#allocation3], 0
      %s20 = sshll.u32 %s1, 4
      %s21 = int_to_ptr.vmem [resolvable:$true] %s20
      %23 = dma.vmem_to_smem %s21, 16, [#allocation2], [#allocation3]
    $region9: #{model_forward.1} parent=1 // pred_fallthru
      _
    // Predicated region
    $region10: #{model_forward.1} parent=1 // pred_check
      _
    $region11: #{model_forward.1} parent=1 // pred_check_branch
      %25 = sbr.rel (0) target = $region13
    $region12: #{model_forward.1} parent=1 // pred_region
      %27 = vsyncadd [#allocation5], 0
      %s29 = sshll.u32 %s2, 4
      %s30 = int_to_ptr.vmem [resolvable:$true] %s29
      %32 = dma.vmem_to_smem %s30, 16, [#allocation4], [#allocation5]
    $region13: #{model_forward.1} parent=1 // pred_fallthru
      _
    // Predicated region
    $region14: #{model_forward.1} parent=1 // pred_check
      _
    $region15: #{model_forward.1} parent=1 // pred_check_branch
      %34 = sbr.rel (0) target = $region17
    $region16: #{model_forward.1} parent=1 // pred_region
      %36 = vsyncadd [#allocation5], 0
      %s38 = sshll.u32 %s3, 4
      %s39 = int_to_ptr.vmem [resolvable:$true] %s38
      %41 = dma.vmem_to_smem %s39, 48, [#allocation6], [#allocation5]
    $region17: #{model_forward.1} parent=1 // pred_fallthru
      _
    // Predicated region
    $region18: #{model_forward.1} parent=1 // pred_check
      _
    $region19: #{model_forward.1} parent=1 // pred_check_branch
      %43 = sbr.rel (0) target = $region21
    $region20: #{model_forward.1} parent=1 // pred_region
      %45 = vsyncadd [#allocation8], 0
      %s47 = sshll.u32 %s4, 4
      %s48 = int_to_ptr.vmem [resolvable:$true] %s47
      %50 = dma.vmem_to_smem %s48, 16, [#allocation7], [#allocation8]
    $region21: #{model_forward.1} parent=1 // pred_fallthru
      _
    // Predicated region
    $region22: #{model_forward.1} parent=1 // pred_check
      _
    $region23: #{model_forward.1} parent=1 // pred_check_branch
      %52 = sbr.rel (0) target = $region25
    $region24: #{model_forward.1} parent=1 // pred_region
      %54 = dma.done [#allocation3], 16
    $region25: #{model_forward.1} parent=1 // pred_fallthru
      _
    // Predicated region
    $region26: #{model_forward.1} parent=1 // pred_check
      _
    $region27: #{model_forward.1} parent=1 // pred_check_branch
      %56 = sbr.rel (0) target = $region29
    $region28: #{model_forward.1} parent=1 // pred_region
      %58 = dma.done [#allocation5], 16
    $region29: #{model_forward.1} parent=1 // pred_fallthru
      _
    // Predicated region
    $region30: #{model_forward.1} parent=1 // pred_check
      _
    $region31: #{model_forward.1} parent=1 // pred_check_branch
      %60 = sbr.rel (0) target = $region33
    $region32: #{model_forward.1} parent=1 // pred_region
      %62 = dma.done [#allocation5], 48
    $region33: #{model_forward.1} parent=1 // pred_fallthru
      _
    // Predicated region
    $region34: #{model_forward.1} parent=1 // pred_check
      _
    $region35: #{model_forward.1} parent=1 // pred_check_branch
      %64 = sbr.rel (0) target = $region37
    $region36: #{model_forward.1} parent=1 // pred_region
      %66 = dma.done [#allocation8], 16
    $region37: #{model_forward.1} parent=1 // pred_fallthru
      _
    %67 = sfence
    %s68 = sld [smem:[#allocation7]]
    %v69 = vstv %s68
    %s70 = sld [smem:[#allocation7 + $0x1]]
    %v71 = vstv %s70
    %s72 = sld [smem:[#allocation7 + $0x2]]
    %v73 = vstv %s72
    %s74 = sld [smem:[#allocation7 + $0x3]]
    %v75 = vstv %s74
    %s76 = sld [smem:[#allocation7 + $0x4]]
    %v77 = vstv %s76
    %s78 = sld [smem:[#allocation4]]
    %s79 = sld [smem:[#allocation2]]
    %s80 = sld [smem:[#allocation2 + $0x4]]
    %s81 = sld [smem:[#allocation2 + $0x8]]
    %s82 = sld [smem:[#allocation2 + $0xc]]
    %v83 = vld [vmem:[%s0] sm:$0xff]
    %v84 = vld [vmem:[%s0 + $0x8] sm:$0xff]
    %v85 = vstv %s79
    %v86 = vmul.f32 %v85, %v83
    %v87 = vmul.f32 %v85, %v84
    %s88 = scalar_lea.vmem %s0, 16
    %v89 = vld [vmem:[%s88] sm:$0xff]
    %v90 = vld [vmem:[%s88 + $0x8] sm:$0xff]
    %v91 = vstv %s80
    %v92 = vmul.f32 %v91, %v89
    %v93 = vmul.f32 %v91, %v90
    %v94 = vadd.f32 %v86, %v92
    %v95 = vadd.f32 %v87, %v93
    %s96 = scalar_lea.vmem %s0, 32
    %v97 = vld [vmem:[%s96] sm:$0xff]
    %v98 = vld [vmem:[%s96 + $0x8] sm:$0xff]
    %v99 = vstv %s81
    %v100 = vmul.f32 %v99, %v97
    %v101 = vmul.f32 %v99, %v98
    %v102 = vadd.f32 %v94, %v100
    %v103 = vadd.f32 %v95, %v101
    %s104 = scalar_lea.vmem %s0, 48
    %v105 = vld [vmem:[%s104] sm:$0xff]
    %v106 = vld [vmem:[%s104 + $0x8] sm:$0xff]
    %v107 = vstv %s82
    %v108 = vmul.f32 %v107, %v105
    %v109 = vmul.f32 %v107, %v106
    %v110 = vadd.f32 %v102, %v108
    %v111 = vadd.f32 %v103, %v109
    %v112 = vstv %s78
    %v113 = vadd.f32 %v110, %v112
    %v114 = vadd.f32 %v111, %v112
    %v115 = vtanh.pop %v113
    %v116 = vtanh.pop %v114
    %s117 = scalar_lea.vmem %s0, 64
    %v118 = vld [vmem:[%s117] sm:$0xff]
    %v119 = vld [vmem:[%s117 + $0x8] sm:$0xff]
    %v120 = vmul.f32 %v85, %v118
    %v121 = vmul.f32 %v85, %v119
    %s122 = scalar_lea.vmem %s0, 80
    %v123 = vld [vmem:[%s122] sm:$0xff]
    %v124 = vld [vmem:[%s122 + $0x8] sm:$0xff]
    %v125 = vmul.f32 %v91, %v123
    %v126 = vmul.f32 %v91, %v124
    %v127 = vadd.f32 %v120, %v125
    %v128 = vadd.f32 %v121, %v126
    %s129 = scalar_lea.vmem %s0, 96
    %v130 = vld [vmem:[%s129] sm:$0xff]
    %v131 = vld [vmem:[%s129 + $0x8] sm:$0xff]
    %v132 = vmul.f32 %v99, %v130
    %v133 = vmul.f32 %v99, %v131
    %v134 = vadd.f32 %v127, %v132
    %v135 = vadd.f32 %v128, %v133
    %s136 = scalar_lea.vmem %s0, 112
    %v137 = vld [vmem:[%s136] sm:$0xff]
    %v138 = vld [vmem:[%s136 + $0x8] sm:$0xff]
    %v139 = vmul.f32 %v107, %v137
    %v140 = vmul.f32 %v107, %v138
    %v141 = vadd.f32 %v134, %v139
    %v142 = vadd.f32 %v135, %v140
    %v143 = vadd.f32 %v141, %v112
    %v144 = vadd.f32 %v142, %v112
    %v145 = vtanh.pop %v143
    %v146 = vtanh.pop %v144
    %s147 = scalar_lea.vmem %s0, 128
    %v148 = vld [vmem:[%s147] sm:$0xff]
    %v149 = vld [vmem:[%s147 + $0x8] sm:$0xff]
    %v150 = vmul.f32 %v85, %v148
    %v151 = vmul.f32 %v85, %v149
    %s152 = scalar_lea.vmem %s0, 144
    %v153 = vld [vmem:[%s152] sm:$0xff]
    %v154 = vld [vmem:[%s152 + $0x8] sm:$0xff]
    %v155 = vmul.f32 %v91, %v153
    %v156 = vmul.f32 %v91, %v154
    %v157 = vadd.f32 %v150, %v155
    %v158 = vadd.f32 %v151, %v156
    %s159 = scalar_lea.vmem %s0, 160
    %v160 = vld [vmem:[%s159] sm:$0xff]
    %v161 = vld [vmem:[%s159 + $0x8] sm:$0xff]
    %v162 = vmul.f32 %v99, %v160
    %v163 = vmul.f32 %v99, %v161
    %v164 = vadd.f32 %v157, %v162
    %v165 = vadd.f32 %v158, %v163
    %s166 = scalar_lea.vmem %s0, 176
    %v167 = vld [vmem:[%s166] sm:$0xff]
    %v168 = vld [vmem:[%s166 + $0x8] sm:$0xff]
    %v169 = vmul.f32 %v107, %v167
    %v170 = vmul.f32 %v107, %v168
    %v171 = vadd.f32 %v164, %v169
    %v172 = vadd.f32 %v165, %v170
    %v173 = vadd.f32 %v171, %v112
    %v174 = vadd.f32 %v172, %v112
    %v175 = vtanh.pop %v173
    %v176 = vtanh.pop %v174
    %s177 = scalar_lea.vmem %s0, 192
    %v178 = vld [vmem:[%s177] sm:$0xff]
    %v179 = vld [vmem:[%s177 + $0x8] sm:$0xff]
    %v180 = vmul.f32 %v85, %v178
    %v181 = vmul.f32 %v85, %v179
    %s182 = scalar_lea.vmem %s0, 208
    %v183 = vld [vmem:[%s182] sm:$0xff]
    %v184 = vld [vmem:[%s182 + $0x8] sm:$0xff]
    %v185 = vmul.f32 %v91, %v183
    %v186 = vmul.f32 %v91, %v184
    %v187 = vadd.f32 %v180, %v185
    %v188 = vadd.f32 %v181, %v186
    %s189 = scalar_lea.vmem %s0, 224
    %v190 = vld [vmem:[%s189] sm:$0xff]
    %v191 = vld [vmem:[%s189 + $0x8] sm:$0xff]
    %v192 = vmul.f32 %v99, %v190
    %v193 = vmul.f32 %v99, %v191
    %v194 = vadd.f32 %v187, %v192
    %v195 = vadd.f32 %v188, %v193
    %s196 = scalar_lea.vmem %s0, 240
    %v197 = vld [vmem:[%s196] sm:$0xff]
    %v198 = vld [vmem:[%s196 + $0x8] sm:$0xff]
    %v199 = vmul.f32 %v107, %v197
    %v200 = vmul.f32 %v107, %v198
    %v201 = vadd.f32 %v194, %v199
    %v202 = vadd.f32 %v195, %v200
    %v203 = vadd.f32 %v201, %v112
    %v204 = vadd.f32 %v202, %v112
    %v205 = vtanh.pop %v203
    %v206 = vtanh.pop %v204
    %s207 = sld [smem:[#allocation6]]
    %v208 = vstv %s207
    %v209 = vmul.f32 %v208, %v115
    %v210 = vmul.f32 %v208, %v116
    %v211 = vadd.f32 %v69, %v209
    %v212 = vadd.f32 %v69, %v210
    %s213 = sld [smem:[#allocation6 + $0x3c]]
    %v214 = vstv %s213
    %v215 = vmul.f32 %v214, %v115
    %v216 = vmul.f32 %v214, %v116
    %v217 = vadd.f32 %v71, %v215
    %v218 = vadd.f32 %v71, %v216
    %s219 = sld [smem:[#allocation6 + $0x78]]
    %v220 = vstv %s219
    %v221 = vmul.f32 %v220, %v115
    %v222 = vmul.f32 %v220, %v116
    %v223 = vadd.f32 %v73, %v221
    %v224 = vadd.f32 %v73, %v222
    %s225 = sld [smem:[#allocation6 + $0xb4]]
    %v226 = vstv %s225
    %v227 = vmul.f32 %v226, %v115
    %v228 = vmul.f32 %v226, %v116
    %v229 = vadd.f32 %v75, %v227
    %v230 = vadd.f32 %v75, %v228
    %s231 = sld [smem:[#allocation6 + $0xf0]]
    %v232 = vstv %s231
    %v233 = vmul.f32 %v232, %v115
    %v234 = vmul.f32 %v232, %v116
    %v235 = vadd.f32 %v77, %v233
    %v236 = vadd.f32 %v77, %v234
    %s237 = sld [smem:[#allocation6 + $0x1]]
    %v238 = vstv %s237
    %v239 = vmul.f32 %v238, %v145
    %v240 = vmul.f32 %v238, %v146
    %v241 = vadd.f32 %v211, %v239
    %v242 = vadd.f32 %v212, %v240
    %s243 = sld [smem:[#allocation6 + $0x3d]]
    %v244 = vstv %s243
    %v245 = vmul.f32 %v244, %v145
    %v246 = vmul.f32 %v244, %v146
    %v247 = vadd.f32 %v217, %v245
    %v248 = vadd.f32 %v218, %v246
    %s249 = sld [smem:[#allocation6 + $0x79]]
    %v250 = vstv %s249
    %v251 = vmul.f32 %v250, %v145
    %v252 = vmul.f32 %v250, %v146
    %v253 = vadd.f32 %v223, %v251
    %v254 = vadd.f32 %v224, %v252
    %s255 = sld [smem:[#allocation6 + $0xb5]]
    %v256 = vstv %s255
    %v257 = vmul.f32 %v256, %v145
    %v258 = vmul.f32 %v256, %v146
    %v259 = vadd.f32 %v229, %v257
    %v260 = vadd.f32 %v230, %v258
    %s261 = sld [smem:[#allocation6 + $0xf1]]
    %v262 = vstv %s261
    %v263 = vmul.f32 %v262, %v145
    %v264 = vmul.f32 %v262, %v146
    %v265 = vadd.f32 %v235, %v263
    %v266 = vadd.f32 %v236, %v264
    %s267 = sld [smem:[#allocation6 + $0x2]]
    %v268 = vstv %s267
    %v269 = vmul.f32 %v268, %v115
    %v270 = vmul.f32 %v268, %v116
    %273 = vrot.lane.b32.xlu0 %v269, 127
    %v274 = vpop.permute.xlu0 %273
    %275 = vrot.lane.b32.xlu0 %v270, 127
    %v276 = vpop.permute.xlu0 %275
    %v279 = vadd.f32 %v241, %v274
    %v280 = vadd.f32 %v242, %v276
    %s281 = sld [smem:[#allocation6 + $0x3e]]
    %v282 = vstv %s281
    %v283 = vmul.f32 %v282, %v115
    %v284 = vmul.f32 %v282, %v116
    %287 = vrot.lane.b32.xlu0 %v283, 127
    %v288 = vpop.permute.xlu0 %287
    %289 = vrot.lane.b32.xlu0 %v284, 127
    %v290 = vpop.permute.xlu0 %289
    %v293 = vadd.f32 %v247, %v288
    %v294 = vadd.f32 %v248, %v290
    %s295 = sld [smem:[#allocation6 + $0x7a]]
    %v296 = vstv %s295
    %v297 = vmul.f32 %v296, %v115
    %v298 = vmul.f32 %v296, %v116
    %301 = vrot.lane.b32.xlu0 %v297, 127
    %v302 = vpop.permute.xlu0 %301
    %303 = vrot.lane.b32.xlu0 %v298, 127
    %v304 = vpop.permute.xlu0 %303
    %v307 = vadd.f32 %v253, %v302
    %v308 = vadd.f32 %v254, %v304
    %s309 = sld [smem:[#allocation6 + $0xb6]]
    %v310 = vstv %s309
    %v311 = vmul.f32 %v310, %v115
    %v312 = vmul.f32 %v310, %v116
    %315 = vrot.lane.b32.xlu0 %v311, 127
    %v316 = vpop.permute.xlu0 %315
    %317 = vrot.lane.b32.xlu0 %v312, 127
    %v318 = vpop.permute.xlu0 %317
    %v321 = vadd.f32 %v259, %v316
    %v322 = vadd.f32 %v260, %v318
    %s323 = sld [smem:[#allocation6 + $0xf2]]
    %v324 = vstv %s323
    %v325 = vmul.f32 %v324, %v115
    %v326 = vmul.f32 %v324, %v116
    %329 = vrot.lane.b32.xlu0 %v325, 127
    %v330 = vpop.permute.xlu0 %329
    %331 = vrot.lane.b32.xlu0 %v326, 127
    %v332 = vpop.permute.xlu0 %331
    %v335 = vadd.f32 %v265, %v330
    %v336 = vadd.f32 %v266, %v332
    %s337 = sld [smem:[#allocation6 + $0x3]]
    %v338 = vstv %s337
    %v339 = vmul.f32 %v338, %v145
    %v340 = vmul.f32 %v338, %v146
    %343 = vrot.lane.b32.xlu0 %v339, 127
    %v344 = vpop.permute.xlu0 %343
    %345 = vrot.lane.b32.xlu0 %v340, 127
    %v346 = vpop.permute.xlu0 %345
    %v349 = vadd.f32 %v279, %v344
    %v350 = vadd.f32 %v280, %v346
    %s351 = sld [smem:[#allocation6 + $0x3f]]
    %v352 = vstv %s351
    %v353 = vmul.f32 %v352, %v145
    %v354 = vmul.f32 %v352, %v146
    %357 = vrot.lane.b32.xlu0 %v353, 127
    %v358 = vpop.permute.xlu0 %357
    %359 = vrot.lane.b32.xlu0 %v354, 127
    %v360 = vpop.permute.xlu0 %359
    %v363 = vadd.f32 %v293, %v358
    %v364 = vadd.f32 %v294, %v360
    %s365 = sld [smem:[#allocation6 + $0x7b]]
    %v366 = vstv %s365
    %v367 = vmul.f32 %v366, %v145
    %v368 = vmul.f32 %v366, %v146
    %371 = vrot.lane.b32.xlu0 %v367, 127
    %v372 = vpop.permute.xlu0 %371
    %373 = vrot.lane.b32.xlu0 %v368, 127
    %v374 = vpop.permute.xlu0 %373
    %v377 = vadd.f32 %v307, %v372
    %v378 = vadd.f32 %v308, %v374
    %s379 = sld [smem:[#allocation6 + $0xb7]]
    %v380 = vstv %s379
    %v381 = vmul.f32 %v380, %v145
    %v382 = vmul.f32 %v380, %v146
    %385 = vrot.lane.b32.xlu0 %v381, 127
    %v386 = vpop.permute.xlu0 %385
    %387 = vrot.lane.b32.xlu0 %v382, 127
    %v388 = vpop.permute.xlu0 %387
    %v391 = vadd.f32 %v321, %v386
    %v392 = vadd.f32 %v322, %v388
    %s393 = sld [smem:[#allocation6 + $0xf3]]
    %v394 = vstv %s393
    %v395 = vmul.f32 %v394, %v145
    %v396 = vmul.f32 %v394, %v146
    %399 = vrot.lane.b32.xlu0 %v395, 127
    %v400 = vpop.permute.xlu0 %399
    %401 = vrot.lane.b32.xlu0 %v396, 127
    %v402 = vpop.permute.xlu0 %401
    %v405 = vadd.f32 %v335, %v400
    %v406 = vadd.f32 %v336, %v402
    %s407 = sld [smem:[#allocation6 + $0x4]]
    %v408 = vstv %s407
    %v409 = vmul.f32 %v408, %v115
    %v410 = vmul.f32 %v408, %v116
    %413 = vrot.lane.b32.xlu0 %v409, 126
    %v414 = vpop.permute.xlu0 %413
    %415 = vrot.lane.b32.xlu0 %v410, 126
    %v416 = vpop.permute.xlu0 %415
    %v419 = vadd.f32 %v349, %v414
    %v420 = vadd.f32 %v350, %v416
    %s421 = sld [smem:[#allocation6 + $0x40]]
    %v422 = vstv %s421
    %v423 = vmul.f32 %v422, %v115
    %v424 = vmul.f32 %v422, %v116
    %427 = vrot.lane.b32.xlu0 %v423, 126
    %v428 = vpop.permute.xlu0 %427
    %429 = vrot.lane.b32.xlu0 %v424, 126
    %v430 = vpop.permute.xlu0 %429
    %v433 = vadd.f32 %v363, %v428
    %v434 = vadd.f32 %v364, %v430
    %s435 = sld [smem:[#allocation6 + $0x7c]]
    %v436 = vstv %s435
    %v437 = vmul.f32 %v436, %v115
    %v438 = vmul.f32 %v436, %v116
    %441 = vrot.lane.b32.xlu0 %v437, 126
    %v442 = vpop.permute.xlu0 %441
    %443 = vrot.lane.b32.xlu0 %v438, 126
    %v444 = vpop.permute.xlu0 %443
    %v447 = vadd.f32 %v377, %v442
    %v448 = vadd.f32 %v378, %v444
    %s449 = sld [smem:[#allocation6 + $0xb8]]
    %v450 = vstv %s449
    %v451 = vmul.f32 %v450, %v115
    %v452 = vmul.f32 %v450, %v116
    %455 = vrot.lane.b32.xlu0 %v451, 126
    %v456 = vpop.permute.xlu0 %455
    %457 = vrot.lane.b32.xlu0 %v452, 126
    %v458 = vpop.permute.xlu0 %457
    %v461 = vadd.f32 %v391, %v456
    %v462 = vadd.f32 %v392, %v458
    %s463 = sld [smem:[#allocation6 + $0xf4]]
    %v464 = vstv %s463
    %v465 = vmul.f32 %v464, %v115
    %v466 = vmul.f32 %v464, %v116
    %469 = vrot.lane.b32.xlu0 %v465, 126
    %v470 = vpop.permute.xlu0 %469
    %471 = vrot.lane.b32.xlu0 %v466, 126
    %v472 = vpop.permute.xlu0 %471
    %v475 = vadd.f32 %v405, %v470
    %v476 = vadd.f32 %v406, %v472
    %s477 = sld [smem:[#allocation6 + $0x5]]
    %v478 = vstv %s477
    %v479 = vmul.f32 %v478, %v175
    %v480 = vmul.f32 %v478, %v176
    %v481 = vadd.f32 %v419, %v479
    %v482 = vadd.f32 %v420, %v480
    %s483 = sld [smem:[#allocation6 + $0x41]]
    %v484 = vstv %s483
    %v485 = vmul.f32 %v484, %v175
    %v486 = vmul.f32 %v484, %v176
    %v487 = vadd.f32 %v433, %v485
    %v488 = vadd.f32 %v434, %v486
    %s489 = sld [smem:[#allocation6 + $0x7d]]
    %v490 = vstv %s489
    %v491 = vmul.f32 %v490, %v175
    %v492 = vmul.f32 %v490, %v176
    %v493 = vadd.f32 %v447, %v491
    %v494 = vadd.f32 %v448, %v492
    %s495 = sld [smem:[#allocation6 + $0xb9]]
    %v496 = vstv %s495
    %v497 = vmul.f32 %v496, %v175
    %v498 = vmul.f32 %v496, %v176
    %v499 = vadd.f32 %v461, %v497
    %v500 = vadd.f32 %v462, %v498
    %s501 = sld [smem:[#allocation6 + $0xf5]]
    %v502 = vstv %s501
    %v503 = vmul.f32 %v502, %v175
    %v504 = vmul.f32 %v502, %v176
    %v505 = vadd.f32 %v475, %v503
    %v506 = vadd.f32 %v476, %v504
    %s507 = sld [smem:[#allocation6 + $0x6]]
    %v508 = vstv %s507
    %v509 = vmul.f32 %v508, %v205
    %v510 = vmul.f32 %v508, %v206
    %v511 = vadd.f32 %v481, %v509
    %v512 = vadd.f32 %v482, %v510
    %s513 = sld [smem:[#allocation6 + $0x42]]
    %v514 = vstv %s513
    %v515 = vmul.f32 %v514, %v205
    %v516 = vmul.f32 %v514, %v206
    %v517 = vadd.f32 %v487, %v515
    %v518 = vadd.f32 %v488, %v516
    %s519 = sld [smem:[#allocation6 + $0x7e]]
    %v520 = vstv %s519
    %v521 = vmul.f32 %v520, %v205
    %v522 = vmul.f32 %v520, %v206
    %v523 = vadd.f32 %v493, %v521
    %v524 = vadd.f32 %v494, %v522
    %s525 = sld [smem:[#allocation6 + $0xba]]
    %v526 = vstv %s525
    %v527 = vmul.f32 %v526, %v205
    %v528 = vmul.f32 %v526, %v206
    %v529 = vadd.f32 %v499, %v527
    %v530 = vadd.f32 %v500, %v528
    %s531 = sld [smem:[#allocation6 + $0xf6]]
    %v532 = vstv %s531
    %v533 = vmul.f32 %v532, %v205
    %v534 = vmul.f32 %v532, %v206
    %v535 = vadd.f32 %v505, %v533
    %v536 = vadd.f32 %v506, %v534
    %s537 = sld [smem:[#allocation6 + $0x7]]
    %v538 = vstv %s537
    %v539 = vmul.f32 %v538, %v175
    %v540 = vmul.f32 %v538, %v176
    %543 = vrot.lane.b32.xlu0 %v539, 127
    %v544 = vpop.permute.xlu0 %543
    %545 = vrot.lane.b32.xlu0 %v540, 127
    %v546 = vpop.permute.xlu0 %545
    %v549 = vadd.f32 %v511, %v544
    %v550 = vadd.f32 %v512, %v546
    %s551 = sld [smem:[#allocation6 + $0x43]]
    %v552 = vstv %s551
    %v553 = vmul.f32 %v552, %v175
    %v554 = vmul.f32 %v552, %v176
    %557 = vrot.lane.b32.xlu0 %v553, 127
    %v558 = vpop.permute.xlu0 %557
    %559 = vrot.lane.b32.xlu0 %v554, 127
    %v560 = vpop.permute.xlu0 %559
    %v563 = vadd.f32 %v517, %v558
    %v564 = vadd.f32 %v518, %v560
    %s565 = sld [smem:[#allocation6 + $0x7f]]
    %v566 = vstv %s565
    %v567 = vmul.f32 %v566, %v175
    %v568 = vmul.f32 %v566, %v176
    %571 = vrot.lane.b32.xlu0 %v567, 127
    %v572 = vpop.permute.xlu0 %571
    %573 = vrot.lane.b32.xlu0 %v568, 127
    %v574 = vpop.permute.xlu0 %573
    %v577 = vadd.f32 %v523, %v572
    %v578 = vadd.f32 %v524, %v574
    %s579 = sld [smem:[#allocation6 + $0xbb]]
    %v580 = vstv %s579
    %v581 = vmul.f32 %v580, %v175
    %v582 = vmul.f32 %v580, %v176
    %585 = vrot.lane.b32.xlu0 %v581, 127
    %v586 = vpop.permute.xlu0 %585
    %587 = vrot.lane.b32.xlu0 %v582, 127
    %v588 = vpop.permute.xlu0 %587
    %v591 = vadd.f32 %v529, %v586
    %v592 = vadd.f32 %v530, %v588
    %s593 = sld [smem:[#allocation6 + $0xf7]]
    %v594 = vstv %s593
    %v595 = vmul.f32 %v594, %v175
    %v596 = vmul.f32 %v594, %v176
    %599 = vrot.lane.b32.xlu0 %v595, 127
    %v600 = vpop.permute.xlu0 %599
    %601 = vrot.lane.b32.xlu0 %v596, 127
    %v602 = vpop.permute.xlu0 %601
    %v605 = vadd.f32 %v535, %v600
    %v606 = vadd.f32 %v536, %v602
    %s607 = sld [smem:[#allocation6 + $0x8]]
    %v608 = vstv %s607
    %v609 = vmul.f32 %v608, %v205
    %v610 = vmul.f32 %v608, %v206
    %613 = vrot.lane.b32.xlu0 %v609, 127
    %v614 = vpop.permute.xlu0 %613
    %615 = vrot.lane.b32.xlu0 %v610, 127
    %v616 = vpop.permute.xlu0 %615
    %v619 = vadd.f32 %v549, %v614
    %v620 = vadd.f32 %v550, %v616
    %s621 = sld [smem:[#allocation6 + $0x44]]
    %v622 = vstv %s621
    %v623 = vmul.f32 %v622, %v205
    %v624 = vmul.f32 %v622, %v206
    %627 = vrot.lane.b32.xlu0 %v623, 127
    %v628 = vpop.permute.xlu0 %627
    %629 = vrot.lane.b32.xlu0 %v624, 127
    %v630 = vpop.permute.xlu0 %629
    %v633 = vadd.f32 %v563, %v628
    %v634 = vadd.f32 %v564, %v630
    %s635 = sld [smem:[#allocation6 + $0x80]]
    %v636 = vstv %s635
    %v637 = vmul.f32 %v636, %v205
    %v638 = vmul.f32 %v636, %v206
    %641 = vrot.lane.b32.xlu0 %v637, 127
    %v642 = vpop.permute.xlu0 %641
    %643 = vrot.lane.b32.xlu0 %v638, 127
    %v644 = vpop.permute.xlu0 %643
    %v647 = vadd.f32 %v577, %v642
    %v648 = vadd.f32 %v578, %v644
    %s649 = sld [smem:[#allocation6 + $0xbc]]
    %v650 = vstv %s649
    %v651 = vmul.f32 %v650, %v205
    %v652 = vmul.f32 %v650, %v206
    %655 = vrot.lane.b32.xlu0 %v651, 127
    %v656 = vpop.permute.xlu0 %655
    %657 = vrot.lane.b32.xlu0 %v652, 127
    %v658 = vpop.permute.xlu0 %657
    %v661 = vadd.f32 %v591, %v656
    %v662 = vadd.f32 %v592, %v658
    %s663 = sld [smem:[#allocation6 + $0xf8]]
    %v664 = vstv %s663
    %v665 = vmul.f32 %v664, %v205
    %v666 = vmul.f32 %v664, %v206
    %669 = vrot.lane.b32.xlu0 %v665, 127
    %v670 = vpop.permute.xlu0 %669
    %671 = vrot.lane.b32.xlu0 %v666, 127
    %v672 = vpop.permute.xlu0 %671
    %v675 = vadd.f32 %v605, %v670
    %v676 = vadd.f32 %v606, %v672
    %s677 = sld [smem:[#allocation6 + $0x9]]
    %v678 = vstv %s677
    %v679 = vmul.f32 %v678, %v175
    %v680 = vmul.f32 %v678, %v176
    %683 = vrot.lane.b32.xlu0 %v679, 126
    %v684 = vpop.permute.xlu0 %683
    %685 = vrot.lane.b32.xlu0 %v680, 126
    %v686 = vpop.permute.xlu0 %685
    %v689 = vadd.f32 %v619, %v684
    %v690 = vadd.f32 %v620, %v686
    %s691 = sld [smem:[#allocation6 + $0x45]]
    %v692 = vstv %s691
    %v693 = vmul.f32 %v692, %v175
    %v694 = vmul.f32 %v692, %v176
    %697 = vrot.lane.b32.xlu0 %v693, 126
    %v698 = vpop.permute.xlu0 %697
    %699 = vrot.lane.b32.xlu0 %v694, 126
    %v700 = vpop.permute.xlu0 %699
    %v703 = vadd.f32 %v633, %v698
    %v704 = vadd.f32 %v634, %v700
    %s705 = sld [smem:[#allocation6 + $0x81]]
    %v706 = vstv %s705
    %v707 = vmul.f32 %v706, %v175
    %v708 = vmul.f32 %v706, %v176
    %711 = vrot.lane.b32.xlu0 %v707, 126
    %v712 = vpop.permute.xlu0 %711
    %713 = vrot.lane.b32.xlu0 %v708, 126
    %v714 = vpop.permute.xlu0 %713
    %v717 = vadd.f32 %v647, %v712
    %v718 = vadd.f32 %v648, %v714
    %s719 = sld [smem:[#allocation6 + $0xbd]]
    %v720 = vstv %s719
    %v721 = vmul.f32 %v720, %v175
    %v722 = vmul.f32 %v720, %v176
    %725 = vrot.lane.b32.xlu0 %v721, 126
    %v726 = vpop.permute.xlu0 %725
    %727 = vrot.lane.b32.xlu0 %v722, 126
    %v728 = vpop.permute.xlu0 %727
    %v731 = vadd.f32 %v661, %v726
    %v732 = vadd.f32 %v662, %v728
    %s733 = sld [smem:[#allocation6 + $0xf9]]
    %v734 = vstv %s733
    %v735 = vmul.f32 %v734, %v175
    %v736 = vmul.f32 %v734, %v176
    %739 = vrot.lane.b32.xlu0 %v735, 126
    %v740 = vpop.permute.xlu0 %739
    %741 = vrot.lane.b32.xlu0 %v736, 126
    %v742 = vpop.permute.xlu0 %741
    %v745 = vadd.f32 %v675, %v740
    %v746 = vadd.f32 %v676, %v742
    %s747 = sld [smem:[#allocation6 + $0xa]]
    %v748 = vstv %s747
    %v749 = vmul.f32 %v748, %v115
    %v750 = vmul.f32 %v748, %v116
    %v753 = vrot.slane %v749, 1
    %v754 = vrot.slane %v750, 1
    %v757 = vadd.f32 %v689, %v753
    %v758 = vadd.f32 %v690, %v754
    %s759 = sld [smem:[#allocation6 + $0x46]]
    %v760 = vstv %s759
    %v761 = vmul.f32 %v760, %v115
    %v762 = vmul.f32 %v760, %v116
    %v765 = vrot.slane %v761, 1
    %v766 = vrot.slane %v762, 1
    %v769 = vadd.f32 %v703, %v765
    %v770 = vadd.f32 %v704, %v766
    %s771 = sld [smem:[#allocation6 + $0x82]]
    %v772 = vstv %s771
    %v773 = vmul.f32 %v772, %v115
    %v774 = vmul.f32 %v772, %v116
    %v777 = vrot.slane %v773, 1
    %v778 = vrot.slane %v774, 1
    %v781 = vadd.f32 %v717, %v777
    %v782 = vadd.f32 %v718, %v778
    %s783 = sld [smem:[#allocation6 + $0xbe]]
    %v784 = vstv %s783
    %v785 = vmul.f32 %v784, %v115
    %v786 = vmul.f32 %v784, %v116
    %v789 = vrot.slane %v785, 1
    %v790 = vrot.slane %v786, 1
    %v793 = vadd.f32 %v731, %v789
    %v794 = vadd.f32 %v732, %v790
    %s795 = sld [smem:[#allocation6 + $0xfa]]
    %v796 = vstv %s795
    %v797 = vmul.f32 %v796, %v115
    %v798 = vmul.f32 %v796, %v116
    %v801 = vrot.slane %v797, 1
    %v802 = vrot.slane %v798, 1
    %v805 = vadd.f32 %v745, %v801
    %v806 = vadd.f32 %v746, %v802
    %s807 = sld [smem:[#allocation6 + $0xb]]
    %v808 = vstv %s807
    %v809 = vmul.f32 %v808, %v145
    %v810 = vmul.f32 %v808, %v146
    %v813 = vrot.slane %v809, 1
    %v814 = vrot.slane %v810, 1
    %v817 = vadd.f32 %v757, %v813
    %v818 = vadd.f32 %v758, %v814
    %s819 = sld [smem:[#allocation6 + $0x47]]
    %v820 = vstv %s819
    %v821 = vmul.f32 %v820, %v145
    %v822 = vmul.f32 %v820, %v146
    %v825 = vrot.slane %v821, 1
    %v826 = vrot.slane %v822, 1
    %v829 = vadd.f32 %v769, %v825
    %v830 = vadd.f32 %v770, %v826
    %s831 = sld [smem:[#allocation6 + $0x83]]
    %v832 = vstv %s831
    %v833 = vmul.f32 %v832, %v145
    %v834 = vmul.f32 %v832, %v146
    %v837 = vrot.slane %v833, 1
    %v838 = vrot.slane %v834, 1
    %v841 = vadd.f32 %v781, %v837
    %v842 = vadd.f32 %v782, %v838
    %s843 = sld [smem:[#allocation6 + $0xbf]]
    %v844 = vstv %s843
    %v845 = vmul.f32 %v844, %v145
    %v846 = vmul.f32 %v844, %v146
    %v849 = vrot.slane %v845, 1
    %v850 = vrot.slane %v846, 1
    %v853 = vadd.f32 %v793, %v849
    %v854 = vadd.f32 %v794, %v850
    %s855 = sld [smem:[#allocation6 + $0xfb]]
    %v856 = vstv %s855
    %v857 = vmul.f32 %v856, %v145
    %v858 = vmul.f32 %v856, %v146
    %v861 = vrot.slane %v857, 1
    %v862 = vrot.slane %v858, 1
    %v865 = vadd.f32 %v805, %v861
    %v866 = vadd.f32 %v806, %v862
    %s867 = sld [smem:[#allocation6 + $0xc]]
    %v868 = vstv %s867
    %v869 = vmul.f32 %v868, %v115
    %v870 = vmul.f32 %v868, %v116
    %v873 = vrot.slane %v869, 1
    %v874 = vrot.slane %v870, 1
    %875 = vrot.lane.b32.xlu0 %v873, 127
    %v876 = vpop.permute.xlu0 %875
    %877 = vrot.lane.b32.xlu0 %v874, 127
    %v878 = vpop.permute.xlu0 %877
    %v881 = vadd.f32 %v817, %v876
    %v882 = vadd.f32 %v818, %v878
    %s883 = sld [smem:[#allocation6 + $0x48]]
    %v884 = vstv %s883
    %v885 = vmul.f32 %v884, %v115
    %v886 = vmul.f32 %v884, %v116
    %v889 = vrot.slane %v885, 1
    %v890 = vrot.slane %v886, 1
    %891 = vrot.lane.b32.xlu0 %v889, 127
    %v892 = vpop.permute.xlu0 %891
    %893 = vrot.lane.b32.xlu0 %v890, 127
    %v894 = vpop.permute.xlu0 %893
    %v897 = vadd.f32 %v829, %v892
    %v898 = vadd.f32 %v830, %v894
    %s899 = sld [smem:[#allocation6 + $0x84]]
    %v900 = vstv %s899
    %v901 = vmul.f32 %v900, %v115
    %v902 = vmul.f32 %v900, %v116
    %v905 = vrot.slane %v901, 1
    %v906 = vrot.slane %v902, 1
    %907 = vrot.lane.b32.xlu0 %v905, 127
    %v908 = vpop.permute.xlu0 %907
    %909 = vrot.lane.b32.xlu0 %v906, 127
    %v910 = vpop.permute.xlu0 %909
    %v913 = vadd.f32 %v841, %v908
    %v914 = vadd.f32 %v842, %v910
    %s915 = sld [smem:[#allocation6 + $0xc0]]
    %v916 = vstv %s915
    %v917 = vmul.f32 %v916, %v115
    %v918 = vmul.f32 %v916, %v116
    %v921 = vrot.slane %v917, 1
    %v922 = vrot.slane %v918, 1
    %923 = vrot.lane.b32.xlu0 %v921, 127
    %v924 = vpop.permute.xlu0 %923
    %925 = vrot.lane.b32.xlu0 %v922, 127
    %v926 = vpop.permute.xlu0 %925
    %v929 = vadd.f32 %v853, %v924
    %v930 = vadd.f32 %v854, %v926
    %s931 = sld [smem:[#allocation6 + $0xfc]]
    %v932 = vstv %s931
    %v933 = vmul.f32 %v932, %v115
    %v934 = vmul.f32 %v932, %v116
    %v937 = vrot.slane %v933, 1
    %v938 = vrot.slane %v934, 1
    %939 = vrot.lane.b32.xlu0 %v937, 127
    %v940 = vpop.permute.xlu0 %939
    %941 = vrot.lane.b32.xlu0 %v938, 127
    %v942 = vpop.permute.xlu0 %941
    %v945 = vadd.f32 %v865, %v940
    %v946 = vadd.f32 %v866, %v942
    %s947 = sld [smem:[#allocation6 + $0xd]]
    %v948 = vstv %s947
    %v949 = vmul.f32 %v948, %v145
    %v950 = vmul.f32 %v948, %v146
    %v953 = vrot.slane %v949, 1
    %v954 = vrot.slane %v950, 1
    %955 = vrot.lane.b32.xlu0 %v953, 127
    %v956 = vpop.permute.xlu0 %955
    %957 = vrot.lane.b32.xlu0 %v954, 127
    %v958 = vpop.permute.xlu0 %957
    %v961 = vadd.f32 %v881, %v956
    %v962 = vadd.f32 %v882, %v958
    %s963 = sld [smem:[#allocation6 + $0x49]]
    %v964 = vstv %s963
    %v965 = vmul.f32 %v964, %v145
    %v966 = vmul.f32 %v964, %v146
    %v969 = vrot.slane %v965, 1
    %v970 = vrot.slane %v966, 1
    %971 = vrot.lane.b32.xlu0 %v969, 127
    %v972 = vpop.permute.xlu0 %971
    %973 = vrot.lane.b32.xlu0 %v970, 127
    %v974 = vpop.permute.xlu0 %973
    %v977 = vadd.f32 %v897, %v972
    %v978 = vadd.f32 %v898, %v974
    %s979 = sld [smem:[#allocation6 + $0x85]]
    %v980 = vstv %s979
    %v981 = vmul.f32 %v980, %v145
    %v982 = vmul.f32 %v980, %v146
    %v985 = vrot.slane %v981, 1
    %v986 = vrot.slane %v982, 1
    %987 = vrot.lane.b32.xlu0 %v985, 127
    %v988 = vpop.permute.xlu0 %987
    %989 = vrot.lane.b32.xlu0 %v986, 127
    %v990 = vpop.permute.xlu0 %989
    %v993 = vadd.f32 %v913, %v988
    %v994 = vadd.f32 %v914, %v990
    %s995 = sld [smem:[#allocation6 + $0xc1]]
    %v996 = vstv %s995
    %v997 = vmul.f32 %v996, %v145
    %v998 = vmul.f32 %v996, %v146
    %v1001 = vrot.slane %v997, 1
    %v1002 = vrot.slane %v998, 1
    %1003 = vrot.lane.b32.xlu0 %v1001, 127
    %v1004 = vpop.permute.xlu0 %1003
    %1005 = vrot.lane.b32.xlu0 %v1002, 127
    %v1006 = vpop.permute.xlu0 %1005
    %v1009 = vadd.f32 %v929, %v1004
    %v1010 = vadd.f32 %v930, %v1006
    %s1011 = sld [smem:[#allocation6 + $0xfd]]
    %v1012 = vstv %s1011
    %v1013 = vmul.f32 %v1012, %v145
    %v1014 = vmul.f32 %v1012, %v146
    %v1017 = vrot.slane %v1013, 1
    %v1018 = vrot.slane %v1014, 1
    %1019 = vrot.lane.b32.xlu0 %v1017, 127
    %v1020 = vpop.permute.xlu0 %1019
    %1021 = vrot.lane.b32.xlu0 %v1018, 127
    %v1022 = vpop.permute.xlu0 %1021
    %v1025 = vadd.f32 %v945, %v1020
    %v1026 = vadd.f32 %v946, %v1022
    %s1027 = sld [smem:[#allocation6 + $0xe]]
    %v1028 = vstv %s1027
    %v1029 = vmul.f32 %v1028, %v115
    %v1030 = vmul.f32 %v1028, %v116
    %v1033 = vrot.slane %v1029, 1
    %v1034 = vrot.slane %v1030, 1
    %1035 = vrot.lane.b32.xlu0 %v1033, 126
    %v1036 = vpop.permute.xlu0 %1035
    %1037 = vrot.lane.b32.xlu0 %v1034, 126
    %v1038 = vpop.permute.xlu0 %1037
    %v1041 = vadd.f32 %v961, %v1036
    %v1042 = vadd.f32 %v962, %v1038
    %s1043 = sld [smem:[#allocation6 + $0x4a]]
    %v1044 = vstv %s1043
    %v1045 = vmul.f32 %v1044, %v115
    %v1046 = vmul.f32 %v1044, %v116
    %v1049 = vrot.slane %v1045, 1
    %v1050 = vrot.slane %v1046, 1
    %1051 = vrot.lane.b32.xlu0 %v1049, 126
    %v1052 = vpop.permute.xlu0 %1051
    %1053 = vrot.lane.b32.xlu0 %v1050, 126
    %v1054 = vpop.permute.xlu0 %1053
    %v1057 = vadd.f32 %v977, %v1052
    %v1058 = vadd.f32 %v978, %v1054
    %s1059 = sld [smem:[#allocation6 + $0x86]]
    %v1060 = vstv %s1059
    %v1061 = vmul.f32 %v1060, %v115
    %v1062 = vmul.f32 %v1060, %v116
    %v1065 = vrot.slane %v1061, 1
    %v1066 = vrot.slane %v1062, 1
    %1067 = vrot.lane.b32.xlu0 %v1065, 126
    %v1068 = vpop.permute.xlu0 %1067
    %1069 = vrot.lane.b32.xlu0 %v1066, 126
    %v1070 = vpop.permute.xlu0 %1069
    %v1073 = vadd.f32 %v993, %v1068
    %v1074 = vadd.f32 %v994, %v1070
    %s1075 = sld [smem:[#allocation6 + $0xc2]]
    %v1076 = vstv %s1075
    %v1077 = vmul.f32 %v1076, %v115
    %v1078 = vmul.f32 %v1076, %v116
    %v1081 = vrot.slane %v1077, 1
    %v1082 = vrot.slane %v1078, 1
    %1083 = vrot.lane.b32.xlu0 %v1081, 126
    %v1084 = vpop.permute.xlu0 %1083
    %1085 = vrot.lane.b32.xlu0 %v1082, 126
    %v1086 = vpop.permute.xlu0 %1085
    %v1089 = vadd.f32 %v1009, %v1084
    %v1090 = vadd.f32 %v1010, %v1086
    %s1091 = sld [smem:[#allocation6 + $0xfe]]
    %v1092 = vstv %s1091
    %v1093 = vmul.f32 %v1092, %v115
    %v1094 = vmul.f32 %v1092, %v116
    %v1097 = vrot.slane %v1093, 1
    %v1098 = vrot.slane %v1094, 1
    %1099 = vrot.lane.b32.xlu0 %v1097, 126
    %v1100 = vpop.permute.xlu0 %1099
    %1101 = vrot.lane.b32.xlu0 %v1098, 126
    %v1102 = vpop.permute.xlu0 %1101
    %v1105 = vadd.f32 %v1025, %v1100
    %v1106 = vadd.f32 %v1026, %v1102
    %s1107 = sld [smem:[#allocation4 + $0x1]]
    %s1108 = sld [smem:[#allocation2 + $0x1]]
    %s1109 = sld [smem:[#allocation2 + $0x5]]
    %s1110 = sld [smem:[#allocation2 + $0x9]]
    %s1111 = sld [smem:[#allocation2 + $0xd]]
    %v1112 = vstv %s1108
    %v1113 = vmul.f32 %v1112, %v83
    %v1114 = vmul.f32 %v1112, %v84
    %v1115 = vstv %s1109
    %v1116 = vmul.f32 %v1115, %v89
    %v1117 = vmul.f32 %v1115, %v90
    %v1118 = vadd.f32 %v1113, %v1116
    %v1119 = vadd.f32 %v1114, %v1117
    %v1120 = vstv %s1110
    %v1121 = vmul.f32 %v1120, %v97
    %v1122 = vmul.f32 %v1120, %v98
    %v1123 = vadd.f32 %v1118, %v1121
    %v1124 = vadd.f32 %v1119, %v1122
    %v1125 = vstv %s1111
    %v1126 = vmul.f32 %v1125, %v105
    %v1127 = vmul.f32 %v1125, %v106
    %v1128 = vadd.f32 %v1123, %v1126
    %v1129 = vadd.f32 %v1124, %v1127
    %v1130 = vstv %s1107
    %v1131 = vadd.f32 %v1128, %v1130
    %v1132 = vadd.f32 %v1129, %v1130
    %v1133 = vtanh.pop %v1131
    %v1134 = vtanh.pop %v1132
    %v1135 = vmul.f32 %v1112, %v118
    %v1136 = vmul.f32 %v1112, %v119
    %v1137 = vmul.f32 %v1115, %v123
    %v1138 = vmul.f32 %v1115, %v124
    %v1139 = vadd.f32 %v1135, %v1137
    %v1140 = vadd.f32 %v1136, %v1138
    %v1141 = vmul.f32 %v1120, %v130
    %v1142 = vmul.f32 %v1120, %v131
    %v1143 = vadd.f32 %v1139, %v1141
    %v1144 = vadd.f32 %v1140, %v1142
    %v1145 = vmul.f32 %v1125, %v137
    %v1146 = vmul.f32 %v1125, %v138
    %v1147 = vadd.f32 %v1143, %v1145
    %v1148 = vadd.f32 %v1144, %v1146
    %v1149 = vadd.f32 %v1147, %v1130
    %v1150 = vadd.f32 %v1148, %v1130
    %v1151 = vtanh.pop %v1149
    %v1152 = vtanh.pop %v1150
    %v1153 = vmul.f32 %v1112, %v148
    %v1154 = vmul.f32 %v1112, %v149
    %v1155 = vmul.f32 %v1115, %v153
    %v1156 = vmul.f32 %v1115, %v154
    %v1157 = vadd.f32 %v1153, %v1155
    %v1158 = vadd.f32 %v1154, %v1156
    %v1159 = vmul.f32 %v1120, %v160
    %v1160 = vmul.f32 %v1120, %v161
    %v1161 = vadd.f32 %v1157, %v1159
    %v1162 = vadd.f32 %v1158, %v1160
    %v1163 = vmul.f32 %v1125, %v167
    %v1164 = vmul.f32 %v1125, %v168
    %v1165 = vadd.f32 %v1161, %v1163
    %v1166 = vadd.f32 %v1162, %v1164
    %v1167 = vadd.f32 %v1165, %v1130
    %v1168 = vadd.f32 %v1166, %v1130
    %v1169 = vtanh.pop %v1167
    %v1170 = vtanh.pop %v1168
    %v1171 = vmul.f32 %v1112, %v178
    %v1172 = vmul.f32 %v1112, %v179
    %v1173 = vmul.f32 %v1115, %v183
    %v1174 = vmul.f32 %v1115, %v184
    %v1175 = vadd.f32 %v1171, %v1173
    %v1176 = vadd.f32 %v1172, %v1174
    %v1177 = vmul.f32 %v1120, %v190
    %v1178 = vmul.f32 %v1120, %v191
    %v1179 = vadd.f32 %v1175, %v1177
    %v1180 = vadd.f32 %v1176, %v1178
    %v1181 = vmul.f32 %v1125, %v197
    %v1182 = vmul.f32 %v1125, %v198
    %v1183 = vadd.f32 %v1179, %v1181
    %v1184 = vadd.f32 %v1180, %v1182
    %v1185 = vadd.f32 %v1183, %v1130
    %v1186 = vadd.f32 %v1184, %v1130
    %v1187 = vtanh.pop %v1185
    %v1188 = vtanh.pop %v1186
    %s1189 = sld [smem:[#allocation6 + $0xf]]
    %v1190 = vstv %s1189
    %v1191 = vmul.f32 %v1190, %v1133
    %v1192 = vmul.f32 %v1190, %v1134
    %v1193 = vadd.f32 %v1041, %v1191
    %v1194 = vadd.f32 %v1042, %v1192
    %s1195 = sld [smem:[#allocation6 + $0x4b]]
    %v1196 = vstv %s1195
    %v1197 = vmul.f32 %v1196, %v1133
    %v1198 = vmul.f32 %v1196, %v1134
    %v1199 = vadd.f32 %v1057, %v1197
    %v1200 = vadd.f32 %v1058, %v1198
    %s1201 = sld [smem:[#allocation6 + $0x87]]
    %v1202 = vstv %s1201
    %v1203 = vmul.f32 %v1202, %v1133
    %v1204 = vmul.f32 %v1202, %v1134
    %v1205 = vadd.f32 %v1073, %v1203
    %v1206 = vadd.f32 %v1074, %v1204
    %s1207 = sld [smem:[#allocation6 + $0xc3]]
    %v1208 = vstv %s1207
    %v1209 = vmul.f32 %v1208, %v1133
    %v1210 = vmul.f32 %v1208, %v1134
    %v1211 = vadd.f32 %v1089, %v1209
    %v1212 = vadd.f32 %v1090, %v1210
    %s1213 = sld [smem:[#allocation6 + $0xff]]
    %v1214 = vstv %s1213
    %v1215 = vmul.f32 %v1214, %v1133
    %v1216 = vmul.f32 %v1214, %v1134
    %v1217 = vadd.f32 %v1105, %v1215
    %v1218 = vadd.f32 %v1106, %v1216
    %s1219 = sld [smem:[#allocation6 + $0x10]]
    %v1220 = vstv %s1219
    %v1221 = vmul.f32 %v1220, %v1151
    %v1222 = vmul.f32 %v1220, %v1152
    %v1223 = vadd.f32 %v1193, %v1221
    %v1224 = vadd.f32 %v1194, %v1222
    %s1225 = sld [smem:[#allocation6 + $0x4c]]
    %v1226 = vstv %s1225
    %v1227 = vmul.f32 %v1226, %v1151
    %v1228 = vmul.f32 %v1226, %v1152
    %v1229 = vadd.f32 %v1199, %v1227
    %v1230 = vadd.f32 %v1200, %v1228
    %s1231 = sld [smem:[#allocation6 + $0x88]]
    %v1232 = vstv %s1231
    %v1233 = vmul.f32 %v1232, %v1151
    %v1234 = vmul.f32 %v1232, %v1152
    %v1235 = vadd.f32 %v1205, %v1233
    %v1236 = vadd.f32 %v1206, %v1234
    %s1237 = sld [smem:[#allocation6 + $0xc4]]
    %v1238 = vstv %s1237
    %v1239 = vmul.f32 %v1238, %v1151
    %v1240 = vmul.f32 %v1238, %v1152
    %v1241 = vadd.f32 %v1211, %v1239
    %v1242 = vadd.f32 %v1212, %v1240
    %s1243 = sld [smem:[#allocation6 + $0x100]]
    %v1244 = vstv %s1243
    %v1245 = vmul.f32 %v1244, %v1151
    %v1246 = vmul.f32 %v1244, %v1152
    %v1247 = vadd.f32 %v1217, %v1245
    %v1248 = vadd.f32 %v1218, %v1246
    %s1249 = sld [smem:[#allocation6 + $0x11]]
    %v1250 = vstv %s1249
    %v1251 = vmul.f32 %v1250, %v1133
    %v1252 = vmul.f32 %v1250, %v1134
    %1255 = vrot.lane.b32.xlu0 %v1251, 127
    %v1256 = vpop.permute.xlu0 %1255
    %1257 = vrot.lane.b32.xlu0 %v1252, 127
    %v1258 = vpop.permute.xlu0 %1257
    %v1261 = vadd.f32 %v1223, %v1256
    %v1262 = vadd.f32 %v1224, %v1258
    %s1263 = sld [smem:[#allocation6 + $0x4d]]
    %v1264 = vstv %s1263
    %v1265 = vmul.f32 %v1264, %v1133
    %v1266 = vmul.f32 %v1264, %v1134
    %1269 = vrot.lane.b32.xlu0 %v1265, 127
    %v1270 = vpop.permute.xlu0 %1269
    %1271 = vrot.lane.b32.xlu0 %v1266, 127
    %v1272 = vpop.permute.xlu0 %1271
    %v1275 = vadd.f32 %v1229, %v1270
    %v1276 = vadd.f32 %v1230, %v1272
    %s1277 = sld [smem:[#allocation6 + $0x89]]
    %v1278 = vstv %s1277
    %v1279 = vmul.f32 %v1278, %v1133
    %v1280 = vmul.f32 %v1278, %v1134
    %1283 = vrot.lane.b32.xlu0 %v1279, 127
    %v1284 = vpop.permute.xlu0 %1283
    %1285 = vrot.lane.b32.xlu0 %v1280, 127
    %v1286 = vpop.permute.xlu0 %1285
    %v1289 = vadd.f32 %v1235, %v1284
    %v1290 = vadd.f32 %v1236, %v1286
    %s1291 = sld [smem:[#allocation6 + $0xc5]]
    %v1292 = vstv %s1291
    %v1293 = vmul.f32 %v1292, %v1133
    %v1294 = vmul.f32 %v1292, %v1134
    %1297 = vrot.lane.b32.xlu0 %v1293, 127
    %v1298 = vpop.permute.xlu0 %1297
    %1299 = vrot.lane.b32.xlu0 %v1294, 127
    %v1300 = vpop.permute.xlu0 %1299
    %v1303 = vadd.f32 %v1241, %v1298
    %v1304 = vadd.f32 %v1242, %v1300
    %s1305 = sld [smem:[#allocation6 + $0x101]]
    %v1306 = vstv %s1305
    %v1307 = vmul.f32 %v1306, %v1133
    %v1308 = vmul.f32 %v1306, %v1134
    %1311 = vrot.lane.b32.xlu0 %v1307, 127
    %v1312 = vpop.permute.xlu0 %1311
    %1313 = vrot.lane.b32.xlu0 %v1308, 127
    %v1314 = vpop.permute.xlu0 %1313
    %v1317 = vadd.f32 %v1247, %v1312
    %v1318 = vadd.f32 %v1248, %v1314
    %s1319 = sld [smem:[#allocation6 + $0x12]]
    %v1320 = vstv %s1319
    %v1321 = vmul.f32 %v1320, %v1151
    %v1322 = vmul.f32 %v1320, %v1152
    %1325 = vrot.lane.b32.xlu0 %v1321, 127
    %v1326 = vpop.permute.xlu0 %1325
    %1327 = vrot.lane.b32.xlu0 %v1322, 127
    %v1328 = vpop.permute.xlu0 %1327
    %v1331 = vadd.f32 %v1261, %v1326
    %v1332 = vadd.f32 %v1262, %v1328
    %s1333 = sld [smem:[#allocation6 + $0x4e]]
    %v1334 = vstv %s1333
    %v1335 = vmul.f32 %v1334, %v1151
    %v1336 = vmul.f32 %v1334, %v1152
    %1339 = vrot.lane.b32.xlu0 %v1335, 127
    %v1340 = vpop.permute.xlu0 %1339
    %1341 = vrot.lane.b32.xlu0 %v1336, 127
    %v1342 = vpop.permute.xlu0 %1341
    %v1345 = vadd.f32 %v1275, %v1340
    %v1346 = vadd.f32 %v1276, %v1342
    %s1347 = sld [smem:[#allocation6 + $0x8a]]
    %v1348 = vstv %s1347
    %v1349 = vmul.f32 %v1348, %v1151
    %v1350 = vmul.f32 %v1348, %v1152
    %1353 = vrot.lane.b32.xlu0 %v1349, 127
    %v1354 = vpop.permute.xlu0 %1353
    %1355 = vrot.lane.b32.xlu0 %v1350, 127
    %v1356 = vpop.permute.xlu0 %1355
    %v1359 = vadd.f32 %v1289, %v1354
    %v1360 = vadd.f32 %v1290, %v1356
    %s1361 = sld [smem:[#allocation6 + $0xc6]]
    %v1362 = vstv %s1361
    %v1363 = vmul.f32 %v1362, %v1151
    %v1364 = vmul.f32 %v1362, %v1152
    %1367 = vrot.lane.b32.xlu0 %v1363, 127
    %v1368 = vpop.permute.xlu0 %1367
    %1369 = vrot.lane.b32.xlu0 %v1364, 127
    %v1370 = vpop.permute.xlu0 %1369
    %v1373 = vadd.f32 %v1303, %v1368
    %v1374 = vadd.f32 %v1304, %v1370
    %s1375 = sld [smem:[#allocation6 + $0x102]]
    %v1376 = vstv %s1375
    %v1377 = vmul.f32 %v1376, %v1151
    %v1378 = vmul.f32 %v1376, %v1152
    %1381 = vrot.lane.b32.xlu0 %v1377, 127
    %v1382 = vpop.permute.xlu0 %1381
    %1383 = vrot.lane.b32.xlu0 %v1378, 127
    %v1384 = vpop.permute.xlu0 %1383
    %v1387 = vadd.f32 %v1317, %v1382
    %v1388 = vadd.f32 %v1318, %v1384
    %s1389 = sld [smem:[#allocation6 + $0x13]]
    %v1390 = vstv %s1389
    %v1391 = vmul.f32 %v1390, %v1133
    %v1392 = vmul.f32 %v1390, %v1134
    %1395 = vrot.lane.b32.xlu0 %v1391, 126
    %v1396 = vpop.permute.xlu0 %1395
    %1397 = vrot.lane.b32.xlu0 %v1392, 126
    %v1398 = vpop.permute.xlu0 %1397
    %v1401 = vadd.f32 %v1331, %v1396
    %v1402 = vadd.f32 %v1332, %v1398
    %s1403 = sld [smem:[#allocation6 + $0x4f]]
    %v1404 = vstv %s1403
    %v1405 = vmul.f32 %v1404, %v1133
    %v1406 = vmul.f32 %v1404, %v1134
    %1409 = vrot.lane.b32.xlu0 %v1405, 126
    %v1410 = vpop.permute.xlu0 %1409
    %1411 = vrot.lane.b32.xlu0 %v1406, 126
    %v1412 = vpop.permute.xlu0 %1411
    %v1415 = vadd.f32 %v1345, %v1410
    %v1416 = vadd.f32 %v1346, %v1412
    %s1417 = sld [smem:[#allocation6 + $0x8b]]
    %v1418 = vstv %s1417
    %v1419 = vmul.f32 %v1418, %v1133
    %v1420 = vmul.f32 %v1418, %v1134
    %1423 = vrot.lane.b32.xlu0 %v1419, 126
    %v1424 = vpop.permute.xlu0 %1423
    %1425 = vrot.lane.b32.xlu0 %v1420, 126
    %v1426 = vpop.permute.xlu0 %1425
    %v1429 = vadd.f32 %v1359, %v1424
    %v1430 = vadd.f32 %v1360, %v1426
    %s1431 = sld [smem:[#allocation6 + $0xc7]]
    %v1432 = vstv %s1431
    %v1433 = vmul.f32 %v1432, %v1133
    %v1434 = vmul.f32 %v1432, %v1134
    %1437 = vrot.lane.b32.xlu0 %v1433, 126
    %v1438 = vpop.permute.xlu0 %1437
    %1439 = vrot.lane.b32.xlu0 %v1434, 126
    %v1440 = vpop.permute.xlu0 %1439
    %v1443 = vadd.f32 %v1373, %v1438
    %v1444 = vadd.f32 %v1374, %v1440
    %s1445 = sld [smem:[#allocation6 + $0x103]]
    %v1446 = vstv %s1445
    %v1447 = vmul.f32 %v1446, %v1133
    %v1448 = vmul.f32 %v1446, %v1134
    %1451 = vrot.lane.b32.xlu0 %v1447, 126
    %v1452 = vpop.permute.xlu0 %1451
    %1453 = vrot.lane.b32.xlu0 %v1448, 126
    %v1454 = vpop.permute.xlu0 %1453
    %v1457 = vadd.f32 %v1387, %v1452
    %v1458 = vadd.f32 %v1388, %v1454
    %s1459 = sld [smem:[#allocation6 + $0x14]]
    %v1460 = vstv %s1459
    %v1461 = vmul.f32 %v1460, %v1169
    %v1462 = vmul.f32 %v1460, %v1170
    %v1463 = vadd.f32 %v1401, %v1461
    %v1464 = vadd.f32 %v1402, %v1462
    %s1465 = sld [smem:[#allocation6 + $0x50]]
    %v1466 = vstv %s1465
    %v1467 = vmul.f32 %v1466, %v1169
    %v1468 = vmul.f32 %v1466, %v1170
    %v1469 = vadd.f32 %v1415, %v1467
    %v1470 = vadd.f32 %v1416, %v1468
    %s1471 = sld [smem:[#allocation6 + $0x8c]]
    %v1472 = vstv %s1471
    %v1473 = vmul.f32 %v1472, %v1169
    %v1474 = vmul.f32 %v1472, %v1170
    %v1475 = vadd.f32 %v1429, %v1473
    %v1476 = vadd.f32 %v1430, %v1474
    %s1477 = sld [smem:[#allocation6 + $0xc8]]
    %v1478 = vstv %s1477
    %v1479 = vmul.f32 %v1478, %v1169
    %v1480 = vmul.f32 %v1478, %v1170
    %v1481 = vadd.f32 %v1443, %v1479
    %v1482 = vadd.f32 %v1444, %v1480
    %s1483 = sld [smem:[#allocation6 + $0x104]]
    %v1484 = vstv %s1483
    %v1485 = vmul.f32 %v1484, %v1169
    %v1486 = vmul.f32 %v1484, %v1170
    %v1487 = vadd.f32 %v1457, %v1485
    %v1488 = vadd.f32 %v1458, %v1486
    %s1489 = sld [smem:[#allocation6 + $0x15]]
    %v1490 = vstv %s1489
    %v1491 = vmul.f32 %v1490, %v1187
    %v1492 = vmul.f32 %v1490, %v1188
    %v1493 = vadd.f32 %v1463, %v1491
    %v1494 = vadd.f32 %v1464, %v1492
    %s1495 = sld [smem:[#allocation6 + $0x51]]
    %v1496 = vstv %s1495
    %v1497 = vmul.f32 %v1496, %v1187
    %v1498 = vmul.f32 %v1496, %v1188
    %v1499 = vadd.f32 %v1469, %v1497
    %v1500 = vadd.f32 %v1470, %v1498
    %s1501 = sld [smem:[#allocation6 + $0x8d]]
    %v1502 = vstv %s1501
    %v1503 = vmul.f32 %v1502, %v1187
    %v1504 = vmul.f32 %v1502, %v1188
    %v1505 = vadd.f32 %v1475, %v1503
    %v1506 = vadd.f32 %v1476, %v1504
    %s1507 = sld [smem:[#allocation6 + $0xc9]]
    %v1508 = vstv %s1507
    %v1509 = vmul.f32 %v1508, %v1187
    %v1510 = vmul.f32 %v1508, %v1188
    %v1511 = vadd.f32 %v1481, %v1509
    %v1512 = vadd.f32 %v1482, %v1510
    %s1513 = sld [smem:[#allocation6 + $0x105]]
    %v1514 = vstv %s1513
    %v1515 = vmul.f32 %v1514, %v1187
    %v1516 = vmul.f32 %v1514, %v1188
    %v1517 = vadd.f32 %v1487, %v1515
    %v1518 = vadd.f32 %v1488, %v1516
    %s1519 = sld [smem:[#allocation6 + $0x16]]
    %v1520 = vstv %s1519
    %v1521 = vmul.f32 %v1520, %v1169
    %v1522 = vmul.f32 %v1520, %v1170
    %1525 = vrot.lane.b32.xlu0 %v1521, 127
    %v1526 = vpop.permute.xlu0 %1525
    %1527 = vrot.lane.b32.xlu0 %v1522, 127
    %v1528 = vpop.permute.xlu0 %1527
    %v1531 = vadd.f32 %v1493, %v1526
    %v1532 = vadd.f32 %v1494, %v1528
    %s1533 = sld [smem:[#allocation6 + $0x52]]
    %v1534 = vstv %s1533
    %v1535 = vmul.f32 %v1534, %v1169
    %v1536 = vmul.f32 %v1534, %v1170
    %1539 = vrot.lane.b32.xlu0 %v1535, 127
    %v1540 = vpop.permute.xlu0 %1539
    %1541 = vrot.lane.b32.xlu0 %v1536, 127
    %v1542 = vpop.permute.xlu0 %1541
    %v1545 = vadd.f32 %v1499, %v1540
    %v1546 = vadd.f32 %v1500, %v1542
    %s1547 = sld [smem:[#allocation6 + $0x8e]]
    %v1548 = vstv %s1547
    %v1549 = vmul.f32 %v1548, %v1169
    %v1550 = vmul.f32 %v1548, %v1170
    %1553 = vrot.lane.b32.xlu0 %v1549, 127
    %v1554 = vpop.permute.xlu0 %1553
    %1555 = vrot.lane.b32.xlu0 %v1550, 127
    %v1556 = vpop.permute.xlu0 %1555
    %v1559 = vadd.f32 %v1505, %v1554
    %v1560 = vadd.f32 %v1506, %v1556
    %s1561 = sld [smem:[#allocation6 + $0xca]]
    %v1562 = vstv %s1561
    %v1563 = vmul.f32 %v1562, %v1169
    %v1564 = vmul.f32 %v1562, %v1170
    %1567 = vrot.lane.b32.xlu0 %v1563, 127
    %v1568 = vpop.permute.xlu0 %1567
    %1569 = vrot.lane.b32.xlu0 %v1564, 127
    %v1570 = vpop.permute.xlu0 %1569
    %v1573 = vadd.f32 %v1511, %v1568
    %v1574 = vadd.f32 %v1512, %v1570
    %s1575 = sld [smem:[#allocation6 + $0x106]]
    %v1576 = vstv %s1575
    %v1577 = vmul.f32 %v1576, %v1169
    %v1578 = vmul.f32 %v1576, %v1170
    %1581 = vrot.lane.b32.xlu0 %v1577, 127
    %v1582 = vpop.permute.xlu0 %1581
    %1583 = vrot.lane.b32.xlu0 %v1578, 127
    %v1584 = vpop.permute.xlu0 %1583
    %v1587 = vadd.f32 %v1517, %v1582
    %v1588 = vadd.f32 %v1518, %v1584
    %s1589 = sld [smem:[#allocation6 + $0x17]]
    %v1590 = vstv %s1589
    %v1591 = vmul.f32 %v1590, %v1187
    %v1592 = vmul.f32 %v1590, %v1188
    %1595 = vrot.lane.b32.xlu0 %v1591, 127
    %v1596 = vpop.permute.xlu0 %1595
    %1597 = vrot.lane.b32.xlu0 %v1592, 127
    %v1598 = vpop.permute.xlu0 %1597
    %v1601 = vadd.f32 %v1531, %v1596
    %v1602 = vadd.f32 %v1532, %v1598
    %s1603 = sld [smem:[#allocation6 + $0x53]]
    %v1604 = vstv %s1603
    %v1605 = vmul.f32 %v1604, %v1187
    %v1606 = vmul.f32 %v1604, %v1188
    %1609 = vrot.lane.b32.xlu0 %v1605, 127
    %v1610 = vpop.permute.xlu0 %1609
    %1611 = vrot.lane.b32.xlu0 %v1606, 127
    %v1612 = vpop.permute.xlu0 %1611
    %v1615 = vadd.f32 %v1545, %v1610
    %v1616 = vadd.f32 %v1546, %v1612
    %s1617 = sld [smem:[#allocation6 + $0x8f]]
    %v1618 = vstv %s1617
    %v1619 = vmul.f32 %v1618, %v1187
    %v1620 = vmul.f32 %v1618, %v1188
    %1623 = vrot.lane.b32.xlu0 %v1619, 127
    %v1624 = vpop.permute.xlu0 %1623
    %1625 = vrot.lane.b32.xlu0 %v1620, 127
    %v1626 = vpop.permute.xlu0 %1625
    %v1629 = vadd.f32 %v1559, %v1624
    %v1630 = vadd.f32 %v1560, %v1626
    %s1631 = sld [smem:[#allocation6 + $0xcb]]
    %v1632 = vstv %s1631
    %v1633 = vmul.f32 %v1632, %v1187
    %v1634 = vmul.f32 %v1632, %v1188
    %1637 = vrot.lane.b32.xlu0 %v1633, 127
    %v1638 = vpop.permute.xlu0 %1637
    %1639 = vrot.lane.b32.xlu0 %v1634, 127
    %v1640 = vpop.permute.xlu0 %1639
    %v1643 = vadd.f32 %v1573, %v1638
    %v1644 = vadd.f32 %v1574, %v1640
    %s1645 = sld [smem:[#allocation6 + $0x107]]
    %v1646 = vstv %s1645
    %v1647 = vmul.f32 %v1646, %v1187
    %v1648 = vmul.f32 %v1646, %v1188
    %1651 = vrot.lane.b32.xlu0 %v1647, 127
    %v1652 = vpop.permute.xlu0 %1651
    %1653 = vrot.lane.b32.xlu0 %v1648, 127
    %v1654 = vpop.permute.xlu0 %1653
    %v1657 = vadd.f32 %v1587, %v1652
    %v1658 = vadd.f32 %v1588, %v1654
    %s1659 = sld [smem:[#allocation6 + $0x18]]
    %v1660 = vstv %s1659
    %v1661 = vmul.f32 %v1660, %v1169
    %v1662 = vmul.f32 %v1660, %v1170
    %1665 = vrot.lane.b32.xlu0 %v1661, 126
    %v1666 = vpop.permute.xlu0 %1665
    %1667 = vrot.lane.b32.xlu0 %v1662, 126
    %v1668 = vpop.permute.xlu0 %1667
    %v1671 = vadd.f32 %v1601, %v1666
    %v1672 = vadd.f32 %v1602, %v1668
    %s1673 = sld [smem:[#allocation6 + $0x54]]
    %v1674 = vstv %s1673
    %v1675 = vmul.f32 %v1674, %v1169
    %v1676 = vmul.f32 %v1674, %v1170
    %1679 = vrot.lane.b32.xlu0 %v1675, 126
    %v1680 = vpop.permute.xlu0 %1679
    %1681 = vrot.lane.b32.xlu0 %v1676, 126
    %v1682 = vpop.permute.xlu0 %1681
    %v1685 = vadd.f32 %v1615, %v1680
    %v1686 = vadd.f32 %v1616, %v1682
    %s1687 = sld [smem:[#allocation6 + $0x90]]
    %v1688 = vstv %s1687
    %v1689 = vmul.f32 %v1688, %v1169
    %v1690 = vmul.f32 %v1688, %v1170
    %1693 = vrot.lane.b32.xlu0 %v1689, 126
    %v1694 = vpop.permute.xlu0 %1693
    %1695 = vrot.lane.b32.xlu0 %v1690, 126
    %v1696 = vpop.permute.xlu0 %1695
    %v1699 = vadd.f32 %v1629, %v1694
    %v1700 = vadd.f32 %v1630, %v1696
    %s1701 = sld [smem:[#allocation6 + $0xcc]]
    %v1702 = vstv %s1701
    %v1703 = vmul.f32 %v1702, %v1169
    %v1704 = vmul.f32 %v1702, %v1170
    %1707 = vrot.lane.b32.xlu0 %v1703, 126
    %v1708 = vpop.permute.xlu0 %1707
    %1709 = vrot.lane.b32.xlu0 %v1704, 126
    %v1710 = vpop.permute.xlu0 %1709
    %v1713 = vadd.f32 %v1643, %v1708
    %v1714 = vadd.f32 %v1644, %v1710
    %s1715 = sld [smem:[#allocation6 + $0x108]]
    %v1716 = vstv %s1715
    %v1717 = vmul.f32 %v1716, %v1169
    %v1718 = vmul.f32 %v1716, %v1170
    %1721 = vrot.lane.b32.xlu0 %v1717, 126
    %v1722 = vpop.permute.xlu0 %1721
    %1723 = vrot.lane.b32.xlu0 %v1718, 126
    %v1724 = vpop.permute.xlu0 %1723
    %v1727 = vadd.f32 %v1657, %v1722
    %v1728 = vadd.f32 %v1658, %v1724
    %s1729 = sld [smem:[#allocation6 + $0x19]]
    %v1730 = vstv %s1729
    %v1731 = vmul.f32 %v1730, %v1133
    %v1732 = vmul.f32 %v1730, %v1134
    %v1735 = vrot.slane %v1731, 1
    %v1736 = vrot.slane %v1732, 1
    %v1739 = vadd.f32 %v1671, %v1735
    %v1740 = vadd.f32 %v1672, %v1736
    %s1741 = sld [smem:[#allocation6 + $0x55]]
    %v1742 = vstv %s1741
    %v1743 = vmul.f32 %v1742, %v1133
    %v1744 = vmul.f32 %v1742, %v1134
    %v1747 = vrot.slane %v1743, 1
    %v1748 = vrot.slane %v1744, 1
    %v1751 = vadd.f32 %v1685, %v1747
    %v1752 = vadd.f32 %v1686, %v1748
    %s1753 = sld [smem:[#allocation6 + $0x91]]
    %v1754 = vstv %s1753
    %v1755 = vmul.f32 %v1754, %v1133
    %v1756 = vmul.f32 %v1754, %v1134
    %v1759 = vrot.slane %v1755, 1
    %v1760 = vrot.slane %v1756, 1
    %v1763 = vadd.f32 %v1699, %v1759
    %v1764 = vadd.f32 %v1700, %v1760
    %s1765 = sld [smem:[#allocation6 + $0xcd]]
    %v1766 = vstv %s1765
    %v1767 = vmul.f32 %v1766, %v1133
    %v1768 = vmul.f32 %v1766, %v1134
    %v1771 = vrot.slane %v1767, 1
    %v1772 = vrot.slane %v1768, 1
    %v1775 = vadd.f32 %v1713, %v1771
    %v1776 = vadd.f32 %v1714, %v1772
    %s1777 = sld [smem:[#allocation6 + $0x109]]
    %v1778 = vstv %s1777
    %v1779 = vmul.f32 %v1778, %v1133
    %v1780 = vmul.f32 %v1778, %v1134
    %v1783 = vrot.slane %v1779, 1
    %v1784 = vrot.slane %v1780, 1
    %v1787 = vadd.f32 %v1727, %v1783
    %v1788 = vadd.f32 %v1728, %v1784
    %s1789 = sld [smem:[#allocation6 + $0x1a]]
    %v1790 = vstv %s1789
    %v1791 = vmul.f32 %v1790, %v1151
    %v1792 = vmul.f32 %v1790, %v1152
    %v1795 = vrot.slane %v1791, 1
    %v1796 = vrot.slane %v1792, 1
    %v1799 = vadd.f32 %v1739, %v1795
    %v1800 = vadd.f32 %v1740, %v1796
    %s1801 = sld [smem:[#allocation6 + $0x56]]
    %v1802 = vstv %s1801
    %v1803 = vmul.f32 %v1802, %v1151
    %v1804 = vmul.f32 %v1802, %v1152
    %v1807 = vrot.slane %v1803, 1
    %v1808 = vrot.slane %v1804, 1
    %v1811 = vadd.f32 %v1751, %v1807
    %v1812 = vadd.f32 %v1752, %v1808
    %s1813 = sld [smem:[#allocation6 + $0x92]]
    %v1814 = vstv %s1813
    %v1815 = vmul.f32 %v1814, %v1151
    %v1816 = vmul.f32 %v1814, %v1152
    %v1819 = vrot.slane %v1815, 1
    %v1820 = vrot.slane %v1816, 1
    %v1823 = vadd.f32 %v1763, %v1819
    %v1824 = vadd.f32 %v1764, %v1820
    %s1825 = sld [smem:[#allocation6 + $0xce]]
    %v1826 = vstv %s1825
    %v1827 = vmul.f32 %v1826, %v1151
    %v1828 = vmul.f32 %v1826, %v1152
    %v1831 = vrot.slane %v1827, 1
    %v1832 = vrot.slane %v1828, 1
    %v1835 = vadd.f32 %v1775, %v1831
    %v1836 = vadd.f32 %v1776, %v1832
    %s1837 = sld [smem:[#allocation6 + $0x10a]]
    %v1838 = vstv %s1837
    %v1839 = vmul.f32 %v1838, %v1151
    %v1840 = vmul.f32 %v1838, %v1152
    %v1843 = vrot.slane %v1839, 1
    %v1844 = vrot.slane %v1840, 1
    %v1847 = vadd.f32 %v1787, %v1843
    %v1848 = vadd.f32 %v1788, %v1844
    %s1849 = sld [smem:[#allocation6 + $0x1b]]
    %v1850 = vstv %s1849
    %v1851 = vmul.f32 %v1850, %v1133
    %v1852 = vmul.f32 %v1850, %v1134
    %v1855 = vrot.slane %v1851, 1
    %v1856 = vrot.slane %v1852, 1
    %1857 = vrot.lane.b32.xlu0 %v1855, 127
    %v1858 = vpop.permute.xlu0 %1857
    %1859 = vrot.lane.b32.xlu0 %v1856, 127
    %v1860 = vpop.permute.xlu0 %1859
    %v1863 = vadd.f32 %v1799, %v1858
    %v1864 = vadd.f32 %v1800, %v1860
    %s1865 = sld [smem:[#allocation6 + $0x57]]
    %v1866 = vstv %s1865
    %v1867 = vmul.f32 %v1866, %v1133
    %v1868 = vmul.f32 %v1866, %v1134
    %v1871 = vrot.slane %v1867, 1
    %v1872 = vrot.slane %v1868, 1
    %1873 = vrot.lane.b32.xlu0 %v1871, 127
    %v1874 = vpop.permute.xlu0 %1873
    %1875 = vrot.lane.b32.xlu0 %v1872, 127
    %v1876 = vpop.permute.xlu0 %1875
    %v1879 = vadd.f32 %v1811, %v1874
    %v1880 = vadd.f32 %v1812, %v1876
    %s1881 = sld [smem:[#allocation6 + $0x93]]
    %v1882 = vstv %s1881
    %v1883 = vmul.f32 %v1882, %v1133
    %v1884 = vmul.f32 %v1882, %v1134
    %v1887 = vrot.slane %v1883, 1
    %v1888 = vrot.slane %v1884, 1
    %1889 = vrot.lane.b32.xlu0 %v1887, 127
    %v1890 = vpop.permute.xlu0 %1889
    %1891 = vrot.lane.b32.xlu0 %v1888, 127
    %v1892 = vpop.permute.xlu0 %1891
    %v1895 = vadd.f32 %v1823, %v1890
    %v1896 = vadd.f32 %v1824, %v1892
    %s1897 = sld [smem:[#allocation6 + $0xcf]]
    %v1898 = vstv %s1897
    %v1899 = vmul.f32 %v1898, %v1133
    %v1900 = vmul.f32 %v1898, %v1134
    %v1903 = vrot.slane %v1899, 1
    %v1904 = vrot.slane %v1900, 1
    %1905 = vrot.lane.b32.xlu0 %v1903, 127
    %v1906 = vpop.permute.xlu0 %1905
    %1907 = vrot.lane.b32.xlu0 %v1904, 127
    %v1908 = vpop.permute.xlu0 %1907
    %v1911 = vadd.f32 %v1835, %v1906
    %v1912 = vadd.f32 %v1836, %v1908
    %s1913 = sld [smem:[#allocation6 + $0x10b]]
    %v1914 = vstv %s1913
    %v1915 = vmul.f32 %v1914, %v1133
    %v1916 = vmul.f32 %v1914, %v1134
    %v1919 = vrot.slane %v1915, 1
    %v1920 = vrot.slane %v1916, 1
    %1921 = vrot.lane.b32.xlu0 %v1919, 127
    %v1922 = vpop.permute.xlu0 %1921
    %1923 = vrot.lane.b32.xlu0 %v1920, 127
    %v1924 = vpop.permute.xlu0 %1923
    %v1927 = vadd.f32 %v1847, %v1922
    %v1928 = vadd.f32 %v1848, %v1924
    %s1929 = sld [smem:[#allocation6 + $0x1c]]
    %v1930 = vstv %s1929
    %v1931 = vmul.f32 %v1930, %v1151
    %v1932 = vmul.f32 %v1930, %v1152
    %v1935 = vrot.slane %v1931, 1
    %v1936 = vrot.slane %v1932, 1
    %1937 = vrot.lane.b32.xlu0 %v1935, 127
    %v1938 = vpop.permute.xlu0 %1937
    %1939 = vrot.lane.b32.xlu0 %v1936, 127
    %v1940 = vpop.permute.xlu0 %1939
    %v1943 = vadd.f32 %v1863, %v1938
    %v1944 = vadd.f32 %v1864, %v1940
    %s1945 = sld [smem:[#allocation6 + $0x58]]
    %v1946 = vstv %s1945
    %v1947 = vmul.f32 %v1946, %v1151
    %v1948 = vmul.f32 %v1946, %v1152
    %v1951 = vrot.slane %v1947, 1
    %v1952 = vrot.slane %v1948, 1
    %1953 = vrot.lane.b32.xlu0 %v1951, 127
    %v1954 = vpop.permute.xlu0 %1953
    %1955 = vrot.lane.b32.xlu0 %v1952, 127
    %v1956 = vpop.permute.xlu0 %1955
    %v1959 = vadd.f32 %v1879, %v1954
    %v1960 = vadd.f32 %v1880, %v1956
    %s1961 = sld [smem:[#allocation6 + $0x94]]
    %v1962 = vstv %s1961
    %v1963 = vmul.f32 %v1962, %v1151
    %v1964 = vmul.f32 %v1962, %v1152
    %v1967 = vrot.slane %v1963, 1
    %v1968 = vrot.slane %v1964, 1
    %1969 = vrot.lane.b32.xlu0 %v1967, 127
    %v1970 = vpop.permute.xlu0 %1969
    %1971 = vrot.lane.b32.xlu0 %v1968, 127
    %v1972 = vpop.permute.xlu0 %1971
    %v1975 = vadd.f32 %v1895, %v1970
    %v1976 = vadd.f32 %v1896, %v1972
    %s1977 = sld [smem:[#allocation6 + $0xd0]]
    %v1978 = vstv %s1977
    %v1979 = vmul.f32 %v1978, %v1151
    %v1980 = vmul.f32 %v1978, %v1152
    %v1983 = vrot.slane %v1979, 1
    %v1984 = vrot.slane %v1980, 1
    %1985 = vrot.lane.b32.xlu0 %v1983, 127
    %v1986 = vpop.permute.xlu0 %1985
    %1987 = vrot.lane.b32.xlu0 %v1984, 127
    %v1988 = vpop.permute.xlu0 %1987
    %v1991 = vadd.f32 %v1911, %v1986
    %v1992 = vadd.f32 %v1912, %v1988
    %s1993 = sld [smem:[#allocation6 + $0x10c]]
    %v1994 = vstv %s1993
    %v1995 = vmul.f32 %v1994, %v1151
    %v1996 = vmul.f32 %v1994, %v1152
    %v1999 = vrot.slane %v1995, 1
    %v2000 = vrot.slane %v1996, 1
    %2001 = vrot.lane.b32.xlu0 %v1999, 127
    %v2002 = vpop.permute.xlu0 %2001
    %2003 = vrot.lane.b32.xlu0 %v2000, 127
    %v2004 = vpop.permute.xlu0 %2003
    %v2007 = vadd.f32 %v1927, %v2002
    %v2008 = vadd.f32 %v1928, %v2004
    %s2009 = sld [smem:[#allocation6 + $0x1d]]
    %v2010 = vstv %s2009
    %v2011 = vmul.f32 %v2010, %v1133
    %v2012 = vmul.f32 %v2010, %v1134
    %v2015 = vrot.slane %v2011, 1
    %v2016 = vrot.slane %v2012, 1
    %2017 = vrot.lane.b32.xlu0 %v2015, 126
    %v2018 = vpop.permute.xlu0 %2017
    %2019 = vrot.lane.b32.xlu0 %v2016, 126
    %v2020 = vpop.permute.xlu0 %2019
    %v2023 = vadd.f32 %v1943, %v2018
    %v2024 = vadd.f32 %v1944, %v2020
    %s2025 = sld [smem:[#allocation6 + $0x59]]
    %v2026 = vstv %s2025
    %v2027 = vmul.f32 %v2026, %v1133
    %v2028 = vmul.f32 %v2026, %v1134
    %v2031 = vrot.slane %v2027, 1
    %v2032 = vrot.slane %v2028, 1
    %2033 = vrot.lane.b32.xlu0 %v2031, 126
    %v2034 = vpop.permute.xlu0 %2033
    %2035 = vrot.lane.b32.xlu0 %v2032, 126
    %v2036 = vpop.permute.xlu0 %2035
    %v2039 = vadd.f32 %v1959, %v2034
    %v2040 = vadd.f32 %v1960, %v2036
    %s2041 = sld [smem:[#allocation6 + $0x95]]
    %v2042 = vstv %s2041
    %v2043 = vmul.f32 %v2042, %v1133
    %v2044 = vmul.f32 %v2042, %v1134
    %v2047 = vrot.slane %v2043, 1
    %v2048 = vrot.slane %v2044, 1
    %2049 = vrot.lane.b32.xlu0 %v2047, 126
    %v2050 = vpop.permute.xlu0 %2049
    %2051 = vrot.lane.b32.xlu0 %v2048, 126
    %v2052 = vpop.permute.xlu0 %2051
    %v2055 = vadd.f32 %v1975, %v2050
    %v2056 = vadd.f32 %v1976, %v2052
    %s2057 = sld [smem:[#allocation6 + $0xd1]]
    %v2058 = vstv %s2057
    %v2059 = vmul.f32 %v2058, %v1133
    %v2060 = vmul.f32 %v2058, %v1134
    %v2063 = vrot.slane %v2059, 1
    %v2064 = vrot.slane %v2060, 1
    %2065 = vrot.lane.b32.xlu0 %v2063, 126
    %v2066 = vpop.permute.xlu0 %2065
    %2067 = vrot.lane.b32.xlu0 %v2064, 126
    %v2068 = vpop.permute.xlu0 %2067
    %v2071 = vadd.f32 %v1991, %v2066
    %v2072 = vadd.f32 %v1992, %v2068
    %s2073 = sld [smem:[#allocation6 + $0x10d]]
    %v2074 = vstv %s2073
    %v2075 = vmul.f32 %v2074, %v1133
    %v2076 = vmul.f32 %v2074, %v1134
    %v2079 = vrot.slane %v2075, 1
    %v2080 = vrot.slane %v2076, 1
    %2081 = vrot.lane.b32.xlu0 %v2079, 126
    %v2082 = vpop.permute.xlu0 %2081
    %2083 = vrot.lane.b32.xlu0 %v2080, 126
    %v2084 = vpop.permute.xlu0 %2083
    %v2087 = vadd.f32 %v2007, %v2082
    %v2088 = vadd.f32 %v2008, %v2084
    %s2089 = sld [smem:[#allocation4 + $0x2]]
    %s2090 = sld [smem:[#allocation2 + $0x2]]
    %s2091 = sld [smem:[#allocation2 + $0x6]]
    %s2092 = sld [smem:[#allocation2 + $0xa]]
    %s2093 = sld [smem:[#allocation2 + $0xe]]
    %v2094 = vstv %s2090
    %v2095 = vmul.f32 %v2094, %v83
    %v2096 = vmul.f32 %v2094, %v84
    %v2097 = vstv %s2091
    %v2098 = vmul.f32 %v2097, %v89
    %v2099 = vmul.f32 %v2097, %v90
    %v2100 = vadd.f32 %v2095, %v2098
    %v2101 = vadd.f32 %v2096, %v2099
    %v2102 = vstv %s2092
    %v2103 = vmul.f32 %v2102, %v97
    %v2104 = vmul.f32 %v2102, %v98
    %v2105 = vadd.f32 %v2100, %v2103
    %v2106 = vadd.f32 %v2101, %v2104
    %v2107 = vstv %s2093
    %v2108 = vmul.f32 %v2107, %v105
    %v2109 = vmul.f32 %v2107, %v106
    %v2110 = vadd.f32 %v2105, %v2108
    %v2111 = vadd.f32 %v2106, %v2109
    %v2112 = vstv %s2089
    %v2113 = vadd.f32 %v2110, %v2112
    %v2114 = vadd.f32 %v2111, %v2112
    %v2115 = vtanh.pop %v2113
    %v2116 = vtanh.pop %v2114
    %v2117 = vmul.f32 %v2094, %v118
    %v2118 = vmul.f32 %v2094, %v119
    %v2119 = vmul.f32 %v2097, %v123
    %v2120 = vmul.f32 %v2097, %v124
    %v2121 = vadd.f32 %v2117, %v2119
    %v2122 = vadd.f32 %v2118, %v2120
    %v2123 = vmul.f32 %v2102, %v130
    %v2124 = vmul.f32 %v2102, %v131
    %v2125 = vadd.f32 %v2121, %v2123
    %v2126 = vadd.f32 %v2122, %v2124
    %v2127 = vmul.f32 %v2107, %v137
    %v2128 = vmul.f32 %v2107, %v138
    %v2129 = vadd.f32 %v2125, %v2127
    %v2130 = vadd.f32 %v2126, %v2128
    %v2131 = vadd.f32 %v2129, %v2112
    %v2132 = vadd.f32 %v2130, %v2112
    %v2133 = vtanh.pop %v2131
    %v2134 = vtanh.pop %v2132
    %v2135 = vmul.f32 %v2094, %v148
    %v2136 = vmul.f32 %v2094, %v149
    %v2137 = vmul.f32 %v2097, %v153
    %v2138 = vmul.f32 %v2097, %v154
    %v2139 = vadd.f32 %v2135, %v2137
    %v2140 = vadd.f32 %v2136, %v2138
    %v2141 = vmul.f32 %v2102, %v160
    %v2142 = vmul.f32 %v2102, %v161
    %v2143 = vadd.f32 %v2139, %v2141
    %v2144 = vadd.f32 %v2140, %v2142
    %v2145 = vmul.f32 %v2107, %v167
    %v2146 = vmul.f32 %v2107, %v168
    %v2147 = vadd.f32 %v2143, %v2145
    %v2148 = vadd.f32 %v2144, %v2146
    %v2149 = vadd.f32 %v2147, %v2112
    %v2150 = vadd.f32 %v2148, %v2112
    %v2151 = vtanh.pop %v2149
    %v2152 = vtanh.pop %v2150
    %v2153 = vmul.f32 %v2094, %v178
    %v2154 = vmul.f32 %v2094, %v179
    %v2155 = vmul.f32 %v2097, %v183
    %v2156 = vmul.f32 %v2097, %v184
    %v2157 = vadd.f32 %v2153, %v2155
    %v2158 = vadd.f32 %v2154, %v2156
    %v2159 = vmul.f32 %v2102, %v190
    %v2160 = vmul.f32 %v2102, %v191
    %v2161 = vadd.f32 %v2157, %v2159
    %v2162 = vadd.f32 %v2158, %v2160
    %v2163 = vmul.f32 %v2107, %v197
    %v2164 = vmul.f32 %v2107, %v198
    %v2165 = vadd.f32 %v2161, %v2163
    %v2166 = vadd.f32 %v2162, %v2164
    %v2167 = vadd.f32 %v2165, %v2112
    %v2168 = vadd.f32 %v2166, %v2112
    %v2169 = vtanh.pop %v2167
    %v2170 = vtanh.pop %v2168
    %s2171 = sld [smem:[#allocation6 + $0x1e]]
    %v2172 = vstv %s2171
    %v2173 = vmul.f32 %v2172, %v2115
    %v2174 = vmul.f32 %v2172, %v2116
    %v2175 = vadd.f32 %v2023, %v2173
    %v2176 = vadd.f32 %v2024, %v2174
    %s2177 = sld [smem:[#allocation6 + $0x5a]]
    %v2178 = vstv %s2177
    %v2179 = vmul.f32 %v2178, %v2115
    %v2180 = vmul.f32 %v2178, %v2116
    %v2181 = vadd.f32 %v2039, %v2179
    %v2182 = vadd.f32 %v2040, %v2180
    %s2183 = sld [smem:[#allocation6 + $0x96]]
    %v2184 = vstv %s2183
    %v2185 = vmul.f32 %v2184, %v2115
    %v2186 = vmul.f32 %v2184, %v2116
    %v2187 = vadd.f32 %v2055, %v2185
    %v2188 = vadd.f32 %v2056, %v2186
    %s2189 = sld [smem:[#allocation6 + $0xd2]]
    %v2190 = vstv %s2189
    %v2191 = vmul.f32 %v2190, %v2115
    %v2192 = vmul.f32 %v2190, %v2116
    %v2193 = vadd.f32 %v2071, %v2191
    %v2194 = vadd.f32 %v2072, %v2192
    %s2195 = sld [smem:[#allocation6 + $0x10e]]
    %v2196 = vstv %s2195
    %v2197 = vmul.f32 %v2196, %v2115
    %v2198 = vmul.f32 %v2196, %v2116
    %v2199 = vadd.f32 %v2087, %v2197
    %v2200 = vadd.f32 %v2088, %v2198
    %s2201 = sld [smem:[#allocation6 + $0x1f]]
    %v2202 = vstv %s2201
    %v2203 = vmul.f32 %v2202, %v2133
    %v2204 = vmul.f32 %v2202, %v2134
    %v2205 = vadd.f32 %v2175, %v2203
    %v2206 = vadd.f32 %v2176, %v2204
    %s2207 = sld [smem:[#allocation6 + $0x5b]]
    %v2208 = vstv %s2207
    %v2209 = vmul.f32 %v2208, %v2133
    %v2210 = vmul.f32 %v2208, %v2134
    %v2211 = vadd.f32 %v2181, %v2209
    %v2212 = vadd.f32 %v2182, %v2210
    %s2213 = sld [smem:[#allocation6 + $0x97]]
    %v2214 = vstv %s2213
    %v2215 = vmul.f32 %v2214, %v2133
    %v2216 = vmul.f32 %v2214, %v2134
    %v2217 = vadd.f32 %v2187, %v2215
    %v2218 = vadd.f32 %v2188, %v2216
    %s2219 = sld [smem:[#allocation6 + $0xd3]]
    %v2220 = vstv %s2219
    %v2221 = vmul.f32 %v2220, %v2133
    %v2222 = vmul.f32 %v2220, %v2134
    %v2223 = vadd.f32 %v2193, %v2221
    %v2224 = vadd.f32 %v2194, %v2222
    %s2225 = sld [smem:[#allocation6 + $0x10f]]
    %v2226 = vstv %s2225
    %v2227 = vmul.f32 %v2226, %v2133
    %v2228 = vmul.f32 %v2226, %v2134
    %v2229 = vadd.f32 %v2199, %v2227
    %v2230 = vadd.f32 %v2200, %v2228
    %s2231 = sld [smem:[#allocation6 + $0x20]]
    %v2232 = vstv %s2231
    %v2233 = vmul.f32 %v2232, %v2115
    %v2234 = vmul.f32 %v2232, %v2116
    %2237 = vrot.lane.b32.xlu0 %v2233, 127
    %v2238 = vpop.permute.xlu0 %2237
    %2239 = vrot.lane.b32.xlu0 %v2234, 127
    %v2240 = vpop.permute.xlu0 %2239
    %v2243 = vadd.f32 %v2205, %v2238
    %v2244 = vadd.f32 %v2206, %v2240
    %s2245 = sld [smem:[#allocation6 + $0x5c]]
    %v2246 = vstv %s2245
    %v2247 = vmul.f32 %v2246, %v2115
    %v2248 = vmul.f32 %v2246, %v2116
    %2251 = vrot.lane.b32.xlu0 %v2247, 127
    %v2252 = vpop.permute.xlu0 %2251
    %2253 = vrot.lane.b32.xlu0 %v2248, 127
    %v2254 = vpop.permute.xlu0 %2253
    %v2257 = vadd.f32 %v2211, %v2252
    %v2258 = vadd.f32 %v2212, %v2254
    %s2259 = sld [smem:[#allocation6 + $0x98]]
    %v2260 = vstv %s2259
    %v2261 = vmul.f32 %v2260, %v2115
    %v2262 = vmul.f32 %v2260, %v2116
    %2265 = vrot.lane.b32.xlu0 %v2261, 127
    %v2266 = vpop.permute.xlu0 %2265
    %2267 = vrot.lane.b32.xlu0 %v2262, 127
    %v2268 = vpop.permute.xlu0 %2267
    %v2271 = vadd.f32 %v2217, %v2266
    %v2272 = vadd.f32 %v2218, %v2268
    %s2273 = sld [smem:[#allocation6 + $0xd4]]
    %v2274 = vstv %s2273
    %v2275 = vmul.f32 %v2274, %v2115
    %v2276 = vmul.f32 %v2274, %v2116
    %2279 = vrot.lane.b32.xlu0 %v2275, 127
    %v2280 = vpop.permute.xlu0 %2279
    %2281 = vrot.lane.b32.xlu0 %v2276, 127
    %v2282 = vpop.permute.xlu0 %2281
    %v2285 = vadd.f32 %v2223, %v2280
    %v2286 = vadd.f32 %v2224, %v2282
    %s2287 = sld [smem:[#allocation6 + $0x110]]
    %v2288 = vstv %s2287
    %v2289 = vmul.f32 %v2288, %v2115
    %v2290 = vmul.f32 %v2288, %v2116
    %2293 = vrot.lane.b32.xlu0 %v2289, 127
    %v2294 = vpop.permute.xlu0 %2293
    %2295 = vrot.lane.b32.xlu0 %v2290, 127
    %v2296 = vpop.permute.xlu0 %2295
    %v2299 = vadd.f32 %v2229, %v2294
    %v2300 = vadd.f32 %v2230, %v2296
    %s2301 = sld [smem:[#allocation6 + $0x21]]
    %v2302 = vstv %s2301
    %v2303 = vmul.f32 %v2302, %v2133
    %v2304 = vmul.f32 %v2302, %v2134
    %2307 = vrot.lane.b32.xlu0 %v2303, 127
    %v2308 = vpop.permute.xlu0 %2307
    %2309 = vrot.lane.b32.xlu0 %v2304, 127
    %v2310 = vpop.permute.xlu0 %2309
    %v2313 = vadd.f32 %v2243, %v2308
    %v2314 = vadd.f32 %v2244, %v2310
    %s2315 = sld [smem:[#allocation6 + $0x5d]]
    %v2316 = vstv %s2315
    %v2317 = vmul.f32 %v2316, %v2133
    %v2318 = vmul.f32 %v2316, %v2134
    %2321 = vrot.lane.b32.xlu0 %v2317, 127
    %v2322 = vpop.permute.xlu0 %2321
    %2323 = vrot.lane.b32.xlu0 %v2318, 127
    %v2324 = vpop.permute.xlu0 %2323
    %v2327 = vadd.f32 %v2257, %v2322
    %v2328 = vadd.f32 %v2258, %v2324
    %s2329 = sld [smem:[#allocation6 + $0x99]]
    %v2330 = vstv %s2329
    %v2331 = vmul.f32 %v2330, %v2133
    %v2332 = vmul.f32 %v2330, %v2134
    %2335 = vrot.lane.b32.xlu0 %v2331, 127
    %v2336 = vpop.permute.xlu0 %2335
    %2337 = vrot.lane.b32.xlu0 %v2332, 127
    %v2338 = vpop.permute.xlu0 %2337
    %v2341 = vadd.f32 %v2271, %v2336
    %v2342 = vadd.f32 %v2272, %v2338
    %s2343 = sld [smem:[#allocation6 + $0xd5]]
    %v2344 = vstv %s2343
    %v2345 = vmul.f32 %v2344, %v2133
    %v2346 = vmul.f32 %v2344, %v2134
    %2349 = vrot.lane.b32.xlu0 %v2345, 127
    %v2350 = vpop.permute.xlu0 %2349
    %2351 = vrot.lane.b32.xlu0 %v2346, 127
    %v2352 = vpop.permute.xlu0 %2351
    %v2355 = vadd.f32 %v2285, %v2350
    %v2356 = vadd.f32 %v2286, %v2352
    %s2357 = sld [smem:[#allocation6 + $0x111]]
    %v2358 = vstv %s2357
    %v2359 = vmul.f32 %v2358, %v2133
    %v2360 = vmul.f32 %v2358, %v2134
    %2363 = vrot.lane.b32.xlu0 %v2359, 127
    %v2364 = vpop.permute.xlu0 %2363
    %2365 = vrot.lane.b32.xlu0 %v2360, 127
    %v2366 = vpop.permute.xlu0 %2365
    %v2369 = vadd.f32 %v2299, %v2364
    %v2370 = vadd.f32 %v2300, %v2366
    %s2371 = sld [smem:[#allocation6 + $0x22]]
    %v2372 = vstv %s2371
    %v2373 = vmul.f32 %v2372, %v2115
    %v2374 = vmul.f32 %v2372, %v2116
    %2377 = vrot.lane.b32.xlu0 %v2373, 126
    %v2378 = vpop.permute.xlu0 %2377
    %2379 = vrot.lane.b32.xlu0 %v2374, 126
    %v2380 = vpop.permute.xlu0 %2379
    %v2383 = vadd.f32 %v2313, %v2378
    %v2384 = vadd.f32 %v2314, %v2380
    %s2385 = sld [smem:[#allocation6 + $0x5e]]
    %v2386 = vstv %s2385
    %v2387 = vmul.f32 %v2386, %v2115
    %v2388 = vmul.f32 %v2386, %v2116
    %2391 = vrot.lane.b32.xlu0 %v2387, 126
    %v2392 = vpop.permute.xlu0 %2391
    %2393 = vrot.lane.b32.xlu0 %v2388, 126
    %v2394 = vpop.permute.xlu0 %2393
    %v2397 = vadd.f32 %v2327, %v2392
    %v2398 = vadd.f32 %v2328, %v2394
    %s2399 = sld [smem:[#allocation6 + $0x9a]]
    %v2400 = vstv %s2399
    %v2401 = vmul.f32 %v2400, %v2115
    %v2402 = vmul.f32 %v2400, %v2116
    %2405 = vrot.lane.b32.xlu0 %v2401, 126
    %v2406 = vpop.permute.xlu0 %2405
    %2407 = vrot.lane.b32.xlu0 %v2402, 126
    %v2408 = vpop.permute.xlu0 %2407
    %v2411 = vadd.f32 %v2341, %v2406
    %v2412 = vadd.f32 %v2342, %v2408
    %s2413 = sld [smem:[#allocation6 + $0xd6]]
    %v2414 = vstv %s2413
    %v2415 = vmul.f32 %v2414, %v2115
    %v2416 = vmul.f32 %v2414, %v2116
    %2419 = vrot.lane.b32.xlu0 %v2415, 126
    %v2420 = vpop.permute.xlu0 %2419
    %2421 = vrot.lane.b32.xlu0 %v2416, 126
    %v2422 = vpop.permute.xlu0 %2421
    %v2425 = vadd.f32 %v2355, %v2420
    %v2426 = vadd.f32 %v2356, %v2422
    %s2427 = sld [smem:[#allocation6 + $0x112]]
    %v2428 = vstv %s2427
    %v2429 = vmul.f32 %v2428, %v2115
    %v2430 = vmul.f32 %v2428, %v2116
    %2433 = vrot.lane.b32.xlu0 %v2429, 126
    %v2434 = vpop.permute.xlu0 %2433
    %2435 = vrot.lane.b32.xlu0 %v2430, 126
    %v2436 = vpop.permute.xlu0 %2435
    %v2439 = vadd.f32 %v2369, %v2434
    %v2440 = vadd.f32 %v2370, %v2436
    %s2441 = sld [smem:[#allocation6 + $0x23]]
    %v2442 = vstv %s2441
    %v2443 = vmul.f32 %v2442, %v2151
    %v2444 = vmul.f32 %v2442, %v2152
    %v2445 = vadd.f32 %v2383, %v2443
    %v2446 = vadd.f32 %v2384, %v2444
    %s2447 = sld [smem:[#allocation6 + $0x5f]]
    %v2448 = vstv %s2447
    %v2449 = vmul.f32 %v2448, %v2151
    %v2450 = vmul.f32 %v2448, %v2152
    %v2451 = vadd.f32 %v2397, %v2449
    %v2452 = vadd.f32 %v2398, %v2450
    %s2453 = sld [smem:[#allocation6 + $0x9b]]
    %v2454 = vstv %s2453
    %v2455 = vmul.f32 %v2454, %v2151
    %v2456 = vmul.f32 %v2454, %v2152
    %v2457 = vadd.f32 %v2411, %v2455
    %v2458 = vadd.f32 %v2412, %v2456
    %s2459 = sld [smem:[#allocation6 + $0xd7]]
    %v2460 = vstv %s2459
    %v2461 = vmul.f32 %v2460, %v2151
    %v2462 = vmul.f32 %v2460, %v2152
    %v2463 = vadd.f32 %v2425, %v2461
    %v2464 = vadd.f32 %v2426, %v2462
    %s2465 = sld [smem:[#allocation6 + $0x113]]
    %v2466 = vstv %s2465
    %v2467 = vmul.f32 %v2466, %v2151
    %v2468 = vmul.f32 %v2466, %v2152
    %v2469 = vadd.f32 %v2439, %v2467
    %v2470 = vadd.f32 %v2440, %v2468
    %s2471 = sld [smem:[#allocation6 + $0x24]]
    %v2472 = vstv %s2471
    %v2473 = vmul.f32 %v2472, %v2169
    %v2474 = vmul.f32 %v2472, %v2170
    %v2475 = vadd.f32 %v2445, %v2473
    %v2476 = vadd.f32 %v2446, %v2474
    %s2477 = sld [smem:[#allocation6 + $0x60]]
    %v2478 = vstv %s2477
    %v2479 = vmul.f32 %v2478, %v2169
    %v2480 = vmul.f32 %v2478, %v2170
    %v2481 = vadd.f32 %v2451, %v2479
    %v2482 = vadd.f32 %v2452, %v2480
    %s2483 = sld [smem:[#allocation6 + $0x9c]]
    %v2484 = vstv %s2483
    %v2485 = vmul.f32 %v2484, %v2169
    %v2486 = vmul.f32 %v2484, %v2170
    %v2487 = vadd.f32 %v2457, %v2485
    %v2488 = vadd.f32 %v2458, %v2486
    %s2489 = sld [smem:[#allocation6 + $0xd8]]
    %v2490 = vstv %s2489
    %v2491 = vmul.f32 %v2490, %v2169
    %v2492 = vmul.f32 %v2490, %v2170
    %v2493 = vadd.f32 %v2463, %v2491
    %v2494 = vadd.f32 %v2464, %v2492
    %s2495 = sld [smem:[#allocation6 + $0x114]]
    %v2496 = vstv %s2495
    %v2497 = vmul.f32 %v2496, %v2169
    %v2498 = vmul.f32 %v2496, %v2170
    %v2499 = vadd.f32 %v2469, %v2497
    %v2500 = vadd.f32 %v2470, %v2498
    %s2501 = sld [smem:[#allocation6 + $0x25]]
    %v2502 = vstv %s2501
    %v2503 = vmul.f32 %v2502, %v2151
    %v2504 = vmul.f32 %v2502, %v2152
    %2507 = vrot.lane.b32.xlu0 %v2503, 127
    %v2508 = vpop.permute.xlu0 %2507
    %2509 = vrot.lane.b32.xlu0 %v2504, 127
    %v2510 = vpop.permute.xlu0 %2509
    %v2513 = vadd.f32 %v2475, %v2508
    %v2514 = vadd.f32 %v2476, %v2510
    %s2515 = sld [smem:[#allocation6 + $0x61]]
    %v2516 = vstv %s2515
    %v2517 = vmul.f32 %v2516, %v2151
    %v2518 = vmul.f32 %v2516, %v2152
    %2521 = vrot.lane.b32.xlu0 %v2517, 127
    %v2522 = vpop.permute.xlu0 %2521
    %2523 = vrot.lane.b32.xlu0 %v2518, 127
    %v2524 = vpop.permute.xlu0 %2523
    %v2527 = vadd.f32 %v2481, %v2522
    %v2528 = vadd.f32 %v2482, %v2524
    %s2529 = sld [smem:[#allocation6 + $0x9d]]
    %v2530 = vstv %s2529
    %v2531 = vmul.f32 %v2530, %v2151
    %v2532 = vmul.f32 %v2530, %v2152
    %2535 = vrot.lane.b32.xlu0 %v2531, 127
    %v2536 = vpop.permute.xlu0 %2535
    %2537 = vrot.lane.b32.xlu0 %v2532, 127
    %v2538 = vpop.permute.xlu0 %2537
    %v2541 = vadd.f32 %v2487, %v2536
    %v2542 = vadd.f32 %v2488, %v2538
    %s2543 = sld [smem:[#allocation6 + $0xd9]]
    %v2544 = vstv %s2543
    %v2545 = vmul.f32 %v2544, %v2151
    %v2546 = vmul.f32 %v2544, %v2152
    %2549 = vrot.lane.b32.xlu0 %v2545, 127
    %v2550 = vpop.permute.xlu0 %2549
    %2551 = vrot.lane.b32.xlu0 %v2546, 127
    %v2552 = vpop.permute.xlu0 %2551
    %v2555 = vadd.f32 %v2493, %v2550
    %v2556 = vadd.f32 %v2494, %v2552
    %s2557 = sld [smem:[#allocation6 + $0x115]]
    %v2558 = vstv %s2557
    %v2559 = vmul.f32 %v2558, %v2151
    %v2560 = vmul.f32 %v2558, %v2152
    %2563 = vrot.lane.b32.xlu0 %v2559, 127
    %v2564 = vpop.permute.xlu0 %2563
    %2565 = vrot.lane.b32.xlu0 %v2560, 127
    %v2566 = vpop.permute.xlu0 %2565
    %v2569 = vadd.f32 %v2499, %v2564
    %v2570 = vadd.f32 %v2500, %v2566
    %s2571 = sld [smem:[#allocation6 + $0x26]]
    %v2572 = vstv %s2571
    %v2573 = vmul.f32 %v2572, %v2169
    %v2574 = vmul.f32 %v2572, %v2170
    %2577 = vrot.lane.b32.xlu0 %v2573, 127
    %v2578 = vpop.permute.xlu0 %2577
    %2579 = vrot.lane.b32.xlu0 %v2574, 127
    %v2580 = vpop.permute.xlu0 %2579
    %v2583 = vadd.f32 %v2513, %v2578
    %v2584 = vadd.f32 %v2514, %v2580
    %s2585 = sld [smem:[#allocation6 + $0x62]]
    %v2586 = vstv %s2585
    %v2587 = vmul.f32 %v2586, %v2169
    %v2588 = vmul.f32 %v2586, %v2170
    %2591 = vrot.lane.b32.xlu0 %v2587, 127
    %v2592 = vpop.permute.xlu0 %2591
    %2593 = vrot.lane.b32.xlu0 %v2588, 127
    %v2594 = vpop.permute.xlu0 %2593
    %v2597 = vadd.f32 %v2527, %v2592
    %v2598 = vadd.f32 %v2528, %v2594
    %s2599 = sld [smem:[#allocation6 + $0x9e]]
    %v2600 = vstv %s2599
    %v2601 = vmul.f32 %v2600, %v2169
    %v2602 = vmul.f32 %v2600, %v2170
    %2605 = vrot.lane.b32.xlu0 %v2601, 127
    %v2606 = vpop.permute.xlu0 %2605
    %2607 = vrot.lane.b32.xlu0 %v2602, 127
    %v2608 = vpop.permute.xlu0 %2607
    %v2611 = vadd.f32 %v2541, %v2606
    %v2612 = vadd.f32 %v2542, %v2608
    %s2613 = sld [smem:[#allocation6 + $0xda]]
    %v2614 = vstv %s2613
    %v2615 = vmul.f32 %v2614, %v2169
    %v2616 = vmul.f32 %v2614, %v2170
    %2619 = vrot.lane.b32.xlu0 %v2615, 127
    %v2620 = vpop.permute.xlu0 %2619
    %2621 = vrot.lane.b32.xlu0 %v2616, 127
    %v2622 = vpop.permute.xlu0 %2621
    %v2625 = vadd.f32 %v2555, %v2620
    %v2626 = vadd.f32 %v2556, %v2622
    %s2627 = sld [smem:[#allocation6 + $0x116]]
    %v2628 = vstv %s2627
    %v2629 = vmul.f32 %v2628, %v2169
    %v2630 = vmul.f32 %v2628, %v2170
    %2633 = vrot.lane.b32.xlu0 %v2629, 127
    %v2634 = vpop.permute.xlu0 %2633
    %2635 = vrot.lane.b32.xlu0 %v2630, 127
    %v2636 = vpop.permute.xlu0 %2635
    %v2639 = vadd.f32 %v2569, %v2634
    %v2640 = vadd.f32 %v2570, %v2636
    %s2641 = sld [smem:[#allocation6 + $0x27]]
    %v2642 = vstv %s2641
    %v2643 = vmul.f32 %v2642, %v2151
    %v2644 = vmul.f32 %v2642, %v2152
    %2647 = vrot.lane.b32.xlu0 %v2643, 126
    %v2648 = vpop.permute.xlu0 %2647
    %2649 = vrot.lane.b32.xlu0 %v2644, 126
    %v2650 = vpop.permute.xlu0 %2649
    %v2653 = vadd.f32 %v2583, %v2648
    %v2654 = vadd.f32 %v2584, %v2650
    %s2655 = sld [smem:[#allocation6 + $0x63]]
    %v2656 = vstv %s2655
    %v2657 = vmul.f32 %v2656, %v2151
    %v2658 = vmul.f32 %v2656, %v2152
    %2661 = vrot.lane.b32.xlu0 %v2657, 126
    %v2662 = vpop.permute.xlu0 %2661
    %2663 = vrot.lane.b32.xlu0 %v2658, 126
    %v2664 = vpop.permute.xlu0 %2663
    %v2667 = vadd.f32 %v2597, %v2662
    %v2668 = vadd.f32 %v2598, %v2664
    %s2669 = sld [smem:[#allocation6 + $0x9f]]
    %v2670 = vstv %s2669
    %v2671 = vmul.f32 %v2670, %v2151
    %v2672 = vmul.f32 %v2670, %v2152
    %2675 = vrot.lane.b32.xlu0 %v2671, 126
    %v2676 = vpop.permute.xlu0 %2675
    %2677 = vrot.lane.b32.xlu0 %v2672, 126
    %v2678 = vpop.permute.xlu0 %2677
    %v2681 = vadd.f32 %v2611, %v2676
    %v2682 = vadd.f32 %v2612, %v2678
    %s2683 = sld [smem:[#allocation6 + $0xdb]]
    %v2684 = vstv %s2683
    %v2685 = vmul.f32 %v2684, %v2151
    %v2686 = vmul.f32 %v2684, %v2152
    %2689 = vrot.lane.b32.xlu0 %v2685, 126
    %v2690 = vpop.permute.xlu0 %2689
    %2691 = vrot.lane.b32.xlu0 %v2686, 126
    %v2692 = vpop.permute.xlu0 %2691
    %v2695 = vadd.f32 %v2625, %v2690
    %v2696 = vadd.f32 %v2626, %v2692
    %s2697 = sld [smem:[#allocation6 + $0x117]]
    %v2698 = vstv %s2697
    %v2699 = vmul.f32 %v2698, %v2151
    %v2700 = vmul.f32 %v2698, %v2152
    %2703 = vrot.lane.b32.xlu0 %v2699, 126
    %v2704 = vpop.permute.xlu0 %2703
    %2705 = vrot.lane.b32.xlu0 %v2700, 126
    %v2706 = vpop.permute.xlu0 %2705
    %v2709 = vadd.f32 %v2639, %v2704
    %v2710 = vadd.f32 %v2640, %v2706
    %s2711 = sld [smem:[#allocation6 + $0x28]]
    %v2712 = vstv %s2711
    %v2713 = vmul.f32 %v2712, %v2115
    %v2714 = vmul.f32 %v2712, %v2116
    %v2717 = vrot.slane %v2713, 1
    %v2718 = vrot.slane %v2714, 1
    %v2721 = vadd.f32 %v2653, %v2717
    %v2722 = vadd.f32 %v2654, %v2718
    %s2723 = sld [smem:[#allocation6 + $0x64]]
    %v2724 = vstv %s2723
    %v2725 = vmul.f32 %v2724, %v2115
    %v2726 = vmul.f32 %v2724, %v2116
    %v2729 = vrot.slane %v2725, 1
    %v2730 = vrot.slane %v2726, 1
    %v2733 = vadd.f32 %v2667, %v2729
    %v2734 = vadd.f32 %v2668, %v2730
    %s2735 = sld [smem:[#allocation6 + $0xa0]]
    %v2736 = vstv %s2735
    %v2737 = vmul.f32 %v2736, %v2115
    %v2738 = vmul.f32 %v2736, %v2116
    %v2741 = vrot.slane %v2737, 1
    %v2742 = vrot.slane %v2738, 1
    %v2745 = vadd.f32 %v2681, %v2741
    %v2746 = vadd.f32 %v2682, %v2742
    %s2747 = sld [smem:[#allocation6 + $0xdc]]
    %v2748 = vstv %s2747
    %v2749 = vmul.f32 %v2748, %v2115
    %v2750 = vmul.f32 %v2748, %v2116
    %v2753 = vrot.slane %v2749, 1
    %v2754 = vrot.slane %v2750, 1
    %v2757 = vadd.f32 %v2695, %v2753
    %v2758 = vadd.f32 %v2696, %v2754
    %s2759 = sld [smem:[#allocation6 + $0x118]]
    %v2760 = vstv %s2759
    %v2761 = vmul.f32 %v2760, %v2115
    %v2762 = vmul.f32 %v2760, %v2116
    %v2765 = vrot.slane %v2761, 1
    %v2766 = vrot.slane %v2762, 1
    %v2769 = vadd.f32 %v2709, %v2765
    %v2770 = vadd.f32 %v2710, %v2766
    %s2771 = sld [smem:[#allocation6 + $0x29]]
    %v2772 = vstv %s2771
    %v2773 = vmul.f32 %v2772, %v2133
    %v2774 = vmul.f32 %v2772, %v2134
    %v2777 = vrot.slane %v2773, 1
    %v2778 = vrot.slane %v2774, 1
    %v2781 = vadd.f32 %v2721, %v2777
    %v2782 = vadd.f32 %v2722, %v2778
    %s2783 = sld [smem:[#allocation6 + $0x65]]
    %v2784 = vstv %s2783
    %v2785 = vmul.f32 %v2784, %v2133
    %v2786 = vmul.f32 %v2784, %v2134
    %v2789 = vrot.slane %v2785, 1
    %v2790 = vrot.slane %v2786, 1
    %v2793 = vadd.f32 %v2733, %v2789
    %v2794 = vadd.f32 %v2734, %v2790
    %s2795 = sld [smem:[#allocation6 + $0xa1]]
    %v2796 = vstv %s2795
    %v2797 = vmul.f32 %v2796, %v2133
    %v2798 = vmul.f32 %v2796, %v2134
    %v2801 = vrot.slane %v2797, 1
    %v2802 = vrot.slane %v2798, 1
    %v2805 = vadd.f32 %v2745, %v2801
    %v2806 = vadd.f32 %v2746, %v2802
    %s2807 = sld [smem:[#allocation6 + $0xdd]]
    %v2808 = vstv %s2807
    %v2809 = vmul.f32 %v2808, %v2133
    %v2810 = vmul.f32 %v2808, %v2134
    %v2813 = vrot.slane %v2809, 1
    %v2814 = vrot.slane %v2810, 1
    %v2817 = vadd.f32 %v2757, %v2813
    %v2818 = vadd.f32 %v2758, %v2814
    %s2819 = sld [smem:[#allocation6 + $0x119]]
    %v2820 = vstv %s2819
    %v2821 = vmul.f32 %v2820, %v2133
    %v2822 = vmul.f32 %v2820, %v2134
    %v2825 = vrot.slane %v2821, 1
    %v2826 = vrot.slane %v2822, 1
    %v2829 = vadd.f32 %v2769, %v2825
    %v2830 = vadd.f32 %v2770, %v2826
    %s2831 = sld [smem:[#allocation6 + $0x2a]]
    %v2832 = vstv %s2831
    %v2833 = vmul.f32 %v2832, %v2115
    %v2834 = vmul.f32 %v2832, %v2116
    %v2837 = vrot.slane %v2833, 1
    %v2838 = vrot.slane %v2834, 1
    %2839 = vrot.lane.b32.xlu0 %v2837, 127
    %v2840 = vpop.permute.xlu0 %2839
    %2841 = vrot.lane.b32.xlu0 %v2838, 127
    %v2842 = vpop.permute.xlu0 %2841
    %v2845 = vadd.f32 %v2781, %v2840
    %v2846 = vadd.f32 %v2782, %v2842
    %s2847 = sld [smem:[#allocation6 + $0x66]]
    %v2848 = vstv %s2847
    %v2849 = vmul.f32 %v2848, %v2115
    %v2850 = vmul.f32 %v2848, %v2116
    %v2853 = vrot.slane %v2849, 1
    %v2854 = vrot.slane %v2850, 1
    %2855 = vrot.lane.b32.xlu0 %v2853, 127
    %v2856 = vpop.permute.xlu0 %2855
    %2857 = vrot.lane.b32.xlu0 %v2854, 127
    %v2858 = vpop.permute.xlu0 %2857
    %v2861 = vadd.f32 %v2793, %v2856
    %v2862 = vadd.f32 %v2794, %v2858
    %s2863 = sld [smem:[#allocation6 + $0xa2]]
    %v2864 = vstv %s2863
    %v2865 = vmul.f32 %v2864, %v2115
    %v2866 = vmul.f32 %v2864, %v2116
    %v2869 = vrot.slane %v2865, 1
    %v2870 = vrot.slane %v2866, 1
    %2871 = vrot.lane.b32.xlu0 %v2869, 127
    %v2872 = vpop.permute.xlu0 %2871
    %2873 = vrot.lane.b32.xlu0 %v2870, 127
    %v2874 = vpop.permute.xlu0 %2873
    %v2877 = vadd.f32 %v2805, %v2872
    %v2878 = vadd.f32 %v2806, %v2874
    %s2879 = sld [smem:[#allocation6 + $0xde]]
    %v2880 = vstv %s2879
    %v2881 = vmul.f32 %v2880, %v2115
    %v2882 = vmul.f32 %v2880, %v2116
    %v2885 = vrot.slane %v2881, 1
    %v2886 = vrot.slane %v2882, 1
    %2887 = vrot.lane.b32.xlu0 %v2885, 127
    %v2888 = vpop.permute.xlu0 %2887
    %2889 = vrot.lane.b32.xlu0 %v2886, 127
    %v2890 = vpop.permute.xlu0 %2889
    %v2893 = vadd.f32 %v2817, %v2888
    %v2894 = vadd.f32 %v2818, %v2890
    %s2895 = sld [smem:[#allocation6 + $0x11a]]
    %v2896 = vstv %s2895
    %v2897 = vmul.f32 %v2896, %v2115
    %v2898 = vmul.f32 %v2896, %v2116
    %v2901 = vrot.slane %v2897, 1
    %v2902 = vrot.slane %v2898, 1
    %2903 = vrot.lane.b32.xlu0 %v2901, 127
    %v2904 = vpop.permute.xlu0 %2903
    %2905 = vrot.lane.b32.xlu0 %v2902, 127
    %v2906 = vpop.permute.xlu0 %2905
    %v2909 = vadd.f32 %v2829, %v2904
    %v2910 = vadd.f32 %v2830, %v2906
    %s2911 = sld [smem:[#allocation6 + $0x2b]]
    %v2912 = vstv %s2911
    %v2913 = vmul.f32 %v2912, %v2133
    %v2914 = vmul.f32 %v2912, %v2134
    %v2917 = vrot.slane %v2913, 1
    %v2918 = vrot.slane %v2914, 1
    %2919 = vrot.lane.b32.xlu0 %v2917, 127
    %v2920 = vpop.permute.xlu0 %2919
    %2921 = vrot.lane.b32.xlu0 %v2918, 127
    %v2922 = vpop.permute.xlu0 %2921
    %v2925 = vadd.f32 %v2845, %v2920
    %v2926 = vadd.f32 %v2846, %v2922
    %s2927 = sld [smem:[#allocation6 + $0x67]]
    %v2928 = vstv %s2927
    %v2929 = vmul.f32 %v2928, %v2133
    %v2930 = vmul.f32 %v2928, %v2134
    %v2933 = vrot.slane %v2929, 1
    %v2934 = vrot.slane %v2930, 1
    %2935 = vrot.lane.b32.xlu0 %v2933, 127
    %v2936 = vpop.permute.xlu0 %2935
    %2937 = vrot.lane.b32.xlu0 %v2934, 127
    %v2938 = vpop.permute.xlu0 %2937
    %v2941 = vadd.f32 %v2861, %v2936
    %v2942 = vadd.f32 %v2862, %v2938
    %s2943 = sld [smem:[#allocation6 + $0xa3]]
    %v2944 = vstv %s2943
    %v2945 = vmul.f32 %v2944, %v2133
    %v2946 = vmul.f32 %v2944, %v2134
    %v2949 = vrot.slane %v2945, 1
    %v2950 = vrot.slane %v2946, 1
    %2951 = vrot.lane.b32.xlu0 %v2949, 127
    %v2952 = vpop.permute.xlu0 %2951
    %2953 = vrot.lane.b32.xlu0 %v2950, 127
    %v2954 = vpop.permute.xlu0 %2953
    %v2957 = vadd.f32 %v2877, %v2952
    %v2958 = vadd.f32 %v2878, %v2954
    %s2959 = sld [smem:[#allocation6 + $0xdf]]
    %v2960 = vstv %s2959
    %v2961 = vmul.f32 %v2960, %v2133
    %v2962 = vmul.f32 %v2960, %v2134
    %v2965 = vrot.slane %v2961, 1
    %v2966 = vrot.slane %v2962, 1
    %2967 = vrot.lane.b32.xlu0 %v2965, 127
    %v2968 = vpop.permute.xlu0 %2967
    %2969 = vrot.lane.b32.xlu0 %v2966, 127
    %v2970 = vpop.permute.xlu0 %2969
    %v2973 = vadd.f32 %v2893, %v2968
    %v2974 = vadd.f32 %v2894, %v2970
    %s2975 = sld [smem:[#allocation6 + $0x11b]]
    %v2976 = vstv %s2975
    %v2977 = vmul.f32 %v2976, %v2133
    %v2978 = vmul.f32 %v2976, %v2134
    %v2981 = vrot.slane %v2977, 1
    %v2982 = vrot.slane %v2978, 1
    %2983 = vrot.lane.b32.xlu0 %v2981, 127
    %v2984 = vpop.permute.xlu0 %2983
    %2985 = vrot.lane.b32.xlu0 %v2982, 127
    %v2986 = vpop.permute.xlu0 %2985
    %v2989 = vadd.f32 %v2909, %v2984
    %v2990 = vadd.f32 %v2910, %v2986
    %s2991 = sld [smem:[#allocation6 + $0x2c]]
    %v2992 = vstv %s2991
    %v2993 = vmul.f32 %v2992, %v2115
    %v2994 = vmul.f32 %v2992, %v2116
    %v2997 = vrot.slane %v2993, 1
    %v2998 = vrot.slane %v2994, 1
    %2999 = vrot.lane.b32.xlu0 %v2997, 126
    %v3000 = vpop.permute.xlu0 %2999
    %3001 = vrot.lane.b32.xlu0 %v2998, 126
    %v3002 = vpop.permute.xlu0 %3001
    %v3005 = vadd.f32 %v2925, %v3000
    %v3006 = vadd.f32 %v2926, %v3002
    %s3007 = sld [smem:[#allocation6 + $0x68]]
    %v3008 = vstv %s3007
    %v3009 = vmul.f32 %v3008, %v2115
    %v3010 = vmul.f32 %v3008, %v2116
    %v3013 = vrot.slane %v3009, 1
    %v3014 = vrot.slane %v3010, 1
    %3015 = vrot.lane.b32.xlu0 %v3013, 126
    %v3016 = vpop.permute.xlu0 %3015
    %3017 = vrot.lane.b32.xlu0 %v3014, 126
    %v3018 = vpop.permute.xlu0 %3017
    %v3021 = vadd.f32 %v2941, %v3016
    %v3022 = vadd.f32 %v2942, %v3018
    %s3023 = sld [smem:[#allocation6 + $0xa4]]
    %v3024 = vstv %s3023
    %v3025 = vmul.f32 %v3024, %v2115
    %v3026 = vmul.f32 %v3024, %v2116
    %v3029 = vrot.slane %v3025, 1
    %v3030 = vrot.slane %v3026, 1
    %3031 = vrot.lane.b32.xlu0 %v3029, 126
    %v3032 = vpop.permute.xlu0 %3031
    %3033 = vrot.lane.b32.xlu0 %v3030, 126
    %v3034 = vpop.permute.xlu0 %3033
    %v3037 = vadd.f32 %v2957, %v3032
    %v3038 = vadd.f32 %v2958, %v3034
    %s3039 = sld [smem:[#allocation6 + $0xe0]]
    %v3040 = vstv %s3039
    %v3041 = vmul.f32 %v3040, %v2115
    %v3042 = vmul.f32 %v3040, %v2116
    %v3045 = vrot.slane %v3041, 1
    %v3046 = vrot.slane %v3042, 1
    %3047 = vrot.lane.b32.xlu0 %v3045, 126
    %v3048 = vpop.permute.xlu0 %3047
    %3049 = vrot.lane.b32.xlu0 %v3046, 126
    %v3050 = vpop.permute.xlu0 %3049
    %v3053 = vadd.f32 %v2973, %v3048
    %v3054 = vadd.f32 %v2974, %v3050
    %s3055 = sld [smem:[#allocation6 + $0x11c]]
    %v3056 = vstv %s3055
    %v3057 = vmul.f32 %v3056, %v2115
    %v3058 = vmul.f32 %v3056, %v2116
    %v3061 = vrot.slane %v3057, 1
    %v3062 = vrot.slane %v3058, 1
    %3063 = vrot.lane.b32.xlu0 %v3061, 126
    %v3064 = vpop.permute.xlu0 %3063
    %3065 = vrot.lane.b32.xlu0 %v3062, 126
    %v3066 = vpop.permute.xlu0 %3065
    %v3069 = vadd.f32 %v2989, %v3064
    %v3070 = vadd.f32 %v2990, %v3066
    %s3071 = sld [smem:[#allocation4 + $0x3]]
    %s3072 = sld [smem:[#allocation2 + $0x3]]
    %s3073 = sld [smem:[#allocation2 + $0x7]]
    %s3074 = sld [smem:[#allocation2 + $0xb]]
    %s3075 = sld [smem:[#allocation2 + $0xf]]
    %v3076 = vstv %s3072
    %v3077 = vmul.f32 %v3076, %v83
    %v3078 = vmul.f32 %v3076, %v84
    %v3079 = vstv %s3073
    %v3080 = vmul.f32 %v3079, %v89
    %v3081 = vmul.f32 %v3079, %v90
    %v3082 = vadd.f32 %v3077, %v3080
    %v3083 = vadd.f32 %v3078, %v3081
    %v3084 = vstv %s3074
    %v3085 = vmul.f32 %v3084, %v97
    %v3086 = vmul.f32 %v3084, %v98
    %v3087 = vadd.f32 %v3082, %v3085
    %v3088 = vadd.f32 %v3083, %v3086
    %v3089 = vstv %s3075
    %v3090 = vmul.f32 %v3089, %v105
    %v3091 = vmul.f32 %v3089, %v106
    %v3092 = vadd.f32 %v3087, %v3090
    %v3093 = vadd.f32 %v3088, %v3091
    %v3094 = vstv %s3071
    %v3095 = vadd.f32 %v3092, %v3094
    %v3096 = vadd.f32 %v3093, %v3094
    %v3097 = vtanh.pop %v3095
    %v3098 = vtanh.pop %v3096
    %v3099 = vmul.f32 %v3076, %v118
    %v3100 = vmul.f32 %v3076, %v119
    %v3101 = vmul.f32 %v3079, %v123
    %v3102 = vmul.f32 %v3079, %v124
    %v3103 = vadd.f32 %v3099, %v3101
    %v3104 = vadd.f32 %v3100, %v3102
    %v3105 = vmul.f32 %v3084, %v130
    %v3106 = vmul.f32 %v3084, %v131
    %v3107 = vadd.f32 %v3103, %v3105
    %v3108 = vadd.f32 %v3104, %v3106
    %v3109 = vmul.f32 %v3089, %v137
    %v3110 = vmul.f32 %v3089, %v138
    %v3111 = vadd.f32 %v3107, %v3109
    %v3112 = vadd.f32 %v3108, %v3110
    %v3113 = vadd.f32 %v3111, %v3094
    %v3114 = vadd.f32 %v3112, %v3094
    %v3115 = vtanh.pop %v3113
    %v3116 = vtanh.pop %v3114
    %v3117 = vmul.f32 %v3076, %v148
    %v3118 = vmul.f32 %v3076, %v149
    %v3119 = vmul.f32 %v3079, %v153
    %v3120 = vmul.f32 %v3079, %v154
    %v3121 = vadd.f32 %v3117, %v3119
    %v3122 = vadd.f32 %v3118, %v3120
    %v3123 = vmul.f32 %v3084, %v160
    %v3124 = vmul.f32 %v3084, %v161
    %v3125 = vadd.f32 %v3121, %v3123
    %v3126 = vadd.f32 %v3122, %v3124
    %v3127 = vmul.f32 %v3089, %v167
    %v3128 = vmul.f32 %v3089, %v168
    %v3129 = vadd.f32 %v3125, %v3127
    %v3130 = vadd.f32 %v3126, %v3128
    %v3131 = vadd.f32 %v3129, %v3094
    %v3132 = vadd.f32 %v3130, %v3094
    %v3133 = vtanh.pop %v3131
    %v3134 = vtanh.pop %v3132
    %v3135 = vmul.f32 %v3076, %v178
    %v3136 = vmul.f32 %v3076, %v179
    %v3137 = vmul.f32 %v3079, %v183
    %v3138 = vmul.f32 %v3079, %v184
    %v3139 = vadd.f32 %v3135, %v3137
    %v3140 = vadd.f32 %v3136, %v3138
    %v3141 = vmul.f32 %v3084, %v190
    %v3142 = vmul.f32 %v3084, %v191
    %v3143 = vadd.f32 %v3139, %v3141
    %v3144 = vadd.f32 %v3140, %v3142
    %v3145 = vmul.f32 %v3089, %v197
    %v3146 = vmul.f32 %v3089, %v198
    %v3147 = vadd.f32 %v3143, %v3145
    %v3148 = vadd.f32 %v3144, %v3146
    %v3149 = vadd.f32 %v3147, %v3094
    %v3150 = vadd.f32 %v3148, %v3094
    %v3151 = vtanh.pop %v3149
    %v3152 = vtanh.pop %v3150
    %s3153 = sld [smem:[#allocation6 + $0x2d]]
    %v3154 = vstv %s3153
    %v3155 = vmul.f32 %v3154, %v3097
    %v3156 = vmul.f32 %v3154, %v3098
    %v3157 = vadd.f32 %v3005, %v3155
    %v3158 = vadd.f32 %v3006, %v3156
    %s3159 = sld [smem:[#allocation6 + $0x69]]
    %v3160 = vstv %s3159
    %v3161 = vmul.f32 %v3160, %v3097
    %v3162 = vmul.f32 %v3160, %v3098
    %v3163 = vadd.f32 %v3021, %v3161
    %v3164 = vadd.f32 %v3022, %v3162
    %s3165 = sld [smem:[#allocation6 + $0xa5]]
    %v3166 = vstv %s3165
    %v3167 = vmul.f32 %v3166, %v3097
    %v3168 = vmul.f32 %v3166, %v3098
    %v3169 = vadd.f32 %v3037, %v3167
    %v3170 = vadd.f32 %v3038, %v3168
    %s3171 = sld [smem:[#allocation6 + $0xe1]]
    %v3172 = vstv %s3171
    %v3173 = vmul.f32 %v3172, %v3097
    %v3174 = vmul.f32 %v3172, %v3098
    %v3175 = vadd.f32 %v3053, %v3173
    %v3176 = vadd.f32 %v3054, %v3174
    %s3177 = sld [smem:[#allocation6 + $0x11d]]
    %v3178 = vstv %s3177
    %v3179 = vmul.f32 %v3178, %v3097
    %v3180 = vmul.f32 %v3178, %v3098
    %v3181 = vadd.f32 %v3069, %v3179
    %v3182 = vadd.f32 %v3070, %v3180
    %s3183 = sld [smem:[#allocation6 + $0x2e]]
    %v3184 = vstv %s3183
    %v3185 = vmul.f32 %v3184, %v3115
    %v3186 = vmul.f32 %v3184, %v3116
    %v3187 = vadd.f32 %v3157, %v3185
    %v3188 = vadd.f32 %v3158, %v3186
    %s3189 = sld [smem:[#allocation6 + $0x6a]]
    %v3190 = vstv %s3189
    %v3191 = vmul.f32 %v3190, %v3115
    %v3192 = vmul.f32 %v3190, %v3116
    %v3193 = vadd.f32 %v3163, %v3191
    %v3194 = vadd.f32 %v3164, %v3192
    %s3195 = sld [smem:[#allocation6 + $0xa6]]
    %v3196 = vstv %s3195
    %v3197 = vmul.f32 %v3196, %v3115
    %v3198 = vmul.f32 %v3196, %v3116
    %v3199 = vadd.f32 %v3169, %v3197
    %v3200 = vadd.f32 %v3170, %v3198
    %s3201 = sld [smem:[#allocation6 + $0xe2]]
    %v3202 = vstv %s3201
    %v3203 = vmul.f32 %v3202, %v3115
    %v3204 = vmul.f32 %v3202, %v3116
    %v3205 = vadd.f32 %v3175, %v3203
    %v3206 = vadd.f32 %v3176, %v3204
    %s3207 = sld [smem:[#allocation6 + $0x11e]]
    %v3208 = vstv %s3207
    %v3209 = vmul.f32 %v3208, %v3115
    %v3210 = vmul.f32 %v3208, %v3116
    %v3211 = vadd.f32 %v3181, %v3209
    %v3212 = vadd.f32 %v3182, %v3210
    %s3213 = sld [smem:[#allocation6 + $0x2f]]
    %v3214 = vstv %s3213
    %v3215 = vmul.f32 %v3214, %v3097
    %v3216 = vmul.f32 %v3214, %v3098
    %3219 = vrot.lane.b32.xlu0 %v3215, 127
    %v3220 = vpop.permute.xlu0 %3219
    %3221 = vrot.lane.b32.xlu0 %v3216, 127
    %v3222 = vpop.permute.xlu0 %3221
    %v3225 = vadd.f32 %v3187, %v3220
    %v3226 = vadd.f32 %v3188, %v3222
    %s3227 = sld [smem:[#allocation6 + $0x6b]]
    %v3228 = vstv %s3227
    %v3229 = vmul.f32 %v3228, %v3097
    %v3230 = vmul.f32 %v3228, %v3098
    %3233 = vrot.lane.b32.xlu0 %v3229, 127
    %v3234 = vpop.permute.xlu0 %3233
    %3235 = vrot.lane.b32.xlu0 %v3230, 127
    %v3236 = vpop.permute.xlu0 %3235
    %v3239 = vadd.f32 %v3193, %v3234
    %v3240 = vadd.f32 %v3194, %v3236
    %s3241 = sld [smem:[#allocation6 + $0xa7]]
    %v3242 = vstv %s3241
    %v3243 = vmul.f32 %v3242, %v3097
    %v3244 = vmul.f32 %v3242, %v3098
    %3247 = vrot.lane.b32.xlu0 %v3243, 127
    %v3248 = vpop.permute.xlu0 %3247
    %3249 = vrot.lane.b32.xlu0 %v3244, 127
    %v3250 = vpop.permute.xlu0 %3249
    %v3253 = vadd.f32 %v3199, %v3248
    %v3254 = vadd.f32 %v3200, %v3250
    %s3255 = sld [smem:[#allocation6 + $0xe3]]
    %v3256 = vstv %s3255
    %v3257 = vmul.f32 %v3256, %v3097
    %v3258 = vmul.f32 %v3256, %v3098
    %3261 = vrot.lane.b32.xlu0 %v3257, 127
    %v3262 = vpop.permute.xlu0 %3261
    %3263 = vrot.lane.b32.xlu0 %v3258, 127
    %v3264 = vpop.permute.xlu0 %3263
    %v3267 = vadd.f32 %v3205, %v3262
    %v3268 = vadd.f32 %v3206, %v3264
    %s3269 = sld [smem:[#allocation6 + $0x11f]]
    %v3270 = vstv %s3269
    %v3271 = vmul.f32 %v3270, %v3097
    %v3272 = vmul.f32 %v3270, %v3098
    %3275 = vrot.lane.b32.xlu0 %v3271, 127
    %v3276 = vpop.permute.xlu0 %3275
    %3277 = vrot.lane.b32.xlu0 %v3272, 127
    %v3278 = vpop.permute.xlu0 %3277
    %v3281 = vadd.f32 %v3211, %v3276
    %v3282 = vadd.f32 %v3212, %v3278
    %s3283 = sld [smem:[#allocation6 + $0x30]]
    %v3284 = vstv %s3283
    %v3285 = vmul.f32 %v3284, %v3115
    %v3286 = vmul.f32 %v3284, %v3116
    %3289 = vrot.lane.b32.xlu0 %v3285, 127
    %v3290 = vpop.permute.xlu0 %3289
    %3291 = vrot.lane.b32.xlu0 %v3286, 127
    %v3292 = vpop.permute.xlu0 %3291
    %v3295 = vadd.f32 %v3225, %v3290
    %v3296 = vadd.f32 %v3226, %v3292
    %s3297 = sld [smem:[#allocation6 + $0x6c]]
    %v3298 = vstv %s3297
    %v3299 = vmul.f32 %v3298, %v3115
    %v3300 = vmul.f32 %v3298, %v3116
    %3303 = vrot.lane.b32.xlu0 %v3299, 127
    %v3304 = vpop.permute.xlu0 %3303
    %3305 = vrot.lane.b32.xlu0 %v3300, 127
    %v3306 = vpop.permute.xlu0 %3305
    %v3309 = vadd.f32 %v3239, %v3304
    %v3310 = vadd.f32 %v3240, %v3306
    %s3311 = sld [smem:[#allocation6 + $0xa8]]
    %v3312 = vstv %s3311
    %v3313 = vmul.f32 %v3312, %v3115
    %v3314 = vmul.f32 %v3312, %v3116
    %3317 = vrot.lane.b32.xlu0 %v3313, 127
    %v3318 = vpop.permute.xlu0 %3317
    %3319 = vrot.lane.b32.xlu0 %v3314, 127
    %v3320 = vpop.permute.xlu0 %3319
    %v3323 = vadd.f32 %v3253, %v3318
    %v3324 = vadd.f32 %v3254, %v3320
    %s3325 = sld [smem:[#allocation6 + $0xe4]]
    %v3326 = vstv %s3325
    %v3327 = vmul.f32 %v3326, %v3115
    %v3328 = vmul.f32 %v3326, %v3116
    %3331 = vrot.lane.b32.xlu0 %v3327, 127
    %v3332 = vpop.permute.xlu0 %3331
    %3333 = vrot.lane.b32.xlu0 %v3328, 127
    %v3334 = vpop.permute.xlu0 %3333
    %v3337 = vadd.f32 %v3267, %v3332
    %v3338 = vadd.f32 %v3268, %v3334
    %s3339 = sld [smem:[#allocation6 + $0x120]]
    %v3340 = vstv %s3339
    %v3341 = vmul.f32 %v3340, %v3115
    %v3342 = vmul.f32 %v3340, %v3116
    %3345 = vrot.lane.b32.xlu0 %v3341, 127
    %v3346 = vpop.permute.xlu0 %3345
    %3347 = vrot.lane.b32.xlu0 %v3342, 127
    %v3348 = vpop.permute.xlu0 %3347
    %v3351 = vadd.f32 %v3281, %v3346
    %v3352 = vadd.f32 %v3282, %v3348
    %s3353 = sld [smem:[#allocation6 + $0x31]]
    %v3354 = vstv %s3353
    %v3355 = vmul.f32 %v3354, %v3097
    %v3356 = vmul.f32 %v3354, %v3098
    %3359 = vrot.lane.b32.xlu0 %v3355, 126
    %v3360 = vpop.permute.xlu0 %3359
    %3361 = vrot.lane.b32.xlu0 %v3356, 126
    %v3362 = vpop.permute.xlu0 %3361
    %v3365 = vadd.f32 %v3295, %v3360
    %v3366 = vadd.f32 %v3296, %v3362
    %s3367 = sld [smem:[#allocation6 + $0x6d]]
    %v3368 = vstv %s3367
    %v3369 = vmul.f32 %v3368, %v3097
    %v3370 = vmul.f32 %v3368, %v3098
    %3373 = vrot.lane.b32.xlu0 %v3369, 126
    %v3374 = vpop.permute.xlu0 %3373
    %3375 = vrot.lane.b32.xlu0 %v3370, 126
    %v3376 = vpop.permute.xlu0 %3375
    %v3379 = vadd.f32 %v3309, %v3374
    %v3380 = vadd.f32 %v3310, %v3376
    %s3381 = sld [smem:[#allocation6 + $0xa9]]
    %v3382 = vstv %s3381
    %v3383 = vmul.f32 %v3382, %v3097
    %v3384 = vmul.f32 %v3382, %v3098
    %3387 = vrot.lane.b32.xlu0 %v3383, 126
    %v3388 = vpop.permute.xlu0 %3387
    %3389 = vrot.lane.b32.xlu0 %v3384, 126
    %v3390 = vpop.permute.xlu0 %3389
    %v3393 = vadd.f32 %v3323, %v3388
    %v3394 = vadd.f32 %v3324, %v3390
    %s3395 = sld [smem:[#allocation6 + $0xe5]]
    %v3396 = vstv %s3395
    %v3397 = vmul.f32 %v3396, %v3097
    %v3398 = vmul.f32 %v3396, %v3098
    %3401 = vrot.lane.b32.xlu0 %v3397, 126
    %v3402 = vpop.permute.xlu0 %3401
    %3403 = vrot.lane.b32.xlu0 %v3398, 126
    %v3404 = vpop.permute.xlu0 %3403
    %v3407 = vadd.f32 %v3337, %v3402
    %v3408 = vadd.f32 %v3338, %v3404
    %s3409 = sld [smem:[#allocation6 + $0x121]]
    %v3410 = vstv %s3409
    %v3411 = vmul.f32 %v3410, %v3097
    %v3412 = vmul.f32 %v3410, %v3098
    %3415 = vrot.lane.b32.xlu0 %v3411, 126
    %v3416 = vpop.permute.xlu0 %3415
    %3417 = vrot.lane.b32.xlu0 %v3412, 126
    %v3418 = vpop.permute.xlu0 %3417
    %v3421 = vadd.f32 %v3351, %v3416
    %v3422 = vadd.f32 %v3352, %v3418
    %s3423 = sld [smem:[#allocation6 + $0x32]]
    %v3424 = vstv %s3423
    %v3425 = vmul.f32 %v3424, %v3133
    %v3426 = vmul.f32 %v3424, %v3134
    %v3427 = vadd.f32 %v3365, %v3425
    %v3428 = vadd.f32 %v3366, %v3426
    %s3429 = sld [smem:[#allocation6 + $0x6e]]
    %v3430 = vstv %s3429
    %v3431 = vmul.f32 %v3430, %v3133
    %v3432 = vmul.f32 %v3430, %v3134
    %v3433 = vadd.f32 %v3379, %v3431
    %v3434 = vadd.f32 %v3380, %v3432
    %s3435 = sld [smem:[#allocation6 + $0xaa]]
    %v3436 = vstv %s3435
    %v3437 = vmul.f32 %v3436, %v3133
    %v3438 = vmul.f32 %v3436, %v3134
    %v3439 = vadd.f32 %v3393, %v3437
    %v3440 = vadd.f32 %v3394, %v3438
    %s3441 = sld [smem:[#allocation6 + $0xe6]]
    %v3442 = vstv %s3441
    %v3443 = vmul.f32 %v3442, %v3133
    %v3444 = vmul.f32 %v3442, %v3134
    %v3445 = vadd.f32 %v3407, %v3443
    %v3446 = vadd.f32 %v3408, %v3444
    %s3447 = sld [smem:[#allocation6 + $0x122]]
    %v3448 = vstv %s3447
    %v3449 = vmul.f32 %v3448, %v3133
    %v3450 = vmul.f32 %v3448, %v3134
    %v3451 = vadd.f32 %v3421, %v3449
    %v3452 = vadd.f32 %v3422, %v3450
    %s3453 = sld [smem:[#allocation6 + $0x33]]
    %v3454 = vstv %s3453
    %v3455 = vmul.f32 %v3454, %v3151
    %v3456 = vmul.f32 %v3454, %v3152
    %v3457 = vadd.f32 %v3427, %v3455
    %v3458 = vadd.f32 %v3428, %v3456
    %s3459 = sld [smem:[#allocation6 + $0x6f]]
    %v3460 = vstv %s3459
    %v3461 = vmul.f32 %v3460, %v3151
    %v3462 = vmul.f32 %v3460, %v3152
    %v3463 = vadd.f32 %v3433, %v3461
    %v3464 = vadd.f32 %v3434, %v3462
    %s3465 = sld [smem:[#allocation6 + $0xab]]
    %v3466 = vstv %s3465
    %v3467 = vmul.f32 %v3466, %v3151
    %v3468 = vmul.f32 %v3466, %v3152
    %v3469 = vadd.f32 %v3439, %v3467
    %v3470 = vadd.f32 %v3440, %v3468
    %s3471 = sld [smem:[#allocation6 + $0xe7]]
    %v3472 = vstv %s3471
    %v3473 = vmul.f32 %v3472, %v3151
    %v3474 = vmul.f32 %v3472, %v3152
    %v3475 = vadd.f32 %v3445, %v3473
    %v3476 = vadd.f32 %v3446, %v3474
    %s3477 = sld [smem:[#allocation6 + $0x123]]
    %v3478 = vstv %s3477
    %v3479 = vmul.f32 %v3478, %v3151
    %v3480 = vmul.f32 %v3478, %v3152
    %v3481 = vadd.f32 %v3451, %v3479
    %v3482 = vadd.f32 %v3452, %v3480
    %s3483 = sld [smem:[#allocation6 + $0x34]]
    %v3484 = vstv %s3483
    %v3485 = vmul.f32 %v3484, %v3133
    %v3486 = vmul.f32 %v3484, %v3134
    %3489 = vrot.lane.b32.xlu0 %v3485, 127
    %v3490 = vpop.permute.xlu0 %3489
    %3491 = vrot.lane.b32.xlu0 %v3486, 127
    %v3492 = vpop.permute.xlu0 %3491
    %v3495 = vadd.f32 %v3457, %v3490
    %v3496 = vadd.f32 %v3458, %v3492
    %s3497 = sld [smem:[#allocation6 + $0x70]]
    %v3498 = vstv %s3497
    %v3499 = vmul.f32 %v3498, %v3133
    %v3500 = vmul.f32 %v3498, %v3134
    %3503 = vrot.lane.b32.xlu0 %v3499, 127
    %v3504 = vpop.permute.xlu0 %3503
    %3505 = vrot.lane.b32.xlu0 %v3500, 127
    %v3506 = vpop.permute.xlu0 %3505
    %v3509 = vadd.f32 %v3463, %v3504
    %v3510 = vadd.f32 %v3464, %v3506
    %s3511 = sld [smem:[#allocation6 + $0xac]]
    %v3512 = vstv %s3511
    %v3513 = vmul.f32 %v3512, %v3133
    %v3514 = vmul.f32 %v3512, %v3134
    %3517 = vrot.lane.b32.xlu0 %v3513, 127
    %v3518 = vpop.permute.xlu0 %3517
    %3519 = vrot.lane.b32.xlu0 %v3514, 127
    %v3520 = vpop.permute.xlu0 %3519
    %v3523 = vadd.f32 %v3469, %v3518
    %v3524 = vadd.f32 %v3470, %v3520
    %s3525 = sld [smem:[#allocation6 + $0xe8]]
    %v3526 = vstv %s3525
    %v3527 = vmul.f32 %v3526, %v3133
    %v3528 = vmul.f32 %v3526, %v3134
    %3531 = vrot.lane.b32.xlu0 %v3527, 127
    %v3532 = vpop.permute.xlu0 %3531
    %3533 = vrot.lane.b32.xlu0 %v3528, 127
    %v3534 = vpop.permute.xlu0 %3533
    %v3537 = vadd.f32 %v3475, %v3532
    %v3538 = vadd.f32 %v3476, %v3534
    %s3539 = sld [smem:[#allocation6 + $0x124]]
    %v3540 = vstv %s3539
    %v3541 = vmul.f32 %v3540, %v3133
    %v3542 = vmul.f32 %v3540, %v3134
    %3545 = vrot.lane.b32.xlu0 %v3541, 127
    %v3546 = vpop.permute.xlu0 %3545
    %3547 = vrot.lane.b32.xlu0 %v3542, 127
    %v3548 = vpop.permute.xlu0 %3547
    %v3551 = vadd.f32 %v3481, %v3546
    %v3552 = vadd.f32 %v3482, %v3548
    %s3553 = sld [smem:[#allocation6 + $0x35]]
    %v3554 = vstv %s3553
    %v3555 = vmul.f32 %v3554, %v3151
    %v3556 = vmul.f32 %v3554, %v3152
    %3559 = vrot.lane.b32.xlu0 %v3555, 127
    %v3560 = vpop.permute.xlu0 %3559
    %3561 = vrot.lane.b32.xlu0 %v3556, 127
    %v3562 = vpop.permute.xlu0 %3561
    %v3565 = vadd.f32 %v3495, %v3560
    %v3566 = vadd.f32 %v3496, %v3562
    %s3567 = sld [smem:[#allocation6 + $0x71]]
    %v3568 = vstv %s3567
    %v3569 = vmul.f32 %v3568, %v3151
    %v3570 = vmul.f32 %v3568, %v3152
    %3573 = vrot.lane.b32.xlu0 %v3569, 127
    %v3574 = vpop.permute.xlu0 %3573
    %3575 = vrot.lane.b32.xlu0 %v3570, 127
    %v3576 = vpop.permute.xlu0 %3575
    %v3579 = vadd.f32 %v3509, %v3574
    %v3580 = vadd.f32 %v3510, %v3576
    %s3581 = sld [smem:[#allocation6 + $0xad]]
    %v3582 = vstv %s3581
    %v3583 = vmul.f32 %v3582, %v3151
    %v3584 = vmul.f32 %v3582, %v3152
    %3587 = vrot.lane.b32.xlu0 %v3583, 127
    %v3588 = vpop.permute.xlu0 %3587
    %3589 = vrot.lane.b32.xlu0 %v3584, 127
    %v3590 = vpop.permute.xlu0 %3589
    %v3593 = vadd.f32 %v3523, %v3588
    %v3594 = vadd.f32 %v3524, %v3590
    %s3595 = sld [smem:[#allocation6 + $0xe9]]
    %v3596 = vstv %s3595
    %v3597 = vmul.f32 %v3596, %v3151
    %v3598 = vmul.f32 %v3596, %v3152
    %3601 = vrot.lane.b32.xlu0 %v3597, 127
    %v3602 = vpop.permute.xlu0 %3601
    %3603 = vrot.lane.b32.xlu0 %v3598, 127
    %v3604 = vpop.permute.xlu0 %3603
    %v3607 = vadd.f32 %v3537, %v3602
    %v3608 = vadd.f32 %v3538, %v3604
    %s3609 = sld [smem:[#allocation6 + $0x125]]
    %v3610 = vstv %s3609
    %v3611 = vmul.f32 %v3610, %v3151
    %v3612 = vmul.f32 %v3610, %v3152
    %3615 = vrot.lane.b32.xlu0 %v3611, 127
    %v3616 = vpop.permute.xlu0 %3615
    %3617 = vrot.lane.b32.xlu0 %v3612, 127
    %v3618 = vpop.permute.xlu0 %3617
    %v3621 = vadd.f32 %v3551, %v3616
    %v3622 = vadd.f32 %v3552, %v3618
    %s3623 = sld [smem:[#allocation6 + $0x36]]
    %v3624 = vstv %s3623
    %v3625 = vmul.f32 %v3624, %v3133
    %v3626 = vmul.f32 %v3624, %v3134
    %3629 = vrot.lane.b32.xlu0 %v3625, 126
    %v3630 = vpop.permute.xlu0 %3629
    %3631 = vrot.lane.b32.xlu0 %v3626, 126
    %v3632 = vpop.permute.xlu0 %3631
    %v3635 = vadd.f32 %v3565, %v3630
    %v3636 = vadd.f32 %v3566, %v3632
    %s3637 = sld [smem:[#allocation6 + $0x72]]
    %v3638 = vstv %s3637
    %v3639 = vmul.f32 %v3638, %v3133
    %v3640 = vmul.f32 %v3638, %v3134
    %3643 = vrot.lane.b32.xlu0 %v3639, 126
    %v3644 = vpop.permute.xlu0 %3643
    %3645 = vrot.lane.b32.xlu0 %v3640, 126
    %v3646 = vpop.permute.xlu0 %3645
    %v3649 = vadd.f32 %v3579, %v3644
    %v3650 = vadd.f32 %v3580, %v3646
    %s3651 = sld [smem:[#allocation6 + $0xae]]
    %v3652 = vstv %s3651
    %v3653 = vmul.f32 %v3652, %v3133
    %v3654 = vmul.f32 %v3652, %v3134
    %3657 = vrot.lane.b32.xlu0 %v3653, 126
    %v3658 = vpop.permute.xlu0 %3657
    %3659 = vrot.lane.b32.xlu0 %v3654, 126
    %v3660 = vpop.permute.xlu0 %3659
    %v3663 = vadd.f32 %v3593, %v3658
    %v3664 = vadd.f32 %v3594, %v3660
    %s3665 = sld [smem:[#allocation6 + $0xea]]
    %v3666 = vstv %s3665
    %v3667 = vmul.f32 %v3666, %v3133
    %v3668 = vmul.f32 %v3666, %v3134
    %3671 = vrot.lane.b32.xlu0 %v3667, 126
    %v3672 = vpop.permute.xlu0 %3671
    %3673 = vrot.lane.b32.xlu0 %v3668, 126
    %v3674 = vpop.permute.xlu0 %3673
    %v3677 = vadd.f32 %v3607, %v3672
    %v3678 = vadd.f32 %v3608, %v3674
    %s3679 = sld [smem:[#allocation6 + $0x126]]
    %v3680 = vstv %s3679
    %v3681 = vmul.f32 %v3680, %v3133
    %v3682 = vmul.f32 %v3680, %v3134
    %3685 = vrot.lane.b32.xlu0 %v3681, 126
    %v3686 = vpop.permute.xlu0 %3685
    %3687 = vrot.lane.b32.xlu0 %v3682, 126
    %v3688 = vpop.permute.xlu0 %3687
    %v3691 = vadd.f32 %v3621, %v3686
    %v3692 = vadd.f32 %v3622, %v3688
    %s3693 = sld [smem:[#allocation6 + $0x37]]
    %v3694 = vstv %s3693
    %v3695 = vmul.f32 %v3694, %v3097
    %v3696 = vmul.f32 %v3694, %v3098
    %v3699 = vrot.slane %v3695, 1
    %v3700 = vrot.slane %v3696, 1
    %v3703 = vadd.f32 %v3635, %v3699
    %v3704 = vadd.f32 %v3636, %v3700
    %s3705 = sld [smem:[#allocation6 + $0x73]]
    %v3706 = vstv %s3705
    %v3707 = vmul.f32 %v3706, %v3097
    %v3708 = vmul.f32 %v3706, %v3098
    %v3711 = vrot.slane %v3707, 1
    %v3712 = vrot.slane %v3708, 1
    %v3715 = vadd.f32 %v3649, %v3711
    %v3716 = vadd.f32 %v3650, %v3712
    %s3717 = sld [smem:[#allocation6 + $0xaf]]
    %v3718 = vstv %s3717
    %v3719 = vmul.f32 %v3718, %v3097
    %v3720 = vmul.f32 %v3718, %v3098
    %v3723 = vrot.slane %v3719, 1
    %v3724 = vrot.slane %v3720, 1
    %v3727 = vadd.f32 %v3663, %v3723
    %v3728 = vadd.f32 %v3664, %v3724
    %s3729 = sld [smem:[#allocation6 + $0xeb]]
    %v3730 = vstv %s3729
    %v3731 = vmul.f32 %v3730, %v3097
    %v3732 = vmul.f32 %v3730, %v3098
    %v3735 = vrot.slane %v3731, 1
    %v3736 = vrot.slane %v3732, 1
    %v3739 = vadd.f32 %v3677, %v3735
    %v3740 = vadd.f32 %v3678, %v3736
    %s3741 = sld [smem:[#allocation6 + $0x127]]
    %v3742 = vstv %s3741
    %v3743 = vmul.f32 %v3742, %v3097
    %v3744 = vmul.f32 %v3742, %v3098
    %v3747 = vrot.slane %v3743, 1
    %v3748 = vrot.slane %v3744, 1
    %v3751 = vadd.f32 %v3691, %v3747
    %v3752 = vadd.f32 %v3692, %v3748
    %s3753 = sld [smem:[#allocation6 + $0x38]]
    %v3754 = vstv %s3753
    %v3755 = vmul.f32 %v3754, %v3115
    %v3756 = vmul.f32 %v3754, %v3116
    %v3759 = vrot.slane %v3755, 1
    %v3760 = vrot.slane %v3756, 1
    %v3763 = vadd.f32 %v3703, %v3759
    %v3764 = vadd.f32 %v3704, %v3760
    %s3765 = sld [smem:[#allocation6 + $0x74]]
    %v3766 = vstv %s3765
    %v3767 = vmul.f32 %v3766, %v3115
    %v3768 = vmul.f32 %v3766, %v3116
    %v3771 = vrot.slane %v3767, 1
    %v3772 = vrot.slane %v3768, 1
    %v3775 = vadd.f32 %v3715, %v3771
    %v3776 = vadd.f32 %v3716, %v3772
    %s3777 = sld [smem:[#allocation6 + $0xb0]]
    %v3778 = vstv %s3777
    %v3779 = vmul.f32 %v3778, %v3115
    %v3780 = vmul.f32 %v3778, %v3116
    %v3783 = vrot.slane %v3779, 1
    %v3784 = vrot.slane %v3780, 1
    %v3787 = vadd.f32 %v3727, %v3783
    %v3788 = vadd.f32 %v3728, %v3784
    %s3789 = sld [smem:[#allocation6 + $0xec]]
    %v3790 = vstv %s3789
    %v3791 = vmul.f32 %v3790, %v3115
    %v3792 = vmul.f32 %v3790, %v3116
    %v3795 = vrot.slane %v3791, 1
    %v3796 = vrot.slane %v3792, 1
    %v3799 = vadd.f32 %v3739, %v3795
    %v3800 = vadd.f32 %v3740, %v3796
    %s3801 = sld [smem:[#allocation6 + $0x128]]
    %v3802 = vstv %s3801
    %v3803 = vmul.f32 %v3802, %v3115
    %v3804 = vmul.f32 %v3802, %v3116
    %v3807 = vrot.slane %v3803, 1
    %v3808 = vrot.slane %v3804, 1
    %v3811 = vadd.f32 %v3751, %v3807
    %v3812 = vadd.f32 %v3752, %v3808
    %s3813 = sld [smem:[#allocation6 + $0x39]]
    %v3814 = vstv %s3813
    %v3815 = vmul.f32 %v3814, %v3097
    %v3816 = vmul.f32 %v3814, %v3098
    %v3819 = vrot.slane %v3815, 1
    %v3820 = vrot.slane %v3816, 1
    %3821 = vrot.lane.b32.xlu0 %v3819, 127
    %v3822 = vpop.permute.xlu0 %3821
    %3823 = vrot.lane.b32.xlu0 %v3820, 127
    %v3824 = vpop.permute.xlu0 %3823
    %v3827 = vadd.f32 %v3763, %v3822
    %v3828 = vadd.f32 %v3764, %v3824
    %s3829 = sld [smem:[#allocation6 + $0x75]]
    %v3830 = vstv %s3829
    %v3831 = vmul.f32 %v3830, %v3097
    %v3832 = vmul.f32 %v3830, %v3098
    %v3835 = vrot.slane %v3831, 1
    %v3836 = vrot.slane %v3832, 1
    %3837 = vrot.lane.b32.xlu0 %v3835, 127
    %v3838 = vpop.permute.xlu0 %3837
    %3839 = vrot.lane.b32.xlu0 %v3836, 127
    %v3840 = vpop.permute.xlu0 %3839
    %v3843 = vadd.f32 %v3775, %v3838
    %v3844 = vadd.f32 %v3776, %v3840
    %s3845 = sld [smem:[#allocation6 + $0xb1]]
    %v3846 = vstv %s3845
    %v3847 = vmul.f32 %v3846, %v3097
    %v3848 = vmul.f32 %v3846, %v3098
    %v3851 = vrot.slane %v3847, 1
    %v3852 = vrot.slane %v3848, 1
    %3853 = vrot.lane.b32.xlu0 %v3851, 127
    %v3854 = vpop.permute.xlu0 %3853
    %3855 = vrot.lane.b32.xlu0 %v3852, 127
    %v3856 = vpop.permute.xlu0 %3855
    %v3859 = vadd.f32 %v3787, %v3854
    %v3860 = vadd.f32 %v3788, %v3856
    %s3861 = sld [smem:[#allocation6 + $0xed]]
    %v3862 = vstv %s3861
    %v3863 = vmul.f32 %v3862, %v3097
    %v3864 = vmul.f32 %v3862, %v3098
    %v3867 = vrot.slane %v3863, 1
    %v3868 = vrot.slane %v3864, 1
    %3869 = vrot.lane.b32.xlu0 %v3867, 127
    %v3870 = vpop.permute.xlu0 %3869
    %3871 = vrot.lane.b32.xlu0 %v3868, 127
    %v3872 = vpop.permute.xlu0 %3871
    %v3875 = vadd.f32 %v3799, %v3870
    %v3876 = vadd.f32 %v3800, %v3872
    %s3877 = sld [smem:[#allocation6 + $0x129]]
    %v3878 = vstv %s3877
    %v3879 = vmul.f32 %v3878, %v3097
    %v3880 = vmul.f32 %v3878, %v3098
    %v3883 = vrot.slane %v3879, 1
    %v3884 = vrot.slane %v3880, 1
    %3885 = vrot.lane.b32.xlu0 %v3883, 127
    %v3886 = vpop.permute.xlu0 %3885
    %3887 = vrot.lane.b32.xlu0 %v3884, 127
    %v3888 = vpop.permute.xlu0 %3887
    %v3891 = vadd.f32 %v3811, %v3886
    %v3892 = vadd.f32 %v3812, %v3888
    %s3893 = sld [smem:[#allocation6 + $0x3a]]
    %v3894 = vstv %s3893
    %v3895 = vmul.f32 %v3894, %v3115
    %v3896 = vmul.f32 %v3894, %v3116
    %v3899 = vrot.slane %v3895, 1
    %v3900 = vrot.slane %v3896, 1
    %3901 = vrot.lane.b32.xlu0 %v3899, 127
    %v3902 = vpop.permute.xlu0 %3901
    %3903 = vrot.lane.b32.xlu0 %v3900, 127
    %v3904 = vpop.permute.xlu0 %3903
    %v3907 = vadd.f32 %v3827, %v3902
    %v3908 = vadd.f32 %v3828, %v3904
    %s3909 = sld [smem:[#allocation6 + $0x76]]
    %v3910 = vstv %s3909
    %v3911 = vmul.f32 %v3910, %v3115
    %v3912 = vmul.f32 %v3910, %v3116
    %v3915 = vrot.slane %v3911, 1
    %v3916 = vrot.slane %v3912, 1
    %3917 = vrot.lane.b32.xlu0 %v3915, 127
    %v3918 = vpop.permute.xlu0 %3917
    %3919 = vrot.lane.b32.xlu0 %v3916, 127
    %v3920 = vpop.permute.xlu0 %3919
    %v3923 = vadd.f32 %v3843, %v3918
    %v3924 = vadd.f32 %v3844, %v3920
    %s3925 = sld [smem:[#allocation6 + $0xb2]]
    %v3926 = vstv %s3925
    %v3927 = vmul.f32 %v3926, %v3115
    %v3928 = vmul.f32 %v3926, %v3116
    %v3931 = vrot.slane %v3927, 1
    %v3932 = vrot.slane %v3928, 1
    %3933 = vrot.lane.b32.xlu0 %v3931, 127
    %v3934 = vpop.permute.xlu0 %3933
    %3935 = vrot.lane.b32.xlu0 %v3932, 127
    %v3936 = vpop.permute.xlu0 %3935
    %v3939 = vadd.f32 %v3859, %v3934
    %v3940 = vadd.f32 %v3860, %v3936
    %s3941 = sld [smem:[#allocation6 + $0xee]]
    %v3942 = vstv %s3941
    %v3943 = vmul.f32 %v3942, %v3115
    %v3944 = vmul.f32 %v3942, %v3116
    %v3947 = vrot.slane %v3943, 1
    %v3948 = vrot.slane %v3944, 1
    %3949 = vrot.lane.b32.xlu0 %v3947, 127
    %v3950 = vpop.permute.xlu0 %3949
    %3951 = vrot.lane.b32.xlu0 %v3948, 127
    %v3952 = vpop.permute.xlu0 %3951
    %v3955 = vadd.f32 %v3875, %v3950
    %v3956 = vadd.f32 %v3876, %v3952
    %s3957 = sld [smem:[#allocation6 + $0x12a]]
    %v3958 = vstv %s3957
    %v3959 = vmul.f32 %v3958, %v3115
    %v3960 = vmul.f32 %v3958, %v3116
    %v3963 = vrot.slane %v3959, 1
    %v3964 = vrot.slane %v3960, 1
    %3965 = vrot.lane.b32.xlu0 %v3963, 127
    %v3966 = vpop.permute.xlu0 %3965
    %3967 = vrot.lane.b32.xlu0 %v3964, 127
    %v3968 = vpop.permute.xlu0 %3967
    %v3971 = vadd.f32 %v3891, %v3966
    %v3972 = vadd.f32 %v3892, %v3968
    %s3973 = sld [smem:[#allocation6 + $0x3b]]
    %v3974 = vstv %s3973
    %v3975 = vmul.f32 %v3974, %v3097
    %v3976 = vmul.f32 %v3974, %v3098
    %v3979 = vrot.slane %v3975, 1
    %v3980 = vrot.slane %v3976, 1
    %3981 = vrot.lane.b32.xlu0 %v3979, 126
    %v3982 = vpop.permute.xlu0 %3981
    %3983 = vrot.lane.b32.xlu0 %v3980, 126
    %v3984 = vpop.permute.xlu0 %3983
    %v3987 = vadd.f32 %v3907, %v3982
    %v3988 = vadd.f32 %v3908, %v3984
    %s3989 = sld [smem:[#allocation6 + $0x77]]
    %v3990 = vstv %s3989
    %v3991 = vmul.f32 %v3990, %v3097
    %v3992 = vmul.f32 %v3990, %v3098
    %v3995 = vrot.slane %v3991, 1
    %v3996 = vrot.slane %v3992, 1
    %3997 = vrot.lane.b32.xlu0 %v3995, 126
    %v3998 = vpop.permute.xlu0 %3997
    %3999 = vrot.lane.b32.xlu0 %v3996, 126
    %v4000 = vpop.permute.xlu0 %3999
    %v4003 = vadd.f32 %v3923, %v3998
    %v4004 = vadd.f32 %v3924, %v4000
    %s4005 = sld [smem:[#allocation6 + $0xb3]]
    %v4006 = vstv %s4005
    %v4007 = vmul.f32 %v4006, %v3097
    %v4008 = vmul.f32 %v4006, %v3098
    %v4011 = vrot.slane %v4007, 1
    %v4012 = vrot.slane %v4008, 1
    %4013 = vrot.lane.b32.xlu0 %v4011, 126
    %v4014 = vpop.permute.xlu0 %4013
    %4015 = vrot.lane.b32.xlu0 %v4012, 126
    %v4016 = vpop.permute.xlu0 %4015
    %v4019 = vadd.f32 %v3939, %v4014
    %v4020 = vadd.f32 %v3940, %v4016
    %s4021 = sld [smem:[#allocation6 + $0xef]]
    %v4022 = vstv %s4021
    %v4023 = vmul.f32 %v4022, %v3097
    %v4024 = vmul.f32 %v4022, %v3098
    %v4027 = vrot.slane %v4023, 1
    %v4028 = vrot.slane %v4024, 1
    %4029 = vrot.lane.b32.xlu0 %v4027, 126
    %v4030 = vpop.permute.xlu0 %4029
    %4031 = vrot.lane.b32.xlu0 %v4028, 126
    %v4032 = vpop.permute.xlu0 %4031
    %v4035 = vadd.f32 %v3955, %v4030
    %v4036 = vadd.f32 %v3956, %v4032
    %s4037 = sld [smem:[#allocation6 + $0x12b]]
    %v4038 = vstv %s4037
    %v4039 = vmul.f32 %v4038, %v3097
    %v4040 = vmul.f32 %v4038, %v3098
    %v4043 = vrot.slane %v4039, 1
    %v4044 = vrot.slane %v4040, 1
    %4045 = vrot.lane.b32.xlu0 %v4043, 126
    %v4046 = vpop.permute.xlu0 %4045
    %4047 = vrot.lane.b32.xlu0 %v4044, 126
    %v4048 = vpop.permute.xlu0 %4047
    %v4051 = vadd.f32 %v3971, %v4046
    %v4052 = vadd.f32 %v3972, %v4048
    %v4053 = vtanh.pop %v3987
    %v4054 = vtanh.pop %v3988
    %vm4055 = vcmask 47104
    %4056 = vst.msk [vmem:[%s5] sm:$0x7f] %vm4055, %v4053
    %s4057 = scalar_lea.vmem %s5, 40
    %4058 = vst.msk [vmem:[%s4057] sm:$0x7f] %vm4055, %v4054
    %v4059 = vtanh.pop %v4003
    %v4060 = vtanh.pop %v4004
    %s4061 = scalar_lea.vmem %s5, 8
    %4062 = vst.msk [vmem:[%s4061] sm:$0x7f] %vm4055, %v4059
    %s4063 = scalar_lea.vmem %s5, 48
    %4064 = vst.msk [vmem:[%s4063] sm:$0x7f] %vm4055, %v4060
    %v4065 = vtanh.pop %v4019
    %v4066 = vtanh.pop %v4020
    %s4067 = scalar_lea.vmem %s5, 16
    %4068 = vst.msk [vmem:[%s4067] sm:$0x7f] %vm4055, %v4065
    %s4069 = scalar_lea.vmem %s5, 56
    %4070 = vst.msk [vmem:[%s4069] sm:$0x7f] %vm4055, %v4066
    %v4071 = vtanh.pop %v4035
    %v4072 = vtanh.pop %v4036
    %s4073 = scalar_lea.vmem %s5, 24
    %4074 = vst.msk [vmem:[%s4073] sm:$0x7f] %vm4055, %v4071
    %s4075 = scalar_lea.vmem %s5, 64
    %4076 = vst.msk [vmem:[%s4075] sm:$0x7f] %vm4055, %v4072
    %v4077 = vtanh.pop %v4051
    %v4078 = vtanh.pop %v4052
    %s4079 = scalar_lea.vmem %s5, 32
    %4080 = vst.msk [vmem:[%s4079] sm:$0x7f] %vm4055, %v4077
    %s4081 = scalar_lea.vmem %s5, 72
    %4082 = vst.msk [vmem:[%s4081] sm:$0x7f] %vm4055, %v4078
    // Predicated region
    $region38: #{model_forward.1} parent=1 // pred_check
      _
    $region39: #{model_forward.1} parent=1 // pred_check_branch
      %4084 = sbr.rel (0) target = $region41
    $region40: #{model_forward.1} parent=1 // pred_region
      _
    $region41: #{model_forward.1} parent=1 // pred_fallthru
      _
    // Predicated region
    $region42: #{model_forward.1} parent=1 // pred_check
      _
    $region43: #{model_forward.1} parent=1 // pred_check_branch
      %4086 = sbr.rel (0) target = $region45
    $region44: #{model_forward.1} parent=1 // pred_region
      _
    $region45: #{model_forward.1} parent=1 // pred_fallthru
      _
    %4087 = vsyncpa [#allocation3], 1
    %4088 = vsyncpa [#allocation5], 1
    %4089 = vsyncpa [#allocation8], 1

</llo_original>
